<compile_context>
chip_gen: v7x
topology: tpu7x:2x2x1
jax: 0.10.0
libtpu: 0.0.40
codegen_flags: <defaults>
</compile_context>

<pallas_src>
import functools

import jax
import jax.numpy as jnp
from jax.experimental import pallas as pl
from jax.experimental.pallas import tpu as pltpu


# --------------------------------------------------------------------------
# helpers
# --------------------------------------------------------------------------
def _pick_lane_tile(hw: int, cap: int) -> int:
    """Largest divisor of hw that is a multiple of 128 and <= cap, else hw."""
    best = None
    d = 1
    while d * d <= hw:
        if hw % d == 0:
            for t in (d, hw // d):
                if t % 128 == 0 and t <= cap and (best is None or t > best):
                    best = t
        d += 1
    return best if best is not None else hw


# --------------------------------------------------------------------------
# K1: channel LayerNorm (scale only) + 1x1 conv (c -> 2c)
# --------------------------------------------------------------------------
def _norm_conv1x1_kernel(x_ref, g_ref, w_ref, b_ref, o_ref, *, eps):
    f32 = jnp.float32
    x = x_ref[0].astype(f32)                            # (C, tn), C on sublanes
    mu = jnp.mean(x, axis=0, keepdims=True)             # per-pixel channel mean
    xc = x - mu
    var = jnp.mean(xc * xc, axis=0, keepdims=True)      # biased variance
    xn = xc * jax.lax.rsqrt(var + eps) * g_ref[...].astype(f32)
    y = jnp.dot(w_ref[...].astype(f32), xn,
                preferred_element_type=f32) + b_ref[...].astype(f32)
    o_ref[0] = y.astype(o_ref.dtype)


def _norm_conv1x1(x3, g, w, b, *, eps, tn):
    N, C, HW = x3.shape
    Cout = w.shape[0]
    return pl.pallas_call(
        functools.partial(_norm_conv1x1_kernel, eps=eps),
        out_shape=jax.ShapeDtypeStruct((N, Cout, HW), x3.dtype),
        grid_spec=pltpu.PrefetchScalarGridSpec(
            num_scalar_prefetch=0,
            grid=(N, HW // tn),
            in_specs=[
                pl.BlockSpec((1, C, tn), lambda n, t: (n, 0, t)),
                pl.BlockSpec((C, 1), lambda n, t: (0, 0)),
                pl.BlockSpec((Cout, C), lambda n, t: (0, 0)),
                pl.BlockSpec((Cout, 1), lambda n, t: (0, 0)),
            ],
            out_specs=pl.BlockSpec((1, Cout, tn), lambda n, t: (n, 0, t)),
        ),
        compiler_params=pltpu.CompilerParams(
            dimension_semantics=("parallel", "parallel")),
    )(x3, g, w, b)


# --------------------------------------------------------------------------
# K2: 3x3 depthwise conv on both channel halves + SimpleGate + global pool
#     (one (H, W) plane per grid step; dw-conv expressed as matmuls against
#     constant 0/1 shift matrices so only well-supported ops are used)
# --------------------------------------------------------------------------
def _dwconv_gate_kernel(xa_ref, xb_ref, w_ref, b_ref, go_ref, pool_ref,
                        *, c, H, W):
    f32 = jnp.float32
    j = pl.program_id(1)

    # Column shift matrices: (x @ s_w[d])[h, w] == x[h, w + d - 1] (zero pad).
    rw = jax.lax.broadcasted_iota(jnp.int32, (W, W), 0)
    cw = jax.lax.broadcasted_iota(jnp.int32, (W, W), 1)
    s_w = [(rw == cw + (d - 1)).astype(f32) for d in range(3)]
    # Row shift matrices: (s_h[i] @ z)[h, w] == z[h + i - 1, w] (zero pad).
    rh = jax.lax.broadcasted_iota(jnp.int32, (H, H), 0)
    uh = jax.lax.broadcasted_iota(jnp.int32, (H, H), 1)
    s_h = [(uh == rh + (i - 1)).astype(f32) for i in range(3)]

    def dwconv3x3(src_ref, ch):
        x = src_ref[0, 0].astype(f32)                   # (H, W), W on lanes
        acc = jnp.zeros((H, W), f32) + b_ref[ch]        # bias (SMEM scalar)
        for i in range(3):
            # Fold the 3 column taps of this row into one (W, W) matrix.
            r = (w_ref[ch * 9 + i * 3 + 0] * s_w[0]
                 + w_ref[ch * 9 + i * 3 + 1] * s_w[1]
                 + w_ref[ch * 9 + i * 3 + 2] * s_w[2])
            m = jnp.dot(x, r, preferred_element_type=f32)
            if i == 1:                                  # s_h[1] is identity
                acc = acc + m
            else:
                acc = acc + jnp.dot(s_h[i], m, preferred_element_type=f32)
        return acc

    g = dwconv3x3(xa_ref, j) * dwconv3x3(xb_ref, j + c)  # SimpleGate
    go_ref[0, 0] = g.astype(go_ref.dtype)
    # Global spatial mean of the gated plane (feeds SCA in K3).
    s = jnp.sum(g, axis=1, keepdims=True)
    s = jnp.sum(s, axis=0, keepdims=True)                # (1, 1)
    pool_ref[0, 0] = (s * (1.0 / (H * W))).astype(pool_ref.dtype)


def _dwconv_gate(t1, w_dw, b_dw, *, c, H, W):
    # NOTE: each grid step keeps one full (H, W) plane in VMEM; comfortable
    # for typical NAFNet resolutions (up to roughly 2k x 2k f32 planes).
    N = t1.shape[0]
    return pl.pallas_call(
        functools.partial(_dwconv_gate_kernel, c=c, H=H, W=W),
        out_shape=(jax.ShapeDtypeStruct((N, c, H, W), t1.dtype),
                   jax.ShapeDtypeStruct((N, c, 1, 1), jnp.float32)),
        grid_spec=pltpu.PrefetchScalarGridSpec(
            num_scalar_prefetch=0,
            grid=(N, c),
            in_specs=[
                pl.BlockSpec((1, 1, H, W), lambda n, j: (n, j, 0, 0)),
                pl.BlockSpec((1, 1, H, W), lambda n, j: (n, j + c, 0, 0)),
                pl.BlockSpec(memory_space=pltpu.MemorySpace.SMEM),
                pl.BlockSpec(memory_space=pltpu.MemorySpace.SMEM),
            ],
            out_specs=[
                pl.BlockSpec((1, 1, H, W), lambda n, j: (n, j, 0, 0)),
                pl.BlockSpec((1, 1, 1, 1), lambda n, j: (n, j, 0, 0)),
            ],
        ),
        compiler_params=pltpu.CompilerParams(
            dimension_semantics=("parallel", "parallel")),
    )(t1, t1, w_dw, b_dw)


# --------------------------------------------------------------------------
# K3: SCA + conv3 + beta residual + norm2 + conv4 + SimpleGate + conv5
#     + gamma residual, fully fused (the residual y stays in VMEM).
# --------------------------------------------------------------------------
def _sca_ffn_kernel(inp_ref, x_ref, pool_ref, wsca_ref, bsca_ref,
                    w3_ref, b3_ref, beta_ref, g2_ref,
                    w4a_ref, b4a_ref, w4b_ref, b4b_ref,
                    w5_ref, b5_ref, gamma_ref, o_ref, *, eps):
    f32 = jnp.float32
    x = x_ref[0].astype(f32)                            # (C, tn) gated planes
    pooled = pool_ref[0].astype(f32)                    # (1, C) per-image pool

    # SCA channel attention: tiny 1x1 conv on the pooled vector.
    sca = jnp.sum(wsca_ref[...].astype(f32) * pooled, axis=1, keepdims=True)
    sca = sca + bsca_ref[...].astype(f32)               # (C, 1)
    xs = x * sca

    # conv3 (1x1) + beta residual.
    t3 = jnp.dot(w3_ref[...].astype(f32), xs,
                 preferred_element_type=f32) + b3_ref[...].astype(f32)
    y = inp_ref[0].astype(f32) + t3 * beta_ref[...].astype(f32)

    # norm2 (channel LayerNorm, scale only).
    mu = jnp.mean(y, axis=0, keepdims=True)
    yc = y - mu
    var = jnp.mean(yc * yc, axis=0, keepdims=True)
    yn = yc * jax.lax.rsqrt(var + eps) * g2_ref[...].astype(f32)

    # conv4 (1x1, both halves) -> SimpleGate -> conv5 (1x1).
    h1 = jnp.dot(w4a_ref[...].astype(f32), yn,
                 preferred_element_type=f32) + b4a_ref[...].astype(f32)
    h2 = jnp.dot(w4b_ref[...].astype(f32), yn,
                 preferred_element_type=f32) + b4b_ref[...].astype(f32)
    gate = h1 * h2
    t5 = jnp.dot(w5_ref[...].astype(f32), gate,
                 preferred_element_type=f32) + b5_ref[...].astype(f32)

    out = y + t5 * gamma_ref[...].astype(f32)
    o_ref[0] = out.astype(o_ref.dtype)


def _sca_ffn(inp3, gated3, pooled_row, wsca, bsca, w3, b3, beta, g2,
             w4a, b4a, w4b, b4b, w5, b5, gamma, *, eps, tn):
    N, C, HW = inp3.shape
    full = lambda n, t: (0, 0)
    return pl.pallas_call(
        functools.partial(_sca_ffn_kernel, eps=eps),
        out_shape=jax.ShapeDtypeStruct((N, C, HW), inp3.dtype),
        grid_spec=pltpu.PrefetchScalarGridSpec(
            num_scalar_prefetch=0,
            grid=(N, HW // tn),
            in_specs=[
                pl.BlockSpec((1, C, tn), lambda n, t: (n, 0, t)),
                pl.BlockSpec((1, C, tn), lambda n, t: (n, 0, t)),
                pl.BlockSpec((1, 1, C), lambda n, t: (n, 0, 0)),
                pl.BlockSpec((C, C), full),
                pl.BlockSpec((C, 1), full),
                pl.BlockSpec((C, C), full),
                pl.BlockSpec((C, 1), full),
                pl.BlockSpec((C, 1), full),
                pl.BlockSpec((C, 1), full),
                pl.BlockSpec((C, C), full),
                pl.BlockSpec((C, 1), full),
                pl.BlockSpec((C, C), full),
                pl.BlockSpec((C, 1), full),
                pl.BlockSpec((C, C), full),
                pl.BlockSpec((C, 1), full),
                pl.BlockSpec((C, 1), full),
            ],
            out_specs=pl.BlockSpec((1, C, tn), lambda n, t: (n, 0, t)),
        ),
        compiler_params=pltpu.CompilerParams(
            dimension_semantics=("parallel", "parallel")),
    )(inp3, gated3, pooled_row, wsca, bsca, w3, b3, beta, g2,
      w4a, b4a, w4b, b4b, w5, b5, gamma)


# --------------------------------------------------------------------------
# Full NAFBlock forward
# --------------------------------------------------------------------------
def nafblock_forward(inp, params):
    """inp: (N, C, H, W); params: dict of PyTorch-shaped parameter arrays."""
    N, C, H, W = inp.shape
    HW = H * W
    dw = 2 * C
    eps = 1e-5 if inp.dtype == jnp.float32 else 1e-3

    # Lane tile: biggest 128-multiple divisor of H*W keeping a (2C, tn) block
    # near ~2 MiB -> double-buffered blocks stay far below default scoped
    # VMEM on v5e/v6e/v7x.
    cap = max(128, (2 * 1024 * 1024) // (2 * C * inp.dtype.itemsize))
    tn = _pick_lane_tile(HW, cap)

    f32 = jnp.float32
    g1 = params["norm1_g"].reshape(C, 1).astype(f32)
    w1 = params["conv1_w"].reshape(dw, C).astype(f32)
    b1 = params["conv1_b"].reshape(dw, 1).astype(f32)
    wdw = params["conv2_w"].reshape(dw * 9).astype(f32)
    bdw = params["conv2_b"].reshape(dw).astype(f32)
    wsca = params["sca_w"].reshape(C, C).astype(f32)
    bsca = params["sca_b"].reshape(C, 1).astype(f32)
    w3 = params["conv3_w"].reshape(C, C).astype(f32)
    b3 = params["conv3_b"].reshape(C, 1).astype(f32)
    beta = params["beta"].reshape(C, 1).astype(f32)
    g2 = params["norm2_g"].reshape(C, 1).astype(f32)
    w4 = params["conv4_w"].reshape(dw, C).astype(f32)
    b4 = params["conv4_b"].reshape(dw, 1).astype(f32)
    w4a, w4b = w4[:C], w4[C:]
    b4a, b4b = b4[:C], b4[C:]
    w5 = params["conv5_w"].reshape(C, C).astype(f32)
    b5 = params["conv5_b"].reshape(C, 1).astype(f32)
    gamma = params["gamma"].reshape(C, 1).astype(f32)

    x3 = inp.reshape(N, C, HW)                      # free view, no transpose

    # K1: norm1 + conv1 (1x1): (N, C, HW) -> (N, 2C, HW)
    t1 = _norm_conv1x1(x3, g1, w1, b1, eps=eps, tn=tn)

    # K2: depthwise 3x3 on both halves + SimpleGate + global average pool.
    gated, pooled = _dwconv_gate(t1.reshape(N, dw, H, W), wdw, bdw,
                                 c=C, H=H, W=W)

    # K3: SCA + conv3 + beta-residual + norm2 + conv4 + SimpleGate + conv5
    #     + gamma-residual (fused; y never written to HBM).
    out3 = _sca_ffn(x3, gated.reshape(N, C, HW), pooled.reshape(N, 1, C),
                    wsca, bsca, w3, b3, beta, g2,
                    w4a, b4a, w4b, b4b, w5, b5, gamma, eps=eps, tn=tn)

    # TODO(synk): dropout1/dropout2 are identity at the module default
    # drop_out_rate=0.0; stochastic dropout is not implemented here.
    return out3.reshape(N, C, H, W)


# --------------------------------------------------------------------------
# Pure-JAX reference (mirrors the PyTorch forward exactly)
# --------------------------------------------------------------------------
def _reference(inp, params, eps):
    f32 = jnp.float32
    hi = jax.lax.Precision.HIGHEST
    x = inp.astype(f32)

    def layer_norm(v, g):
        mu = jnp.mean(v, axis=1, keepdims=True)
        var = jnp.mean((v - mu) ** 2, axis=1, keepdims=True)
        return (v - mu) * jax.lax.rsqrt(var + eps) * g

    def conv1x1(v, w, b):
        return (jnp.einsum("oi,nihw->nohw", w[:, :, 0, 0], v, precision=hi)
                + b.reshape(1, -1, 1, 1))

    def dwconv3x3(v, w, b):
        out = jax.lax.conv_general_dilated(
            v, w, window_strides=(1, 1), padding=((1, 1), (1, 1)),
            dimension_numbers=("NCHW", "OIHW", "NCHW"),
            feature_group_count=v.shape[1], precision=hi)
        return out + b.reshape(1, -1, 1, 1)

    t = layer_norm(x, params["norm1_g"])
    t = conv1x1(t, params["conv1_w"], params["conv1_b"])
    t = dwconv3x3(t, params["conv2_w"], params["conv2_b"])
    a, bch = jnp.split(t, 2, axis=1)
    t = a * bch
    pooled = jnp.mean(t, axis=(2, 3), keepdims=True)
    sca = (jnp.einsum("oi,nijk->nojk", params["sca_w"][:, :, 0, 0], pooled,
                      precision=hi)
           + params["sca_b"].reshape(1, -1, 1, 1))
    t = t * sca
    t = conv1x1(t, params["conv3_w"], params["conv3_b"])
    y = x + t * params["beta"]
    t = layer_norm(y, params["norm2_g"])
    t = conv1x1(t, params["conv4_w"], params["conv4_b"])
    a, bch = jnp.split(t, 2, axis=1)
    t = a * bch
    t = conv1x1(t, params["conv5_w"], params["conv5_b"])
    return y + t * params["gamma"]


if __name__ == "__main__":
    key = jax.random.PRNGKey(0)
    keys = jax.random.split(key, 17)

    N, C, H, W = 2, 4, 16, 16
    dw = 2 * C
    f32 = jnp.float32

    def rnd(k, shape, scale):
        return scale * jax.random.normal(k, shape, dtype=f32)

    # PyTorch init gives ones for norm.g and zeros for beta/gamma; perturb
    # deterministically so every branch of the block is exercised.
    params = {
        "norm1_g": 1.0 + 0.1 * jax.random.normal(keys[0], (1, C, 1, 1), f32),
        "conv1_w": rnd(keys[1], (dw, C, 1, 1), 0.4),
        "conv1_b": rnd(keys[2], (dw,), 0.1),
        "conv2_w": rnd(keys[3], (dw, 1, 3, 3), 0.4),
        "conv2_b": rnd(keys[4], (dw,), 0.1),
        "sca_w": rnd(keys[5], (C, C, 1, 1), 0.4),
        "sca_b": rnd(keys[6], (C,), 0.1),
        "conv3_w": rnd(keys[7], (C, C, 1, 1), 0.4),
        "conv3_b": rnd(keys[8], (C,), 0.1),
        "beta": rnd(keys[9], (1, C, 1, 1), 0.5),
        "norm2_g": 1.0 + 0.1 * jax.random.normal(keys[10], (1, C, 1, 1), f32),
        "conv4_w": rnd(keys[11], (dw, C, 1, 1), 0.4),
        "conv4_b": rnd(keys[12], (dw,), 0.1),
        "conv5_w": rnd(keys[13], (C, C, 1, 1), 0.4),
        "conv5_b": rnd(keys[14], (C,), 0.1),
        "gamma": rnd(keys[15], (1, C, 1, 1), 0.5),
    }
    x = jax.random.normal(keys[16], (N, C, H, W), dtype=f32)

    out = jax.jit(nafblock_forward)(x, params)
    out = jax.block_until_ready(out)

    ref = _reference(x, params, eps=1e-5)
    assert out.shape == (N, C, H, W)
    err = float(jnp.max(jnp.abs(out - ref)))
    assert err < 1e-3, f"mismatch vs reference: max abs err = {err}"

    print("KERNEL_OK")
</pallas_src>

<mosaic_0001>
module attributes {stable_mosaic.version = 11 : i64} {
  func.func @_norm_conv1x1_kernel(%arg0: i32, %arg1: i32, %arg2: memref<1x4x256xf32, #tpu.memory_space<vmem>>, %arg3: memref<4x1xf32, #tpu.memory_space<vmem>>, %arg4: memref<8x4xf32, #tpu.memory_space<vmem>>, %arg5: memref<8x1xf32, #tpu.memory_space<vmem>>, %arg6: memref<1x8x256xf32, #tpu.memory_space<vmem>>) attributes {dimension_semantics = [#tpu.dimension_semantics<parallel>, #tpu.dimension_semantics<parallel>], iteration_bounds = array<i64: 2, 1>, scalar_prefetch = 0 : i64, scratch_operands = 0 : i64, tpu.core_type = #tpu.core_type<tc>, window_params = [{transform_indices = @transform_0, window_bounds = array<i64: 1, 4, 256>}, {pipeline_mode = #tpu.pipeline_mode<synchronous>, transform_indices = @transform_1, window_bounds = array<i64: 4, 1>}, {pipeline_mode = #tpu.pipeline_mode<synchronous>, transform_indices = @transform_2, window_bounds = array<i64: 8, 4>}, {pipeline_mode = #tpu.pipeline_mode<synchronous>, transform_indices = @transform_3, window_bounds = array<i64: 8, 1>}, {transform_indices = @transform_4, window_bounds = array<i64: 1, 8, 256>}]} {
    %c0 = arith.constant 0 : index
    %c0_0 = arith.constant 0 : index
    %c0_1 = arith.constant 0 : index
    %0 = vector.load %arg2[%c0, %c0_0, %c0_1] : memref<1x4x256xf32, #tpu.memory_space<vmem>>, vector<1x4x256xf32>
    %1 = vector.shape_cast %0 : vector<1x4x256xf32> to vector<4x256xf32>
    %cst = arith.constant dense<0.000000e+00> : vector<256xf32>
    %2 = vector.multi_reduction <add>, %1, %cst [0] : vector<4x256xf32> to vector<256xf32>
    %3 = vector.shape_cast %2 : vector<256xf32> to vector<1x256xf32>
    %cst_2 = arith.constant 4.000000e+00 : f32
    %4 = vector.broadcast %cst_2 : f32 to vector<1x256xf32>
    %5 = arith.divf %3, %4 : vector<1x256xf32>
    %6 = vector.broadcast %5 : vector<1x256xf32> to vector<4x256xf32>
    %7 = arith.subf %1, %6 : vector<4x256xf32>
    %8 = arith.mulf %7, %7 : vector<4x256xf32>
    %cst_3 = arith.constant dense<0.000000e+00> : vector<256xf32>
    %9 = vector.multi_reduction <add>, %8, %cst_3 [0] : vector<4x256xf32> to vector<256xf32>
    %10 = vector.shape_cast %9 : vector<256xf32> to vector<1x256xf32>
    %cst_4 = arith.constant 4.000000e+00 : f32
    %11 = vector.broadcast %cst_4 : f32 to vector<1x256xf32>
    %12 = arith.divf %10, %11 : vector<1x256xf32>
    %cst_5 = arith.constant 9.99999974E-6 : f32
    %13 = vector.broadcast %cst_5 : f32 to vector<1x256xf32>
    %14 = arith.addf %12, %13 : vector<1x256xf32>
    %15 = math.rsqrt %14 : vector<1x256xf32>
    %16 = vector.broadcast %15 : vector<1x256xf32> to vector<4x256xf32>
    %17 = arith.mulf %7, %16 : vector<4x256xf32>
    %c0_6 = arith.constant 0 : index
    %c0_7 = arith.constant 0 : index
    %18 = vector.load %arg3[%c0_6, %c0_7] : memref<4x1xf32, #tpu.memory_space<vmem>>, vector<4x1xf32>
    %19 = vector.broadcast %18 : vector<4x1xf32> to vector<4x256xf32>
    %20 = arith.mulf %17, %19 : vector<4x256xf32>
    %c0_8 = arith.constant 0 : index
    %c0_9 = arith.constant 0 : index
    %21 = vector.load %arg4[%c0_8, %c0_9] : memref<8x4xf32, #tpu.memory_space<vmem>>, vector<8x4xf32>
    %cst_10 = arith.constant dense<0.000000e+00> : vector<8x256xf32>
    %22 = tpu.matmul %21, %20, %cst_10 {dimension_numbers = #tpu.dot_dimension_numbers<[1], [0], [0], [1], [0, 0, 1, 1], [], []>} : vector<8x4xf32>, vector<4x256xf32>, vector<8x256xf32> -> vector<8x256xf32>
    %c0_11 = arith.constant 0 : index
    %c0_12 = arith.constant 0 : index
    %23 = vector.load %arg5[%c0_11, %c0_12] : memref<8x1xf32, #tpu.memory_space<vmem>>, vector<8x1xf32>
    %24 = vector.broadcast %23 : vector<8x1xf32> to vector<8x256xf32>
    %25 = arith.addf %22, %24 : vector<8x256xf32>
    %c0_13 = arith.constant 0 : index
    %c0_14 = arith.constant 0 : index
    %c0_15 = arith.constant 0 : index
    %26 = vector.load %arg6[%c0_13, %c0_14, %c0_15] : memref<1x8x256xf32, #tpu.memory_space<vmem>>, vector<1x8x256xf32>
    %27 = vector.shape_cast %26 : vector<1x8x256xf32> to vector<8x256xf32>
    %28 = vector.shape_cast %25 : vector<8x256xf32> to vector<1x8x256xf32>
    tpu.vector_store %arg6[%c0_13, %c0_14, %c0_15], %28 {strides = array<i32>} : memref<1x8x256xf32, #tpu.memory_space<vmem>>, vector<1x8x256xf32>,
    return
  }
  func.func @transform_0(%arg0: i32, %arg1: i32) -> (i32, i32, i32) {
    %c0_i32 = arith.constant 0 : i32
    %c0_i32_0 = arith.constant 0 : i32
    return %arg0, %c0_i32, %arg1 : i32, i32, i32
  }
  func.func @transform_1(%arg0: i32, %arg1: i32) -> (i32, i32) {
    %c0_i32 = arith.constant 0 : i32
    %c0_i32_0 = arith.constant 0 : i32
    %c0_i32_1 = arith.constant 0 : i32
    return %c0_i32, %c0_i32_0 : i32, i32
  }
  func.func @transform_2(%arg0: i32, %arg1: i32) -> (i32, i32) {
    %c0_i32 = arith.constant 0 : i32
    %c0_i32_0 = arith.constant 0 : i32
    %c0_i32_1 = arith.constant 0 : i32
    return %c0_i32, %c0_i32_0 : i32, i32
  }
  func.func @transform_3(%arg0: i32, %arg1: i32) -> (i32, i32) {
    %c0_i32 = arith.constant 0 : i32
    %c0_i32_0 = arith.constant 0 : i32
    %c0_i32_1 = arith.constant 0 : i32
    return %c0_i32, %c0_i32_0 : i32, i32
  }
  func.func @transform_4(%arg0: i32, %arg1: i32) -> (i32, i32, i32) {
    %c0_i32 = arith.constant 0 : i32
    %c0_i32_0 = arith.constant 0 : i32
    return %arg0, %c0_i32, %arg1 : i32, i32, i32
  }
}

module attributes {stable_mosaic.version = 11 : i64} {
  func.func @_dwconv_gate_kernel(%arg0: i32, %arg1: i32, %arg2: memref<1x1x16x16xf32, #tpu.memory_space<vmem>>, %arg3: memref<1x1x16x16xf32, #tpu.memory_space<vmem>>, %arg4: memref<72xf32, #tpu.memory_space<smem>>, %arg5: memref<8xf32, #tpu.memory_space<smem>>, %arg6: memref<1x1x16x16xf32, #tpu.memory_space<vmem>>, %arg7: memref<1x1x1x1xf32, #tpu.memory_space<vmem>>) attributes {dimension_semantics = [#tpu.dimension_semantics<parallel>, #tpu.dimension_semantics<parallel>], iteration_bounds = array<i64: 2, 4>, scalar_prefetch = 0 : i64, scratch_operands = 0 : i64, tpu.core_type = #tpu.core_type<tc>, window_params = [{transform_indices = @transform_0, window_bounds = array<i64: 1, 1, 16, 16>}, {transform_indices = @transform_1, window_bounds = array<i64: 1, 1, 16, 16>}, {transform_indices = @transform_2, window_bounds = array<i64: 72>}, {transform_indices = @transform_3, window_bounds = array<i64: 8>}, {transform_indices = @transform_4, window_bounds = array<i64: 1, 1, 16, 16>}, {transform_indices = @transform_5, window_bounds = array<i64: 1, 1, 1, 1>}]} {
    %0 = tpu.iota {dimensions = array<i32: 0>} : vector<16x16xi32>
    %1 = tpu.iota {dimensions = array<i32: 1>} : vector<16x16xi32>
    %c-1_i32 = arith.constant -1 : i32
    %2 = vector.broadcast %c-1_i32 : i32 to vector<16x16xi32>
    %3 = arith.addi %1, %2 : vector<16x16xi32>
    %4 = arith.cmpi eq, %0, %3 : vector<16x16xi32>
    %5 = arith.extui %4 : vector<16x16xi1> to vector<16x16xi32>
    %6 = arith.sitofp %5 : vector<16x16xi32> to vector<16x16xf32>
    %c0_i32 = arith.constant 0 : i32
    %7 = vector.broadcast %c0_i32 : i32 to vector<16x16xi32>
    %8 = arith.addi %1, %7 : vector<16x16xi32>
    %9 = arith.cmpi eq, %0, %8 : vector<16x16xi32>
    %10 = arith.extui %9 : vector<16x16xi1> to vector<16x16xi32>
    %11 = arith.sitofp %10 : vector<16x16xi32> to vector<16x16xf32>
    %c1_i32 = arith.constant 1 : i32
    %12 = vector.broadcast %c1_i32 : i32 to vector<16x16xi32>
    %13 = arith.addi %1, %12 : vector<16x16xi32>
    %14 = arith.cmpi eq, %0, %13 : vector<16x16xi32>
    %15 = arith.extui %14 : vector<16x16xi1> to vector<16x16xi32>
    %16 = arith.sitofp %15 : vector<16x16xi32> to vector<16x16xf32>
    %17 = tpu.iota {dimensions = array<i32: 0>} : vector<16x16xi32>
    %18 = tpu.iota {dimensions = array<i32: 1>} : vector<16x16xi32>
    %c-1_i32_0 = arith.constant -1 : i32
    %19 = vector.broadcast %c-1_i32_0 : i32 to vector<16x16xi32>
    %20 = arith.addi %17, %19 : vector<16x16xi32>
    %21 = arith.cmpi eq, %18, %20 : vector<16x16xi32>
    %22 = arith.extui %21 : vector<16x16xi1> to vector<16x16xi32>
    %23 = arith.sitofp %22 : vector<16x16xi32> to vector<16x16xf32>
    %c1_i32_1 = arith.constant 1 : i32
    %24 = vector.broadcast %c1_i32_1 : i32 to vector<16x16xi32>
    %25 = arith.addi %17, %24 : vector<16x16xi32>
    %26 = arith.cmpi eq, %18, %25 : vector<16x16xi32>
    %27 = arith.extui %26 : vector<16x16xi1> to vector<16x16xi32>
    %28 = arith.sitofp %27 : vector<16x16xi32> to vector<16x16xf32>
    %c0 = arith.constant 0 : index
    %c0_2 = arith.constant 0 : index
    %c0_3 = arith.constant 0 : index
    %c0_4 = arith.constant 0 : index
    %29 = vector.load %arg2[%c0, %c0_2, %c0_3, %c0_4] : memref<1x1x16x16xf32, #tpu.memory_space<vmem>>, vector<1x1x16x16xf32>
    %30 = vector.shape_cast %29 : vector<1x1x16x16xf32> to vector<16x16xf32>
    %cst = arith.constant 0.000000e+00 : f32
    %31 = vector.broadcast %cst : f32 to vector<16x16xf32>
    %32 = arith.index_cast %arg1 : i32 to index
    %33 = memref.load %arg5[%32] : memref<8xf32, #tpu.memory_space<smem>>
    %34 = vector.broadcast %33 : f32 to vector<16x16xf32>
    %35 = arith.addf %31, %34 : vector<16x16xf32>
    %c9_i32 = arith.constant 9 : i32
    %36 = arith.muli %arg1, %c9_i32 : i32
    %c0_i32_5 = arith.constant 0 : i32
    %37 = arith.addi %36, %c0_i32_5 : i32
    %c0_i32_6 = arith.constant 0 : i32
    %38 = arith.addi %37, %c0_i32_6 : i32
    %39 = arith.index_cast %38 : i32 to index
    %40 = memref.load %arg4[%39] : memref<72xf32, #tpu.memory_space<smem>>
    %41 = vector.broadcast %40 : f32 to vector<16x16xf32>
    %42 = arith.mulf %41, %6 : vector<16x16xf32>
    %c9_i32_7 = arith.constant 9 : i32
    %43 = arith.muli %arg1, %c9_i32_7 : i32
    %c0_i32_8 = arith.constant 0 : i32
    %44 = arith.addi %43, %c0_i32_8 : i32
    %c1_i32_9 = arith.constant 1 : i32
    %45 = arith.addi %44, %c1_i32_9 : i32
    %46 = arith.index_cast %45 : i32 to index
    %47 = memref.load %arg4[%46] : memref<72xf32, #tpu.memory_space<smem>>
    %48 = vector.broadcast %47 : f32 to vector<16x16xf32>
    %49 = arith.mulf %48, %11 : vector<16x16xf32>
    %50 = arith.addf %42, %49 : vector<16x16xf32>
    %c9_i32_10 = arith.constant 9 : i32
    %51 = arith.muli %arg1, %c9_i32_10 : i32
    %c0_i32_11 = arith.constant 0 : i32
    %52 = arith.addi %51, %c0_i32_11 : i32
    %c2_i32 = arith.constant 2 : i32
    %53 = arith.addi %52, %c2_i32 : i32
    %54 = arith.index_cast %53 : i32 to index
    %55 = memref.load %arg4[%54] : memref<72xf32, #tpu.memory_space<smem>>
    %56 = vector.broadcast %55 : f32 to vector<16x16xf32>
    %57 = arith.mulf %56, %16 : vector<16x16xf32>
    %58 = arith.addf %50, %57 : vector<16x16xf32>
    %cst_12 = arith.constant dense<0.000000e+00> : vector<16x16xf32>
    %59 = tpu.matmul %30, %58, %cst_12 {dimension_numbers = #tpu.dot_dimension_numbers<[1], [0], [0], [1], [0, 0, 1, 1], [], []>} : vector<16x16xf32>, vector<16x16xf32>, vector<16x16xf32> -> vector<16x16xf32>
    %cst_13 = arith.constant dense<0.000000e+00> : vector<16x16xf32>
    %60 = tpu.matmul %23, %59, %cst_13 {dimension_numbers = #tpu.dot_dimension_numbers<[1], [0], [0], [1], [0, 0, 1, 1], [], []>} : vector<16x16xf32>, vector<16x16xf32>, vector<16x16xf32> -> vector<16x16xf32>
    %61 = arith.addf %35, %60 : vector<16x16xf32>
    %c9_i32_14 = arith.constant 9 : i32
    %62 = arith.muli %arg1, %c9_i32_14 : i32
    %c3_i32 = arith.constant 3 : i32
    %63 = arith.addi %62, %c3_i32 : i32
    %c0_i32_15 = arith.constant 0 : i32
    %64 = arith.addi %63, %c0_i32_15 : i32
    %65 = arith.index_cast %64 : i32 to index
    %66 = memref.load %arg4[%65] : memref<72xf32, #tpu.memory_space<smem>>
    %67 = vector.broadcast %66 : f32 to vector<16x16xf32>
    %68 = arith.mulf %67, %6 : vector<16x16xf32>
    %c9_i32_16 = arith.constant 9 : i32
    %69 = arith.muli %arg1, %c9_i32_16 : i32
    %c3_i32_17 = arith.constant 3 : i32
    %70 = arith.addi %69, %c3_i32_17 : i32
    %c1_i32_18 = arith.constant 1 : i32
    %71 = arith.addi %70, %c1_i32_18 : i32
    %72 = arith.index_cast %71 : i32 to index
    %73 = memref.load %arg4[%72] : memref<72xf32, #tpu.memory_space<smem>>
    %74 = vector.broadcast %73 : f32 to vector<16x16xf32>
    %75 = arith.mulf %74, %11 : vector<16x16xf32>
    %76 = arith.addf %68, %75 : vector<16x16xf32>
    %c9_i32_19 = arith.constant 9 : i32
    %77 = arith.muli %arg1, %c9_i32_19 : i32
    %c3_i32_20 = arith.constant 3 : i32
    %78 = arith.addi %77, %c3_i32_20 : i32
    %c2_i32_21 = arith.constant 2 : i32
    %79 = arith.addi %78, %c2_i32_21 : i32
    %80 = arith.index_cast %79 : i32 to index
    %81 = memref.load %arg4[%80] : memref<72xf32, #tpu.memory_space<smem>>
    %82 = vector.broadcast %81 : f32 to vector<16x16xf32>
    %83 = arith.mulf %82, %16 : vector<16x16xf32>
    %84 = arith.addf %76, %83 : vector<16x16xf32>
    %cst_22 = arith.constant dense<0.000000e+00> : vector<16x16xf32>
    %85 = tpu.matmul %30, %84, %cst_22 {dimension_numbers = #tpu.dot_dimension_numbers<[1], [0], [0], [1], [0, 0, 1, 1], [], []>} : vector<16x16xf32>, vector<16x16xf32>, vector<16x16xf32> -> vector<16x16xf32>
    %86 = arith.addf %61, %85 : vector<16x16xf32>
    %c9_i32_23 = arith.constant 9 : i32
    %87 = arith.muli %arg1, %c9_i32_23 : i32
    %c6_i32 = arith.constant 6 : i32
    %88 = arith.addi %87, %c6_i32 : i32
    %c0_i32_24 = arith.constant 0 : i32
    %89 = arith.addi %88, %c0_i32_24 : i32
    %90 = arith.index_cast %89 : i32 to index
    %91 = memref.load %arg4[%90] : memref<72xf32, #tpu.memory_space<smem>>
    %92 = vector.broadcast %91 : f32 to vector<16x16xf32>
    %93 = arith.mulf %92, %6 : vector<16x16xf32>
    %c9_i32_25 = arith.constant 9 : i32
    %94 = arith.muli %arg1, %c9_i32_25 : i32
    %c6_i32_26 = arith.constant 6 : i32
    %95 = arith.addi %94, %c6_i32_26 : i32
    %c1_i32_27 = arith.constant 1 : i32
    %96 = arith.addi %95, %c1_i32_27 : i32
    %97 = arith.index_cast %96 : i32 to index
    %98 = memref.load %arg4[%97] : memref<72xf32, #tpu.memory_space<smem>>
    %99 = vector.broadcast %98 : f32 to vector<16x16xf32>
    %100 = arith.mulf %99, %11 : vector<16x16xf32>
    %101 = arith.addf %93, %100 : vector<16x16xf32>
    %c9_i32_28 = arith.constant 9 : i32
    %102 = arith.muli %arg1, %c9_i32_28 : i32
    %c6_i32_29 = arith.constant 6 : i32
    %103 = arith.addi %102, %c6_i32_29 : i32
    %c2_i32_30 = arith.constant 2 : i32
    %104 = arith.addi %103, %c2_i32_30 : i32
    %105 = arith.index_cast %104 : i32 to index
    %106 = memref.load %arg4[%105] : memref<72xf32, #tpu.memory_space<smem>>
    %107 = vector.broadcast %106 : f32 to vector<16x16xf32>
    %108 = arith.mulf %107, %16 : vector<16x16xf32>
    %109 = arith.addf %101, %108 : vector<16x16xf32>
    %cst_31 = arith.constant dense<0.000000e+00> : vector<16x16xf32>
    %110 = tpu.matmul %30, %109, %cst_31 {dimension_numbers = #tpu.dot_dimension_numbers<[1], [0], [0], [1], [0, 0, 1, 1], [], []>} : vector<16x16xf32>, vector<16x16xf32>, vector<16x16xf32> -> vector<16x16xf32>
    %cst_32 = arith.constant dense<0.000000e+00> : vector<16x16xf32>
    %111 = tpu.matmul %28, %110, %cst_32 {dimension_numbers = #tpu.dot_dimension_numbers<[1], [0], [0], [1], [0, 0, 1, 1], [], []>} : vector<16x16xf32>, vector<16x16xf32>, vector<16x16xf32> -> vector<16x16xf32>
    %112 = arith.addf %86, %111 : vector<16x16xf32>
    %c4_i32 = arith.constant 4 : i32
    %113 = arith.addi %arg1, %c4_i32 : i32
    %c0_33 = arith.constant 0 : index
    %c0_34 = arith.constant 0 : index
    %c0_35 = arith.constant 0 : index
    %c0_36 = arith.constant 0 : index
    %114 = vector.load %arg3[%c0_33, %c0_34, %c0_35, %c0_36] : memref<1x1x16x16xf32, #tpu.memory_space<vmem>>, vector<1x1x16x16xf32>
    %115 = vector.shape_cast %114 : vector<1x1x16x16xf32> to vector<16x16xf32>
    %cst_37 = arith.constant 0.000000e+00 : f32
    %116 = vector.broadcast %cst_37 : f32 to vector<16x16xf32>
    %117 = arith.index_cast %113 : i32 to index
    %118 = memref.load %arg5[%117] : memref<8xf32, #tpu.memory_space<smem>>
    %119 = vector.broadcast %118 : f32 to vector<16x16xf32>
    %120 = arith.addf %116, %119 : vector<16x16xf32>
    %c9_i32_38 = arith.constant 9 : i32
    %121 = arith.muli %113, %c9_i32_38 : i32
    %c0_i32_39 = arith.constant 0 : i32
    %122 = arith.addi %121, %c0_i32_39 : i32
    %c0_i32_40 = arith.constant 0 : i32
    %123 = arith.addi %122, %c0_i32_40 : i32
    %124 = arith.index_cast %123 : i32 to index
    %125 = memref.load %arg4[%124] : memref<72xf32, #tpu.memory_space<smem>>
    %126 = vector.broadcast %125 : f32 to vector<16x16xf32>
    %127 = arith.mulf %126, %6 : vector<16x16xf32>
    %c9_i32_41 = arith.constant 9 : i32
    %128 = arith.muli %113, %c9_i32_41 : i32
    %c0_i32_42 = arith.constant 0 : i32
    %129 = arith.addi %128, %c0_i32_42 : i32
    %c1_i32_43 = arith.constant 1 : i32
    %130 = arith.addi %129, %c1_i32_43 : i32
    %131 = arith.index_cast %130 : i32 to index
    %132 = memref.load %arg4[%131] : memref<72xf32, #tpu.memory_space<smem>>
    %133 = vector.broadcast %132 : f32 to vector<16x16xf32>
    %134 = arith.mulf %133, %11 : vector<16x16xf32>
    %135 = arith.addf %127, %134 : vector<16x16xf32>
    %c9_i32_44 = arith.constant 9 : i32
    %136 = arith.muli %113, %c9_i32_44 : i32
    %c0_i32_45 = arith.constant 0 : i32
    %137 = arith.addi %136, %c0_i32_45 : i32
    %c2_i32_46 = arith.constant 2 : i32
    %138 = arith.addi %137, %c2_i32_46 : i32
    %139 = arith.index_cast %138 : i32 to index
    %140 = memref.load %arg4[%139] : memref<72xf32, #tpu.memory_space<smem>>
    %141 = vector.broadcast %140 : f32 to vector<16x16xf32>
    %142 = arith.mulf %141, %16 : vector<16x16xf32>
    %143 = arith.addf %135, %142 : vector<16x16xf32>
    %cst_47 = arith.constant dense<0.000000e+00> : vector<16x16xf32>
    %144 = tpu.matmul %115, %143, %cst_47 {dimension_numbers = #tpu.dot_dimension_numbers<[1], [0], [0], [1], [0, 0, 1, 1], [], []>} : vector<16x16xf32>, vector<16x16xf32>, vector<16x16xf32> -> vector<16x16xf32>
    %cst_48 = arith.constant dense<0.000000e+00> : vector<16x16xf32>
    %145 = tpu.matmul %23, %144, %cst_48 {dimension_numbers = #tpu.dot_dimension_numbers<[1], [0], [0], [1], [0, 0, 1, 1], [], []>} : vector<16x16xf32>, vector<16x16xf32>, vector<16x16xf32> -> vector<16x16xf32>
    %146 = arith.addf %120, %145 : vector<16x16xf32>
    %c9_i32_49 = arith.constant 9 : i32
    %147 = arith.muli %113, %c9_i32_49 : i32
    %c3_i32_50 = arith.constant 3 : i32
    %148 = arith.addi %147, %c3_i32_50 : i32
    %c0_i32_51 = arith.constant 0 : i32
    %149 = arith.addi %148, %c0_i32_51 : i32
    %150 = arith.index_cast %149 : i32 to index
    %151 = memref.load %arg4[%150] : memref<72xf32, #tpu.memory_space<smem>>
    %152 = vector.broadcast %151 : f32 to vector<16x16xf32>
    %153 = arith.mulf %152, %6 : vector<16x16xf32>
    %c9_i32_52 = arith.constant 9 : i32
    %154 = arith.muli %113, %c9_i32_52 : i32
    %c3_i32_53 = arith.constant 3 : i32
    %155 = arith.addi %154, %c3_i32_53 : i32
    %c1_i32_54 = arith.constant 1 : i32
    %156 = arith.addi %155, %c1_i32_54 : i32
    %157 = arith.index_cast %156 : i32 to index
    %158 = memref.load %arg4[%157] : memref<72xf32, #tpu.memory_space<smem>>
    %159 = vector.broadcast %158 : f32 to vector<16x16xf32>
    %160 = arith.mulf %159, %11 : vector<16x16xf32>
    %161 = arith.addf %153, %160 : vector<16x16xf32>
    %c9_i32_55 = arith.constant 9 : i32
    %162 = arith.muli %113, %c9_i32_55 : i32
    %c3_i32_56 = arith.constant 3 : i32
    %163 = arith.addi %162, %c3_i32_56 : i32
    %c2_i32_57 = arith.constant 2 : i32
    %164 = arith.addi %163, %c2_i32_57 : i32
    %165 = arith.index_cast %164 : i32 to index
    %166 = memref.load %arg4[%165] : memref<72xf32, #tpu.memory_space<smem>>
    %167 = vector.broadcast %166 : f32 to vector<16x16xf32>
    %168 = arith.mulf %167, %16 : vector<16x16xf32>
    %169 = arith.addf %161, %168 : vector<16x16xf32>
    %cst_58 = arith.constant dense<0.000000e+00> : vector<16x16xf32>
    %170 = tpu.matmul %115, %169, %cst_58 {dimension_numbers = #tpu.dot_dimension_numbers<[1], [0], [0], [1], [0, 0, 1, 1], [], []>} : vector<16x16xf32>, vector<16x16xf32>, vector<16x16xf32> -> vector<16x16xf32>
    %171 = arith.addf %146, %170 : vector<16x16xf32>
    %c9_i32_59 = arith.constant 9 : i32
    %172 = arith.muli %113, %c9_i32_59 : i32
    %c6_i32_60 = arith.constant 6 : i32
    %173 = arith.addi %172, %c6_i32_60 : i32
    %c0_i32_61 = arith.constant 0 : i32
    %174 = arith.addi %173, %c0_i32_61 : i32
    %175 = arith.index_cast %174 : i32 to index
    %176 = memref.load %arg4[%175] : memref<72xf32, #tpu.memory_space<smem>>
    %177 = vector.broadcast %176 : f32 to vector<16x16xf32>
    %178 = arith.mulf %177, %6 : vector<16x16xf32>
    %c9_i32_62 = arith.constant 9 : i32
    %179 = arith.muli %113, %c9_i32_62 : i32
    %c6_i32_63 = arith.constant 6 : i32
    %180 = arith.addi %179, %c6_i32_63 : i32
    %c1_i32_64 = arith.constant 1 : i32
    %181 = arith.addi %180, %c1_i32_64 : i32
    %182 = arith.index_cast %181 : i32 to index
    %183 = memref.load %arg4[%182] : memref<72xf32, #tpu.memory_space<smem>>
    %184 = vector.broadcast %183 : f32 to vector<16x16xf32>
    %185 = arith.mulf %184, %11 : vector<16x16xf32>
    %186 = arith.addf %178, %185 : vector<16x16xf32>
    %c9_i32_65 = arith.constant 9 : i32
    %187 = arith.muli %113, %c9_i32_65 : i32
    %c6_i32_66 = arith.constant 6 : i32
    %188 = arith.addi %187, %c6_i32_66 : i32
    %c2_i32_67 = arith.constant 2 : i32
    %189 = arith.addi %188, %c2_i32_67 : i32
    %190 = arith.index_cast %189 : i32 to index
    %191 = memref.load %arg4[%190] : memref<72xf32, #tpu.memory_space<smem>>
    %192 = vector.broadcast %191 : f32 to vector<16x16xf32>
    %193 = arith.mulf %192, %16 : vector<16x16xf32>
    %194 = arith.addf %186, %193 : vector<16x16xf32>
    %cst_68 = arith.constant dense<0.000000e+00> : vector<16x16xf32>
    %195 = tpu.matmul %115, %194, %cst_68 {dimension_numbers = #tpu.dot_dimension_numbers<[1], [0], [0], [1], [0, 0, 1, 1], [], []>} : vector<16x16xf32>, vector<16x16xf32>, vector<16x16xf32> -> vector<16x16xf32>
    %cst_69 = arith.constant dense<0.000000e+00> : vector<16x16xf32>
    %196 = tpu.matmul %28, %195, %cst_69 {dimension_numbers = #tpu.dot_dimension_numbers<[1], [0], [0], [1], [0, 0, 1, 1], [], []>} : vector<16x16xf32>, vector<16x16xf32>, vector<16x16xf32> -> vector<16x16xf32>
    %197 = arith.addf %171, %196 : vector<16x16xf32>
    %198 = arith.mulf %112, %197 : vector<16x16xf32>
    %c0_70 = arith.constant 0 : index
    %c0_71 = arith.constant 0 : index
    %c0_72 = arith.constant 0 : index
    %c0_73 = arith.constant 0 : index
    %199 = vector.load %arg6[%c0_70, %c0_71, %c0_72, %c0_73] : memref<1x1x16x16xf32, #tpu.memory_space<vmem>>, vector<1x1x16x16xf32>
    %200 = vector.shape_cast %199 : vector<1x1x16x16xf32> to vector<16x16xf32>
    %201 = vector.shape_cast %198 : vector<16x16xf32> to vector<1x1x16x16xf32>
    tpu.vector_store %arg6[%c0_70, %c0_71, %c0_72, %c0_73], %201 {strides = array<i32>} : memref<1x1x16x16xf32, #tpu.memory_space<vmem>>, vector<1x1x16x16xf32>,
    %cst_74 = arith.constant dense<0.000000e+00> : vector<16xf32>
    %202 = vector.multi_reduction <add>, %198, %cst_74 [1] : vector<16x16xf32> to vector<16xf32>
    %203 = vector.shape_cast %202 : vector<16xf32> to vector<16x1xf32>
    %cst_75 = arith.constant dense<0.000000e+00> : vector<1xf32>
    %204 = vector.multi_reduction <add>, %203, %cst_75 [0] : vector<16x1xf32> to vector<1xf32>
    %205 = vector.shape_cast %204 : vector<1xf32> to vector<1x1xf32>
    %cst_76 = arith.constant 3.906250e-03 : f32
    %206 = vector.broadcast %cst_76 : f32 to vector<1x1xf32>
    %207 = arith.mulf %205, %206 : vector<1x1xf32>
    %c0_77 = arith.constant 0 : index
    %c0_78 = arith.constant 0 : index
    %c0_79 = arith.constant 0 : index
    %c0_80 = arith.constant 0 : index
    %208 = vector.load %arg7[%c0_77, %c0_78, %c0_79, %c0_80] : memref<1x1x1x1xf32, #tpu.memory_space<vmem>>, vector<1x1x1x1xf32>
    %209 = vector.shape_cast %208 : vector<1x1x1x1xf32> to vector<1x1xf32>
    %210 = vector.shape_cast %207 : vector<1x1xf32> to vector<1x1x1x1xf32>
    tpu.vector_store %arg7[%c0_77, %c0_78, %c0_79, %c0_80], %210 {strides = array<i32>} : memref<1x1x1x1xf32, #tpu.memory_space<vmem>>, vector<1x1x1x1xf32>,
    return
  }
  func.func @transform_0(%arg0: i32, %arg1: i32) -> (i32, i32, i32, i32) {
    %c0_i32 = arith.constant 0 : i32
    %c0_i32_0 = arith.constant 0 : i32
    %c0_i32_1 = arith.constant 0 : i32
    return %arg0, %arg1, %c0_i32, %c0_i32_0 : i32, i32, i32, i32
  }
  func.func @transform_1(%arg0: i32, %arg1: i32) -> (i32, i32, i32, i32) {
    %c4_i32 = arith.constant 4 : i32
    %0 = arith.addi %arg1, %c4_i32 : i32
    %c0_i32 = arith.constant 0 : i32
    %c0_i32_0 = arith.constant 0 : i32
    %c0_i32_1 = arith.constant 0 : i32
    return %arg0, %0, %c0_i32, %c0_i32_0 : i32, i32, i32, i32
  }
  func.func @transform_2(%arg0: i32, %arg1: i32) -> i32 {
    %c0_i32 = arith.constant 0 : i32
    %c0_i32_0 = arith.constant 0 : i32
    return %c0_i32 : i32
  }
  func.func @transform_3(%arg0: i32, %arg1: i32) -> i32 {
    %c0_i32 = arith.constant 0 : i32
    %c0_i32_0 = arith.constant 0 : i32
    return %c0_i32 : i32
  }
  func.func @transform_4(%arg0: i32, %arg1: i32) -> (i32, i32, i32, i32) {
    %c0_i32 = arith.constant 0 : i32
    %c0_i32_0 = arith.constant 0 : i32
    %c0_i32_1 = arith.constant 0 : i32
    return %arg0, %arg1, %c0_i32, %c0_i32_0 : i32, i32, i32, i32
  }
  func.func @transform_5(%arg0: i32, %arg1: i32) -> (i32, i32, i32, i32) {
    %c0_i32 = arith.constant 0 : i32
    %c0_i32_0 = arith.constant 0 : i32
    %c0_i32_1 = arith.constant 0 : i32
    return %arg0, %arg1, %c0_i32, %c0_i32_0 : i32, i32, i32, i32
  }
}

module attributes {stable_mosaic.version = 11 : i64} {
  func.func @_sca_ffn_kernel(%arg0: i32, %arg1: i32, %arg2: memref<1x4x256xf32, #tpu.memory_space<vmem>>, %arg3: memref<1x4x256xf32, #tpu.memory_space<vmem>>, %arg4: memref<1x1x4xf32, #tpu.memory_space<vmem>>, %arg5: memref<4x4xf32, #tpu.memory_space<vmem>>, %arg6: memref<4x1xf32, #tpu.memory_space<vmem>>, %arg7: memref<4x4xf32, #tpu.memory_space<vmem>>, %arg8: memref<4x1xf32, #tpu.memory_space<vmem>>, %arg9: memref<4x1xf32, #tpu.memory_space<vmem>>, %arg10: memref<4x1xf32, #tpu.memory_space<vmem>>, %arg11: memref<4x4xf32, #tpu.memory_space<vmem>>, %arg12: memref<4x1xf32, #tpu.memory_space<vmem>>, %arg13: memref<4x4xf32, #tpu.memory_space<vmem>>, %arg14: memref<4x1xf32, #tpu.memory_space<vmem>>, %arg15: memref<4x4xf32, #tpu.memory_space<vmem>>, %arg16: memref<4x1xf32, #tpu.memory_space<vmem>>, %arg17: memref<4x1xf32, #tpu.memory_space<vmem>>, %arg18: memref<1x4x256xf32, #tpu.memory_space<vmem>>) attributes {dimension_semantics = [#tpu.dimension_semantics<parallel>, #tpu.dimension_semantics<parallel>], iteration_bounds = array<i64: 2, 1>, scalar_prefetch = 0 : i64, scratch_operands = 0 : i64, tpu.core_type = #tpu.core_type<tc>, window_params = [{transform_indices = @transform_0, window_bounds = array<i64: 1, 4, 256>}, {transform_indices = @transform_1, window_bounds = array<i64: 1, 4, 256>}, {transform_indices = @transform_2, window_bounds = array<i64: 1, 1, 4>}, {pipeline_mode = #tpu.pipeline_mode<synchronous>, transform_indices = @transform_3, window_bounds = array<i64: 4, 4>}, {pipeline_mode = #tpu.pipeline_mode<synchronous>, transform_indices = @transform_4, window_bounds = array<i64: 4, 1>}, {pipeline_mode = #tpu.pipeline_mode<synchronous>, transform_indices = @transform_5, window_bounds = array<i64: 4, 4>}, {pipeline_mode = #tpu.pipeline_mode<synchronous>, transform_indices = @transform_6, window_bounds = array<i64: 4, 1>}, {pipeline_mode = #tpu.pipeline_mode<synchronous>, transform_indices = @transform_7, window_bounds = array<i64: 4, 1>}, {pipeline_mode = #tpu.pipeline_mode<synchronous>, transform_indices = @transform_8, window_bounds = array<i64: 4, 1>}, {pipeline_mode = #tpu.pipeline_mode<synchronous>, transform_indices = @transform_9, window_bounds = array<i64: 4, 4>}, {pipeline_mode = #tpu.pipeline_mode<synchronous>, transform_indices = @transform_10, window_bounds = array<i64: 4, 1>}, {pipeline_mode = #tpu.pipeline_mode<synchronous>, transform_indices = @transform_11, window_bounds = array<i64: 4, 4>}, {pipeline_mode = #tpu.pipeline_mode<synchronous>, transform_indices = @transform_12, window_bounds = array<i64: 4, 1>}, {pipeline_mode = #tpu.pipeline_mode<synchronous>, transform_indices = @transform_13, window_bounds = array<i64: 4, 4>}, {pipeline_mode = #tpu.pipeline_mode<synchronous>, transform_indices = @transform_14, window_bounds = array<i64: 4, 1>}, {pipeline_mode = #tpu.pipeline_mode<synchronous>, transform_indices = @transform_15, window_bounds = array<i64: 4, 1>}, {transform_indices = @transform_16, window_bounds = array<i64: 1, 4, 256>}]} {
    %c0 = arith.constant 0 : index
    %c0_0 = arith.constant 0 : index
    %c0_1 = arith.constant 0 : index
    %0 = vector.load %arg3[%c0, %c0_0, %c0_1] : memref<1x4x256xf32, #tpu.memory_space<vmem>>, vector<1x4x256xf32>
    %1 = vector.shape_cast %0 : vector<1x4x256xf32> to vector<4x256xf32>
    %c0_2 = arith.constant 0 : index
    %c0_3 = arith.constant 0 : index
    %c0_4 = arith.constant 0 : index
    %2 = vector.load %arg4[%c0_2, %c0_3, %c0_4] : memref<1x1x4xf32, #tpu.memory_space<vmem>>, vector<1x1x4xf32>
    %3 = vector.shape_cast %2 : vector<1x1x4xf32> to vector<1x4xf32>
    %c0_5 = arith.constant 0 : index
    %c0_6 = arith.constant 0 : index
    %4 = vector.load %arg5[%c0_5, %c0_6] : memref<4x4xf32, #tpu.memory_space<vmem>>, vector<4x4xf32>
    %5 = vector.broadcast %3 : vector<1x4xf32> to vector<4x4xf32>
    %6 = arith.mulf %4, %5 : vector<4x4xf32>
    %cst = arith.constant dense<0.000000e+00> : vector<4xf32>
    %7 = vector.multi_reduction <add>, %6, %cst [1] : vector<4x4xf32> to vector<4xf32>
    %8 = vector.shape_cast %7 : vector<4xf32> to vector<4x1xf32>
    %c0_7 = arith.constant 0 : index
    %c0_8 = arith.constant 0 : index
    %9 = vector.load %arg6[%c0_7, %c0_8] : memref<4x1xf32, #tpu.memory_space<vmem>>, vector<4x1xf32>
    %10 = arith.addf %8, %9 : vector<4x1xf32>
    %11 = vector.broadcast %10 : vector<4x1xf32> to vector<4x256xf32>
    %12 = arith.mulf %1, %11 : vector<4x256xf32>
    %c0_9 = arith.constant 0 : index
    %c0_10 = arith.constant 0 : index
    %13 = vector.load %arg7[%c0_9, %c0_10] : memref<4x4xf32, #tpu.memory_space<vmem>>, vector<4x4xf32>
    %cst_11 = arith.constant dense<0.000000e+00> : vector<4x256xf32>
    %14 = tpu.matmul %13, %12, %cst_11 {dimension_numbers = #tpu.dot_dimension_numbers<[1], [0], [0], [1], [0, 0, 1, 1], [], []>} : vector<4x4xf32>, vector<4x256xf32>, vector<4x256xf32> -> vector<4x256xf32>
    %c0_12 = arith.constant 0 : index
    %c0_13 = arith.constant 0 : index
    %15 = vector.load %arg8[%c0_12, %c0_13] : memref<4x1xf32, #tpu.memory_space<vmem>>, vector<4x1xf32>
    %16 = vector.broadcast %15 : vector<4x1xf32> to vector<4x256xf32>
    %17 = arith.addf %14, %16 : vector<4x256xf32>
    %c0_14 = arith.constant 0 : index
    %c0_15 = arith.constant 0 : index
    %c0_16 = arith.constant 0 : index
    %18 = vector.load %arg2[%c0_14, %c0_15, %c0_16] : memref<1x4x256xf32, #tpu.memory_space<vmem>>, vector<1x4x256xf32>
    %19 = vector.shape_cast %18 : vector<1x4x256xf32> to vector<4x256xf32>
    %c0_17 = arith.constant 0 : index
    %c0_18 = arith.constant 0 : index
    %20 = vector.load %arg9[%c0_17, %c0_18] : memref<4x1xf32, #tpu.memory_space<vmem>>, vector<4x1xf32>
    %21 = vector.broadcast %20 : vector<4x1xf32> to vector<4x256xf32>
    %22 = arith.mulf %17, %21 : vector<4x256xf32>
    %23 = arith.addf %19, %22 : vector<4x256xf32>
    %cst_19 = arith.constant dense<0.000000e+00> : vector<256xf32>
    %24 = vector.multi_reduction <add>, %23, %cst_19 [0] : vector<4x256xf32> to vector<256xf32>
    %25 = vector.shape_cast %24 : vector<256xf32> to vector<1x256xf32>
    %cst_20 = arith.constant 4.000000e+00 : f32
    %26 = vector.broadcast %cst_20 : f32 to vector<1x256xf32>
    %27 = arith.divf %25, %26 : vector<1x256xf32>
    %28 = vector.broadcast %27 : vector<1x256xf32> to vector<4x256xf32>
    %29 = arith.subf %23, %28 : vector<4x256xf32>
    %30 = arith.mulf %29, %29 : vector<4x256xf32>
    %cst_21 = arith.constant dense<0.000000e+00> : vector<256xf32>
    %31 = vector.multi_reduction <add>, %30, %cst_21 [0] : vector<4x256xf32> to vector<256xf32>
    %32 = vector.shape_cast %31 : vector<256xf32> to vector<1x256xf32>
    %cst_22 = arith.constant 4.000000e+00 : f32
    %33 = vector.broadcast %cst_22 : f32 to vector<1x256xf32>
    %34 = arith.divf %32, %33 : vector<1x256xf32>
    %cst_23 = arith.constant 9.99999974E-6 : f32
    %35 = vector.broadcast %cst_23 : f32 to vector<1x256xf32>
    %36 = arith.addf %34, %35 : vector<1x256xf32>
    %37 = math.rsqrt %36 : vector<1x256xf32>
    %38 = vector.broadcast %37 : vector<1x256xf32> to vector<4x256xf32>
    %39 = arith.mulf %29, %38 : vector<4x256xf32>
    %c0_24 = arith.constant 0 : index
    %c0_25 = arith.constant 0 : index
    %40 = vector.load %arg10[%c0_24, %c0_25] : memref<4x1xf32, #tpu.memory_space<vmem>>, vector<4x1xf32>
    %41 = vector.broadcast %40 : vector<4x1xf32> to vector<4x256xf32>
    %42 = arith.mulf %39, %41 : vector<4x256xf32>
    %c0_26 = arith.constant 0 : index
    %c0_27 = arith.constant 0 : index
    %43 = vector.load %arg11[%c0_26, %c0_27] : memref<4x4xf32, #tpu.memory_space<vmem>>, vector<4x4xf32>
    %cst_28 = arith.constant dense<0.000000e+00> : vector<4x256xf32>
    %44 = tpu.matmul %43, %42, %cst_28 {dimension_numbers = #tpu.dot_dimension_numbers<[1], [0], [0], [1], [0, 0, 1, 1], [], []>} : vector<4x4xf32>, vector<4x256xf32>, vector<4x256xf32> -> vector<4x256xf32>
    %c0_29 = arith.constant 0 : index
    %c0_30 = arith.constant 0 : index
    %45 = vector.load %arg12[%c0_29, %c0_30] : memref<4x1xf32, #tpu.memory_space<vmem>>, vector<4x1xf32>
    %46 = vector.broadcast %45 : vector<4x1xf32> to vector<4x256xf32>
    %47 = arith.addf %44, %46 : vector<4x256xf32>
    %c0_31 = arith.constant 0 : index
    %c0_32 = arith.constant 0 : index
    %48 = vector.load %arg13[%c0_31, %c0_32] : memref<4x4xf32, #tpu.memory_space<vmem>>, vector<4x4xf32>
    %cst_33 = arith.constant dense<0.000000e+00> : vector<4x256xf32>
    %49 = tpu.matmul %48, %42, %cst_33 {dimension_numbers = #tpu.dot_dimension_numbers<[1], [0], [0], [1], [0, 0, 1, 1], [], []>} : vector<4x4xf32>, vector<4x256xf32>, vector<4x256xf32> -> vector<4x256xf32>
    %c0_34 = arith.constant 0 : index
    %c0_35 = arith.constant 0 : index
    %50 = vector.load %arg14[%c0_34, %c0_35] : memref<4x1xf32, #tpu.memory_space<vmem>>, vector<4x1xf32>
    %51 = vector.broadcast %50 : vector<4x1xf32> to vector<4x256xf32>
    %52 = arith.addf %49, %51 : vector<4x256xf32>
    %53 = arith.mulf %47, %52 : vector<4x256xf32>
    %c0_36 = arith.constant 0 : index
    %c0_37 = arith.constant 0 : index
    %54 = vector.load %arg15[%c0_36, %c0_37] : memref<4x4xf32, #tpu.memory_space<vmem>>, vector<4x4xf32>
    %cst_38 = arith.constant dense<0.000000e+00> : vector<4x256xf32>
    %55 = tpu.matmul %54, %53, %cst_38 {dimension_numbers = #tpu.dot_dimension_numbers<[1], [0], [0], [1], [0, 0, 1, 1], [], []>} : vector<4x4xf32>, vector<4x256xf32>, vector<4x256xf32> -> vector<4x256xf32>
    %c0_39 = arith.constant 0 : index
    %c0_40 = arith.constant 0 : index
    %56 = vector.load %arg16[%c0_39, %c0_40] : memref<4x1xf32, #tpu.memory_space<vmem>>, vector<4x1xf32>
    %57 = vector.broadcast %56 : vector<4x1xf32> to vector<4x256xf32>
    %58 = arith.addf %55, %57 : vector<4x256xf32>
    %c0_41 = arith.constant 0 : index
    %c0_42 = arith.constant 0 : index
    %59 = vector.load %arg17[%c0_41, %c0_42] : memref<4x1xf32, #tpu.memory_space<vmem>>, vector<4x1xf32>
    %60 = vector.broadcast %59 : vector<4x1xf32> to vector<4x256xf32>
    %61 = arith.mulf %58, %60 : vector<4x256xf32>
    %62 = arith.addf %23, %61 : vector<4x256xf32>
    %c0_43 = arith.constant 0 : index
    %c0_44 = arith.constant 0 : index
    %c0_45 = arith.constant 0 : index
    %63 = vector.load %arg18[%c0_43, %c0_44, %c0_45] : memref<1x4x256xf32, #tpu.memory_space<vmem>>, vector<1x4x256xf32>
    %64 = vector.shape_cast %63 : vector<1x4x256xf32> to vector<4x256xf32>
    %65 = vector.shape_cast %62 : vector<4x256xf32> to vector<1x4x256xf32>
    tpu.vector_store %arg18[%c0_43, %c0_44, %c0_45], %65 {strides = array<i32>} : memref<1x4x256xf32, #tpu.memory_space<vmem>>, vector<1x4x256xf32>,
    return
  }
  func.func @transform_0(%arg0: i32, %arg1: i32) -> (i32, i32, i32) {
    %c0_i32 = arith.constant 0 : i32
    %c0_i32_0 = arith.constant 0 : i32
    return %arg0, %c0_i32, %arg1 : i32, i32, i32
  }
  func.func @transform_1(%arg0: i32, %arg1: i32) -> (i32, i32, i32) {
    %c0_i32 = arith.constant 0 : i32
    %c0_i32_0 = arith.constant 0 : i32
    return %arg0, %c0_i32, %arg1 : i32, i32, i32
  }
  func.func @transform_2(%arg0: i32, %arg1: i32) -> (i32, i32, i32) {
    %c0_i32 = arith.constant 0 : i32
    %c0_i32_0 = arith.constant 0 : i32
    %c0_i32_1 = arith.constant 0 : i32
    return %arg0, %c0_i32, %c0_i32_0 : i32, i32, i32
  }
  func.func @transform_3(%arg0: i32, %arg1: i32) -> (i32, i32) {
    %c0_i32 = arith.constant 0 : i32
    %c0_i32_0 = arith.constant 0 : i32
    %c0_i32_1 = arith.constant 0 : i32
    return %c0_i32, %c0_i32_0 : i32, i32
  }
  func.func @transform_4(%arg0: i32, %arg1: i32) -> (i32, i32) {
    %c0_i32 = arith.constant 0 : i32
    %c0_i32_0 = arith.constant 0 : i32
    %c0_i32_1 = arith.constant 0 : i32
    return %c0_i32, %c0_i32_0 : i32, i32
  }
  func.func @transform_5(%arg0: i32, %arg1: i32) -> (i32, i32) {
    %c0_i32 = arith.constant 0 : i32
    %c0_i32_0 = arith.constant 0 : i32
    %c0_i32_1 = arith.constant 0 : i32
    return %c0_i32, %c0_i32_0 : i32, i32
  }
  func.func @transform_6(%arg0: i32, %arg1: i32) -> (i32, i32) {
    %c0_i32 = arith.constant 0 : i32
    %c0_i32_0 = arith.constant 0 : i32
    %c0_i32_1 = arith.constant 0 : i32
    return %c0_i32, %c0_i32_0 : i32, i32
  }
  func.func @transform_7(%arg0: i32, %arg1: i32) -> (i32, i32) {
    %c0_i32 = arith.constant 0 : i32
    %c0_i32_0 = arith.constant 0 : i32
    %c0_i32_1 = arith.constant 0 : i32
    return %c0_i32, %c0_i32_0 : i32, i32
  }
  func.func @transform_8(%arg0: i32, %arg1: i32) -> (i32, i32) {
    %c0_i32 = arith.constant 0 : i32
    %c0_i32_0 = arith.constant 0 : i32
    %c0_i32_1 = arith.constant 0 : i32
    return %c0_i32, %c0_i32_0 : i32, i32
  }
  func.func @transform_9(%arg0: i32, %arg1: i32) -> (i32, i32) {
    %c0_i32 = arith.constant 0 : i32
    %c0_i32_0 = arith.constant 0 : i32
    %c0_i32_1 = arith.constant 0 : i32
    return %c0_i32, %c0_i32_0 : i32, i32
  }
  func.func @transform_10(%arg0: i32, %arg1: i32) -> (i32, i32) {
    %c0_i32 = arith.constant 0 : i32
    %c0_i32_0 = arith.constant 0 : i32
    %c0_i32_1 = arith.constant 0 : i32
    return %c0_i32, %c0_i32_0 : i32, i32
  }
  func.func @transform_11(%arg0: i32, %arg1: i32) -> (i32, i32) {
    %c0_i32 = arith.constant 0 : i32
    %c0_i32_0 = arith.constant 0 : i32
    %c0_i32_1 = arith.constant 0 : i32
    return %c0_i32, %c0_i32_0 : i32, i32
  }
  func.func @transform_12(%arg0: i32, %arg1: i32) -> (i32, i32) {
    %c0_i32 = arith.constant 0 : i32
    %c0_i32_0 = arith.constant 0 : i32
    %c0_i32_1 = arith.constant 0 : i32
    return %c0_i32, %c0_i32_0 : i32, i32
  }
  func.func @transform_13(%arg0: i32, %arg1: i32) -> (i32, i32) {
    %c0_i32 = arith.constant 0 : i32
    %c0_i32_0 = arith.constant 0 : i32
    %c0_i32_1 = arith.constant 0 : i32
    return %c0_i32, %c0_i32_0 : i32, i32
  }
  func.func @transform_14(%arg0: i32, %arg1: i32) -> (i32, i32) {
    %c0_i32 = arith.constant 0 : i32
    %c0_i32_0 = arith.constant 0 : i32
    %c0_i32_1 = arith.constant 0 : i32
    return %c0_i32, %c0_i32_0 : i32, i32
  }
  func.func @transform_15(%arg0: i32, %arg1: i32) -> (i32, i32) {
    %c0_i32 = arith.constant 0 : i32
    %c0_i32_0 = arith.constant 0 : i32
    %c0_i32_1 = arith.constant 0 : i32
    return %c0_i32, %c0_i32_0 : i32, i32
  }
  func.func @transform_16(%arg0: i32, %arg1: i32) -> (i32, i32, i32) {
    %c0_i32 = arith.constant 0 : i32
    %c0_i32_0 = arith.constant 0 : i32
    return %arg0, %c0_i32, %arg1 : i32, i32, i32
  }
}

</mosaic_0001>

<llo_original>
// kernel: nafblock_forward.3
$region0: #{nafblock_forward.3}
  #allocation0 [shape = 'u32[]', space=smem, size = 0x4, offset = 0x4, fixed_abs, tag = 'smem constant byte address 0x4 - core index']
  #allocation1 [shape = 'u32[144,128]{1,0:T(1,128)}', space=vmem, size = 0x12000, scoped, tag = 'internal scratch']
  %s0 = inlined_call_operand.vmem [shape: f32[2,4,256], index: 0, kind: input, shape index: {}]
  %s1 = inlined_call_operand.vmem [shape: f32[4,1], index: 1, kind: input, shape index: {}]
  %s2 = inlined_call_operand.vmem [shape: f32[8,4], index: 2, kind: input, shape index: {}]
  %s3 = inlined_call_operand.vmem [shape: f32[8,1], index: 3, kind: input, shape index: {}]
  %s4 = inlined_call_operand.vmem [shape: f32[2,8,256], index: 4, kind: output, shape index: {}]
  %s5 = sld [smem:[#allocation0]]
  $region49: #{nafblock_forward.3} parent=0
    _
  %s7 = ssub.s32 1, %s5
  %s8 = scalar_select 0, %s7, %s5
  loop: start=0, step=1, limit=4
  $region2: #{nafblock_forward.3} parent=0 // loop_pre_header
    _
  $region3: #{nafblock_forward.3} parent=0 // loop_header
    %s10 = sphi 0, %s14
    %p11 = scmp.ge.s32.totalorder %s10, 4
    %s17 = sphi 0, %s29
    %s18 = sphi 0, %s25
    %s19 = sphi 0, %s17
    %s20 = sphi 0, %s18
    %s21 = sphi 0, %s19
    %s22 = sphi 0, %s20
    %s34 = sphi 0, %s36
    %s37 = sphi 0, %s34
    %s38 = sphi 0, %s37
    %s54 = sphi 0, %s38
    %s58 = sphi 0, %s58
    %s60 = sphi 0, %s58
    %s61 = sphi 0, %s60
    %s75 = sphi 0, %s61
    %s79 = sphi 0, %s79
    %s81 = sphi 0, %s79
    %s82 = sphi 0, %s81
    %s96 = sphi 0, %s82
    %s100 = sphi 0, %s100
    %s102 = sphi 0, %s100
    %s103 = sphi 0, %s102
    %s117 = sphi 0, %s103
    %s125 = sphi 0, %s127
    %s128 = sphi 0, %s125
    %s129 = sphi 0, %s128
    %s145 = sphi 0, %s129
  $region4: #{nafblock_forward.3} parent=0 // loop_header_branch
    %13 = sbr.rel (%p11) target = $region8
  $region5: #{nafblock_forward.3} parent=0 // loop_body
    %s15 = ssub.s32 %s10, 1
    %s16 = ssub.s32 %s10, 2
    %s23 = sadd.s32 1, %s18
    %p24 = scmp.ge.s32.totalorder %s23, 1
    %s25 = scalar_select %p24, 0, %s23
    %s26 = sadd.s32 1, %s17
    %s27 = scalar_select %p24, %s26, %s17
    %p28 = scmp.ge.s32.totalorder %s27, 2
    %s29 = scalar_select %p28, 0, %s27
    %s30 = ssub.s32 %s17, %s29
    %s31 = ssub.s32 %s18, %s25
    %s32 = sor.u32 %s30, %s31
    %p33 = scmp.eq.s32.totalorder %s32, 0
    %s35 = sadd.s32 %s34, 1
    %s36 = scalar_select %p33, %s34, %s35
    %p39 = pneg %p33
    %p40 = scmp.eq.s32.totalorder %s10, 1
    %p41 = por %p39, %p40
    %p42 = scmp.ne.s32.totalorder %s34, %s37
    %p43 = scmp.eq.s32.totalorder %s10, 0
    %p44 = por %p42, %p43
    %p45 = scmp.ne.s32.totalorder %s34, %s37
    %p46 = scmp.eq.s32.totalorder %s15, 1
    %p47 = por %p45, %p46
    %p48 = scmp.ne.s32.totalorder %s37, %s38
    %p49 = scmp.eq.s32.totalorder %s15, 0
    %p50 = por %p48, %p49
    %p51 = scmp.ne.s32.totalorder %s37, %s38
    %p52 = scmp.eq.s32.totalorder %s16, 1
    %p53 = por %p51, %p52
    %p55 = scmp.ne.s32.totalorder %s38, %s54
    %p56 = scmp.eq.s32.totalorder %s16, 0
    %p57 = por %p55, %p56
    %s59 = sadd.s32 %s58, 1
    %p62 = scmp.eq.s32.totalorder %s10, 1
    %p63 = scmp.ne.s32.totalorder %s58, %s60
    %p64 = scmp.eq.s32.totalorder %s10, 0
    %p65 = por %p63, %p64
    %p66 = scmp.ne.s32.totalorder %s58, %s60
    %p67 = scmp.eq.s32.totalorder %s15, 1
    %p68 = por %p66, %p67
    %p69 = scmp.ne.s32.totalorder %s60, %s61
    %p70 = scmp.eq.s32.totalorder %s15, 0
    %p71 = por %p69, %p70
    %p72 = scmp.ne.s32.totalorder %s60, %s61
    %p73 = scmp.eq.s32.totalorder %s16, 1
    %p74 = por %p72, %p73
    %p76 = scmp.ne.s32.totalorder %s61, %s75
    %p77 = scmp.eq.s32.totalorder %s16, 0
    %p78 = por %p76, %p77
    %s80 = sadd.s32 %s79, 1
    %p83 = scmp.eq.s32.totalorder %s10, 1
    %p84 = scmp.ne.s32.totalorder %s79, %s81
    %p85 = scmp.eq.s32.totalorder %s10, 0
    %p86 = por %p84, %p85
    %p87 = scmp.ne.s32.totalorder %s79, %s81
    %p88 = scmp.eq.s32.totalorder %s15, 1
    %p89 = por %p87, %p88
    %p90 = scmp.ne.s32.totalorder %s81, %s82
    %p91 = scmp.eq.s32.totalorder %s15, 0
    %p92 = por %p90, %p91
    %p93 = scmp.ne.s32.totalorder %s81, %s82
    %p94 = scmp.eq.s32.totalorder %s16, 1
    %p95 = por %p93, %p94
    %p97 = scmp.ne.s32.totalorder %s82, %s96
    %p98 = scmp.eq.s32.totalorder %s16, 0
    %p99 = por %p97, %p98
    %s101 = sadd.s32 %s100, 1
    %p104 = scmp.eq.s32.totalorder %s10, 1
    %p105 = scmp.ne.s32.totalorder %s100, %s102
    %p106 = scmp.eq.s32.totalorder %s10, 0
    %p107 = por %p105, %p106
    %p108 = scmp.ne.s32.totalorder %s100, %s102
    %p109 = scmp.eq.s32.totalorder %s15, 1
    %p110 = por %p108, %p109
    %p111 = scmp.ne.s32.totalorder %s102, %s103
    %p112 = scmp.eq.s32.totalorder %s15, 0
    %p113 = por %p111, %p112
    %p114 = scmp.ne.s32.totalorder %s102, %s103
    %p115 = scmp.eq.s32.totalorder %s16, 1
    %p116 = por %p114, %p115
    %p118 = scmp.ne.s32.totalorder %s103, %s117
    %p119 = scmp.eq.s32.totalorder %s16, 0
    %p120 = por %p118, %p119
    %s121 = ssub.s32 %s17, %s29
    %s122 = ssub.s32 %s18, %s25
    %s123 = sor.u32 %s121, %s122
    %p124 = scmp.eq.s32.totalorder %s123, 0
    %s126 = sadd.s32 %s125, 1
    %s127 = scalar_select %p124, %s125, %s126
    %p130 = pneg %p124
    %p131 = scmp.eq.s32.totalorder %s10, 1
    %p132 = por %p130, %p131
    %p133 = scmp.ne.s32.totalorder %s125, %s128
    %p134 = scmp.eq.s32.totalorder %s10, 0
    %p135 = por %p133, %p134
    %p136 = scmp.ne.s32.totalorder %s125, %s128
    %p137 = scmp.eq.s32.totalorder %s15, 1
    %p138 = por %p136, %p137
    %p139 = scmp.ne.s32.totalorder %s128, %s129
    %p140 = scmp.eq.s32.totalorder %s15, 0
    %p141 = por %p139, %p140
    %p142 = scmp.ne.s32.totalorder %s128, %s129
    %p143 = scmp.eq.s32.totalorder %s16, 1
    %p144 = por %p142, %p143
    %p146 = scmp.ne.s32.totalorder %s129, %s145
    %p147 = scmp.eq.s32.totalorder %s16, 0
    %p148 = por %p146, %p147
    %p149 = scmp.le.s32.totalorder 1, %s10
    %p150 = scmp.lt.s32.totalorder %s10, 3
    %p151 = pnand %p149, %p150
    %p152 = pneg %p151
    // Predicated region
    $region9: #{nafblock_forward.3} parent=5 // pred_check
      _
    $region10: #{nafblock_forward.3} parent=5 // pred_check_branch
      %154 = sbr.rel (%p151) target = $region12
    $region11: #{nafblock_forward.3} parent=5 // pred_region
      %s155 = ssub.s32 %s10, 1
      // Predicated region
      $region13: #{nafblock_forward.3} parent=11 // pred_check
        %p156 = pneg %p71
      $region14: #{nafblock_forward.3} parent=11 // pred_check_branch
        %158 = sbr.rel (%p156) target = $region16
      $region15: #{nafblock_forward.3} parent=11 // pred_region
        _
      $region16: #{nafblock_forward.3} parent=11 // pred_fallthru
        _
      // Predicated region
      $region17: #{nafblock_forward.3} parent=11 // pred_check
        %p159 = pneg %p92
      $region18: #{nafblock_forward.3} parent=11 // pred_check_branch
        %161 = sbr.rel (%p159) target = $region20
      $region19: #{nafblock_forward.3} parent=11 // pred_region
        _
      $region20: #{nafblock_forward.3} parent=11 // pred_fallthru
        _
      // Predicated region
      $region21: #{nafblock_forward.3} parent=11 // pred_check
        %p162 = pneg %p113
      $region22: #{nafblock_forward.3} parent=11 // pred_check_branch
        %164 = sbr.rel (%p162) target = $region24
      $region23: #{nafblock_forward.3} parent=11 // pred_region
        _
      $region24: #{nafblock_forward.3} parent=11 // pred_fallthru
        _
    $region12: #{nafblock_forward.3} parent=5 // pred_fallthru
      _
    %p165 = scmp.lt.s32.totalorder %s10, 2
    // Predicated region
    $region25: #{nafblock_forward.3} parent=5 // pred_check
      %p166 = pneg %p165
    $region26: #{nafblock_forward.3} parent=5 // pred_check_branch
      %168 = sbr.rel (%p166) target = $region28
    $region27: #{nafblock_forward.3} parent=5 // pred_region
      // Predicated region
      $region29: #{nafblock_forward.3} parent=27 // pred_check
        %p169 = pneg %p44
      $region30: #{nafblock_forward.3} parent=27 // pred_check_branch
        %171 = sbr.rel (%p169) target = $region32
      $region31: #{nafblock_forward.3} parent=27 // pred_region
        %s172 = smul.u32 2, %s18
        %p173 = scmp.lt.s32.totalorder %s17, 1
        %s174 = scalar_select %p173, %s17, 1
        %p175 = scmp.lt.s32.totalorder %s172, 1
        %s176 = scalar_select %p175, %s172, 1
        %s177 = smul.addr %s174, 2
        %s178 = sadd.s32 %s176, %s177
        %s179 = smul.addr %s178, 4
        %s180 = scalar_lea.vmem %s0, %s179
        %s181 = smul.u32 2, %s18
      $region32: #{nafblock_forward.3} parent=27 // pred_fallthru
        _
    $region28: #{nafblock_forward.3} parent=5 // pred_fallthru
      _
    %p182 = scmp.le.s32.totalorder 1, %s10
    %p183 = scmp.lt.s32.totalorder %s10, 3
    %p184 = pnand %p182, %p183
    %p185 = pneg %p184
    // Predicated region
    $region33: #{nafblock_forward.3} parent=5 // pred_check
      _
    $region34: #{nafblock_forward.3} parent=5 // pred_check_branch
      %187 = sbr.rel (%p184) target = $region36
    $region35: #{nafblock_forward.3} parent=5 // pred_region
      %s188 = ssub.s32 %s10, 1
      %s189 = smul.u32 2, %s20
      %p190 = scmp.lt.s32.totalorder %s19, 1
      %s191 = scalar_select %p190, %s19, 1
      %p192 = scmp.lt.s32.totalorder %s189, 1
      %s193 = scalar_select %p192, %s189, 1
      %s194 = smul.addr %s191, 2
      %s195 = sadd.s32 %s193, %s194
      %s196 = smul.addr %s195, 4
      %s197 = scalar_lea.vmem %s0, %s196
      %p198 = pneg %p50
      %p199 = pneg %p47
      %p200 = pneg %p71
      %p201 = pneg %p68
      %p202 = pneg %p92
      %p203 = pneg %p89
      %p204 = pneg %p113
      %p205 = pneg %p110
      %p206 = pneg %p141
      %p207 = pneg %p138
      %s208 = smul.u32 2, %s20
      %p209 = scmp.lt.s32.totalorder %s19, 1
      %s210 = scalar_select %p209, %s19, 1
      %p211 = scmp.lt.s32.totalorder %s208, 1
      %s212 = scalar_select %p211, %s208, 1
      %s213 = smul.addr %s210, 2
      %s214 = sadd.s32 %s212, %s213
      %s215 = smul.addr %s214, 8
      %s216 = scalar_lea.vmem %s4, %s215
      %s217 = smul.u32 2, %s20
      %p218 = scmp.lt.s32.totalorder %s19, 1
      %s219 = scalar_select %p218, %s19, 1
      %p220 = scmp.lt.s32.totalorder %s217, 1
      %s221 = scalar_select %p220, %s217, 1
      %s222 = smul.addr %s219, 2
      %s223 = sadd.s32 %s221, %s222
      %s224 = smul.addr %s223, 4
      %s225 = scalar_lea.vmem %s0, %s224
      %s226 = smul.u32 2, %s20
      %s227 = smul.u32 2, %s20
      %p228 = scmp.lt.s32.totalorder %s19, 1
      %s229 = scalar_select %p228, %s19, 1
      %p230 = scmp.lt.s32.totalorder %s227, 1
      %s231 = scalar_select %p230, %s227, 1
      %s232 = smul.addr %s229, 2
      %s233 = sadd.s32 %s231, %s232
      %s234 = smul.addr %s233, 8
      %s235 = scalar_lea.vmem %s4, %s234
      %s236 = smul.u32 2, %s20
      %v237 = vld [vmem:[%s225] sm:$0xff]
      %v239 = vcombine.high %v237, %v237
      %vm241 = vcmask 1043456
      %v242 = vsel %vm241, %v237, 0.0
      %v243 = vrot.slane %v242, 4
      %v244 = vadd.f32 %v242, %v243
      %v245 = vrot.slane %v244, 2
      %v246 = vadd.f32 %v244, %v245
      %v247 = vrot.slane %v246, 1
      %v248 = vadd.f32 %v246, %v247
      %v249 = vsel %vm241, %v239, 0.0
      %v250 = vrot.slane %v249, 4
      %v251 = vadd.f32 %v249, %v250
      %v252 = vrot.slane %v251, 2
      %v253 = vadd.f32 %v251, %v252
      %v254 = vrot.slane %v253, 1
      %v255 = vadd.f32 %v253, %v254
      %v256 = vrcp.pop 4.0
      %v257 = vmul.f32 %v248, %v256
      %v258 = vmul.f32 %v255, %v256
      %v261 = vcombine.low %v257, %v258
      %v263 = vsub.f32 %v237, %v261
      %v264 = vmul.f32 %v263, %v263
      %v266 = vcombine.high %v264, %v264
      %v268 = vsel %vm241, %v264, 0.0
      %v269 = vrot.slane %v268, 4
      %v270 = vadd.f32 %v268, %v269
      %v271 = vrot.slane %v270, 2
      %v272 = vadd.f32 %v270, %v271
      %v273 = vrot.slane %v272, 1
      %v274 = vadd.f32 %v272, %v273
      %v275 = vsel %vm241, %v266, 0.0
      %v276 = vrot.slane %v275, 4
      %v277 = vadd.f32 %v275, %v276
      %v278 = vrot.slane %v277, 2
      %v279 = vadd.f32 %v277, %v278
      %v280 = vrot.slane %v279, 1
      %v281 = vadd.f32 %v279, %v280
      %v282 = vmul.f32 %v274, %v256
      %v283 = vmul.f32 %v281, %v256
      %v284 = vadd.f32 %v282, 1e-05
      %v285 = vadd.f32 %v283, 1e-05
      %v286 = vrsqrt.pop %v284
      %v287 = vrsqrt.pop %v285
      %v290 = vcombine.low %v286, %v287
      %v292 = vmul.f32 %v263, %v290
      %v293 = vld [vmem:[%s1] sm:$0xf]
      %295 = vset.pattern.permute.xlu0 0
      %296 = vperm.xlu0 %295, %v293
      %v297 = vpop.permute.xlu0 %296
      %v299 = vunpack.c.l.s4 839922192
      %v300 = vunpack.c.0.s8 %v299
      %v301 = vlaneseq
      %v302 = vshrl.u32 %v301, 7
      %v303 = vsub.s32 %v300, %v302
      %v304 = vrot.slane %v297, %v303
      %v306 = vmul.f32 %v292, %v304
      %v307 = vld [vmem:[%s2] sm:$0xff]
      %v308 = vld [vmem:[%s3] sm:$0xff]
      %310 = vset.pattern.permute.xlu0 0
      %311 = vperm.xlu0 %310, %v308
      %v312 = vpop.permute.xlu0 %311
      %v315 = vcombine.high %v306, %v306
      %vm316 = vcmask 31744
      %v318 = vsel %vm316, %v307, 0
      %v320 = vsel %vm241, %v306, 0
      %v322 = vsel %vm241, %v315, 0
      %324 = vmatprep.subr.mxu0 %v322
      %325 = vmatpush1.msra.mxu0 %v320
      %326 = vmatprep.subr.mxu0 0.0
      %327 = vmatpush1.msra.mxu0 0.0
      %328 = vmatprep.subr.mxu0 0.0
      %329 = vmatpush1.msra.mxu0 0.0
      %330 = vmatprep.subr.mxu0 0.0
      %331 = vmatpush1.msra.mxu0 0.0
      %332 = vmatprep.subr.mxu0 0.0
      %333 = vmatpush1.msra.mxu0 0.0
      %334 = vmatprep.subr.mxu0 0.0
      %335 = vmatpush1.msra.mxu0 0.0
      %336 = vmatprep.subr.mxu0 0.0
      %337 = vmatpush1.msra.mxu0 0.0
      %338 = vmatprep.subr.mxu0 0.0
      %339 = vmatpush1.msra.mxu0 0.0
      %340 = vmatprep.subr.mxu0 0.0
      %341 = vmatpush1.msra.mxu0 0.0
      %342 = vmatprep.subr.mxu0 0.0
      %343 = vmatpush1.msra.mxu0 0.0
      %344 = vmatprep.subr.mxu0 0.0
      %345 = vmatpush1.msra.mxu0 0.0
      %346 = vmatprep.subr.mxu0 0.0
      %347 = vmatpush1.msra.mxu0 0.0
      %348 = vmatprep.subr.mxu0 0.0
      %349 = vmatpush1.msra.mxu0 0.0
      %350 = vmatprep.subr.mxu0 0.0
      %351 = vmatpush1.msra.mxu0 0.0
      %352 = vmatprep.subr.mxu0 0.0
      %353 = vmatpush1.msra.mxu0 0.0
      %354 = vmatprep.subr.mxu0 0.0
      %355 = vmatpush1.msra.mxu0 0.0
      %356 = vmatprep.subr.mxu0 0.0
      %357 = vmatpush1.msra.mxu0 0.0
      %358 = vmatprep.subr.mxu0 0.0
      %359 = vmatpush1.msra.mxu0 0.0
      %360 = vmatprep.subr.mxu0 0.0
      %361 = vmatpush1.msra.mxu0 0.0
      %362 = vmatprep.subr.mxu0 0.0
      %363 = vmatpush1.msra.mxu0 0.0
      %364 = vmatprep.subr.mxu0 0.0
      %365 = vmatpush1.msra.mxu0 0.0
      %366 = vmatprep.subr.mxu0 0.0
      %367 = vmatpush1.msra.mxu0 0.0
      %368 = vmatprep.subr.mxu0 0.0
      %369 = vmatpush1.msra.mxu0 0.0
      %370 = vmatprep.subr.mxu0 0.0
      %371 = vmatpush1.msra.mxu0 0.0
      %372 = vmatprep.subr.mxu0 0.0
      %373 = vmatpush1.msra.mxu0 0.0
      %374 = vmatprep.subr.mxu0 0.0
      %375 = vmatpush1.msra.mxu0 0.0
      %376 = vmatprep.subr.mxu0 0.0
      %377 = vmatpush1.msra.mxu0 0.0
      %378 = vmatprep.subr.mxu0 0.0
      %379 = vmatpush1.msra.mxu0 0.0
      %380 = vmatprep.subr.mxu0 0.0
      %381 = vmatpush1.msra.mxu0 0.0
      %382 = vmatprep.subr.mxu0 0.0
      %383 = vmatpush1.msra.mxu0 0.0
      %384 = vmatprep.subr.mxu0 0.0
      %385 = vmatpush1.msra.mxu0 0.0
      %386 = vmatprep.subr.mxu0 0.0
      %387 = vmatpush1.msra.mxu0 0.0
      %388 = vmatprep.mubr.f32.mxu0 0.0
      %389 = vmatmul.mubr.f32.gmra.mrb[0].mxu0 %v318
      %v390 = vpop.f32.mrb[0].mxu0
      %v391 = vadd.f32 %v312, %v390
      %v392 = vpop.f32.mrb[0].mxu0
      %v393 = vadd.f32 %v312, %v392
      %394 = vdwg.mxu0
      %395 = vst [vmem:[%s235] sm:$0xff] %v391
      %396 = vst [vmem:[%s235 + $0x8] sm:$0xff] %v393
      %s397 = smul.u32 2, %s20
      %p398 = scmp.lt.s32.totalorder %s19, 1
      %s399 = scalar_select %p398, %s19, 1
      %p400 = scmp.lt.s32.totalorder %s397, 1
      %s401 = scalar_select %p400, %s397, 1
      %s402 = smul.addr %s399, 2
      %s403 = sadd.s32 %s401, %s402
      %s404 = smul.addr %s403, 8
      %s405 = scalar_lea.vmem %s4, %s404
      // Predicated region
      $region37: #{nafblock_forward.3} parent=35 // pred_check
        %p406 = pneg %p138
      $region38: #{nafblock_forward.3} parent=35 // pred_check_branch
        %408 = sbr.rel (%p406) target = $region40
      $region39: #{nafblock_forward.3} parent=35 // pred_region
        %s409 = smul.u32 2, %s20
      $region40: #{nafblock_forward.3} parent=35 // pred_fallthru
        _
    $region36: #{nafblock_forward.3} parent=5 // pred_fallthru
      _
    %p410 = scmp.le.s32.totalorder 2, %s10
    // Predicated region
    $region41: #{nafblock_forward.3} parent=5 // pred_check
      %p411 = pneg %p410
    $region42: #{nafblock_forward.3} parent=5 // pred_check_branch
      %413 = sbr.rel (%p411) target = $region44
    $region43: #{nafblock_forward.3} parent=5 // pred_region
      %s414 = ssub.s32 %s10, 2
      // Predicated region
      $region45: #{nafblock_forward.3} parent=43 // pred_check
        %p415 = pneg %p144
      $region46: #{nafblock_forward.3} parent=43 // pred_check_branch
        %417 = sbr.rel (%p415) target = $region48
      $region47: #{nafblock_forward.3} parent=43 // pred_region
        %s418 = smul.u32 2, %s22
        %p419 = scmp.lt.s32.totalorder %s21, 1
        %s420 = scalar_select %p419, %s21, 1
        %p421 = scmp.lt.s32.totalorder %s418, 1
        %s422 = scalar_select %p421, %s418, 1
        %s423 = smul.addr %s420, 2
        %s424 = sadd.s32 %s422, %s423
        %s425 = smul.addr %s424, 8
        %s426 = scalar_lea.vmem %s4, %s425
      $region48: #{nafblock_forward.3} parent=43 // pred_fallthru
        _
    $region44: #{nafblock_forward.3} parent=5 // pred_fallthru
      _
  $region6: #{nafblock_forward.3} parent=0 // loop_footer
    %s14 = sadd.s32 1, %s10
  $region7: #{nafblock_forward.3} parent=0 // loop_footer_branch
    %9 = sbr.rel target = $region3
  $region8: #{nafblock_forward.3} parent=0 // loop_exit
    _

// kernel: nafblock_forward.4
$region0: #{nafblock_forward.4}
  #allocation0 [shape = 'u32[]', space=smem, size = 0x4, offset = 0x4, fixed_abs, tag = 'smem constant byte address 0x4 - core index']
  #allocation1 [shape = 'u32[144,128]{1,0:T(1,128)}', space=vmem, size = 0x12000, scoped, tag = 'internal scratch']
  %s0 = inlined_call_operand.vmem [shape: f32[2,8,16,16], index: 0, kind: input, shape index: {}, may-alias: {0,1}]
  %s1 = inlined_call_operand.vmem [shape: f32[2,8,16,16], index: 1, kind: input, shape index: {}, may-alias: {0,1}]
  %s2 = inlined_call_operand.vmem [shape: f32[72], index: 2, kind: input, shape index: {}]
  %s3 = inlined_call_operand.vmem [shape: f32[8], index: 3, kind: input, shape index: {}]
  %s4 = inlined_call_operand.vmem [shape: f32[2,4,16,16], index: 4, kind: output, shape index: {0}]
  %s5 = inlined_call_operand.vmem [shape: f32[2,4,1,1], index: 5, kind: output, shape index: {1}]
  %6 = xla_tuple %s4, %s5
  %s7 = sld [smem:[#allocation0]]
  $region65: #{nafblock_forward.4} parent=0
    _
  %s9 = ssub.s32 1, %s7
  %s10 = scalar_select 0, %s9, %s7
  $region1: #{nafblock_forward.4} parent=0
    #allocation2 [shape = 'u8[512]{0}', space=smem, size = 0x200, scoped, tag = 'input window, operand 2, single buffered']
    #allocation3 [shape = 's32[2]{0}', space=sflag, size = 0x8, scoped, tag = 'scoped memory for nafblock_forward.4']
    #allocation4 [shape = 'u8[512]{0}', space=smem, size = 0x200, scoped, tag = 'input window, operand 3, single buffered']
    #allocation5 [shape = 's32[1]{0}', space=sflag, size = 0x4, scoped, tag = 'scoped memory for nafblock_forward.4']
    %11 = vsyncpa [#allocation3], 0
    %12 = vsyncpa [#allocation5], 0
    loop: start=0, step=1, limit=10
    $region2: #{nafblock_forward.4} parent=1 // loop_pre_header
      _
    $region3: #{nafblock_forward.4} parent=1 // loop_header
      %s14 = sphi 0, %s18
      %p15 = scmp.ge.s32.totalorder %s14, 10
      %s21 = sphi 0, %s33
      %s22 = sphi 0, %s29
      %s23 = sphi 0, %s21
      %s24 = sphi 0, %s22
      %s25 = sphi 0, %s23
      %s26 = sphi 0, %s24
      %s38 = sphi 0, %s40
      %s41 = sphi 0, %s38
      %s42 = sphi 0, %s41
      %s58 = sphi 0, %s42
      %s68 = sphi 0, %s70
      %s71 = sphi 0, %s68
      %s72 = sphi 0, %s71
      %s88 = sphi 0, %s72
      %s92 = sphi 0, %s92
      %s94 = sphi 0, %s92
      %s95 = sphi 0, %s94
      %s109 = sphi 0, %s95
      %s113 = sphi 0, %s113
      %s115 = sphi 0, %s113
      %s116 = sphi 0, %s115
      %s130 = sphi 0, %s116
      %s138 = sphi 0, %s140
      %s141 = sphi 0, %s138
      %s142 = sphi 0, %s141
      %s158 = sphi 0, %s142
      %s166 = sphi 0, %s168
      %s169 = sphi 0, %s166
      %s170 = sphi 0, %s169
      %s186 = sphi 0, %s170
    $region4: #{nafblock_forward.4} parent=1 // loop_header_branch
      %17 = sbr.rel (%p15) target = $region8
    $region5: #{nafblock_forward.4} parent=1 // loop_body
      %s19 = ssub.s32 %s14, 1
      %s20 = ssub.s32 %s14, 2
      %s27 = sadd.s32 1, %s22
      %p28 = scmp.ge.s32.totalorder %s27, 4
      %s29 = scalar_select %p28, 0, %s27
      %s30 = sadd.s32 1, %s21
      %s31 = scalar_select %p28, %s30, %s21
      %p32 = scmp.ge.s32.totalorder %s31, 2
      %s33 = scalar_select %p32, 0, %s31
      %s34 = ssub.s32 %s21, %s33
      %s35 = ssub.s32 %s22, %s29
      %s36 = sor.u32 %s34, %s35
      %p37 = scmp.eq.s32.totalorder %s36, 0
      %s39 = sadd.s32 %s38, 1
      %s40 = scalar_select %p37, %s38, %s39
      %p43 = pneg %p37
      %p44 = scmp.eq.s32.totalorder %s14, 7
      %p45 = por %p43, %p44
      %p46 = scmp.ne.s32.totalorder %s38, %s41
      %p47 = scmp.eq.s32.totalorder %s14, 0
      %p48 = por %p46, %p47
      %p49 = scmp.ne.s32.totalorder %s38, %s41
      %p50 = scmp.eq.s32.totalorder %s19, 7
      %p51 = por %p49, %p50
      %p52 = scmp.ne.s32.totalorder %s41, %s42
      %p53 = scmp.eq.s32.totalorder %s19, 0
      %p54 = por %p52, %p53
      %p55 = scmp.ne.s32.totalorder %s41, %s42
      %p56 = scmp.eq.s32.totalorder %s20, 7
      %p57 = por %p55, %p56
      %p59 = scmp.ne.s32.totalorder %s42, %s58
      %p60 = scmp.eq.s32.totalorder %s20, 0
      %p61 = por %p59, %p60
      %s62 = sadd.s32 %s22, 4
      %s63 = sadd.s32 %s29, 4
      %s64 = ssub.s32 %s21, %s33
      %s65 = ssub.s32 %s62, %s63
      %s66 = sor.u32 %s64, %s65
      %p67 = scmp.eq.s32.totalorder %s66, 0
      %s69 = sadd.s32 %s68, 1
      %s70 = scalar_select %p67, %s68, %s69
      %p73 = pneg %p67
      %p74 = scmp.eq.s32.totalorder %s14, 7
      %p75 = por %p73, %p74
      %p76 = scmp.ne.s32.totalorder %s68, %s71
      %p77 = scmp.eq.s32.totalorder %s14, 0
      %p78 = por %p76, %p77
      %p79 = scmp.ne.s32.totalorder %s68, %s71
      %p80 = scmp.eq.s32.totalorder %s19, 7
      %p81 = por %p79, %p80
      %p82 = scmp.ne.s32.totalorder %s71, %s72
      %p83 = scmp.eq.s32.totalorder %s19, 0
      %p84 = por %p82, %p83
      %p85 = scmp.ne.s32.totalorder %s71, %s72
      %p86 = scmp.eq.s32.totalorder %s20, 7
      %p87 = por %p85, %p86
      %p89 = scmp.ne.s32.totalorder %s72, %s88
      %p90 = scmp.eq.s32.totalorder %s20, 0
      %p91 = por %p89, %p90
      %s93 = sadd.s32 %s92, 1
      %p96 = scmp.eq.s32.totalorder %s14, 7
      %p97 = scmp.ne.s32.totalorder %s92, %s94
      %p98 = scmp.eq.s32.totalorder %s14, 0
      %p99 = por %p97, %p98
      %p100 = scmp.ne.s32.totalorder %s92, %s94
      %p101 = scmp.eq.s32.totalorder %s19, 7
      %p102 = por %p100, %p101
      %p103 = scmp.ne.s32.totalorder %s94, %s95
      %p104 = scmp.eq.s32.totalorder %s19, 0
      %p105 = por %p103, %p104
      %p106 = scmp.ne.s32.totalorder %s94, %s95
      %p107 = scmp.eq.s32.totalorder %s20, 7
      %p108 = por %p106, %p107
      %p110 = scmp.ne.s32.totalorder %s95, %s109
      %p111 = scmp.eq.s32.totalorder %s20, 0
      %p112 = por %p110, %p111
      %s114 = sadd.s32 %s113, 1
      %p117 = scmp.eq.s32.totalorder %s14, 7
      %p118 = scmp.ne.s32.totalorder %s113, %s115
      %p119 = scmp.eq.s32.totalorder %s14, 0
      %p120 = por %p118, %p119
      %p121 = scmp.ne.s32.totalorder %s113, %s115
      %p122 = scmp.eq.s32.totalorder %s19, 7
      %p123 = por %p121, %p122
      %p124 = scmp.ne.s32.totalorder %s115, %s116
      %p125 = scmp.eq.s32.totalorder %s19, 0
      %p126 = por %p124, %p125
      %p127 = scmp.ne.s32.totalorder %s115, %s116
      %p128 = scmp.eq.s32.totalorder %s20, 7
      %p129 = por %p127, %p128
      %p131 = scmp.ne.s32.totalorder %s116, %s130
      %p132 = scmp.eq.s32.totalorder %s20, 0
      %p133 = por %p131, %p132
      %s134 = ssub.s32 %s21, %s33
      %s135 = ssub.s32 %s22, %s29
      %s136 = sor.u32 %s134, %s135
      %p137 = scmp.eq.s32.totalorder %s136, 0
      %s139 = sadd.s32 %s138, 1
      %s140 = scalar_select %p137, %s138, %s139
      %p143 = pneg %p137
      %p144 = scmp.eq.s32.totalorder %s14, 7
      %p145 = por %p143, %p144
      %p146 = scmp.ne.s32.totalorder %s138, %s141
      %p147 = scmp.eq.s32.totalorder %s14, 0
      %p148 = por %p146, %p147
      %p149 = scmp.ne.s32.totalorder %s138, %s141
      %p150 = scmp.eq.s32.totalorder %s19, 7
      %p151 = por %p149, %p150
      %p152 = scmp.ne.s32.totalorder %s141, %s142
      %p153 = scmp.eq.s32.totalorder %s19, 0
      %p154 = por %p152, %p153
      %p155 = scmp.ne.s32.totalorder %s141, %s142
      %p156 = scmp.eq.s32.totalorder %s20, 7
      %p157 = por %p155, %p156
      %p159 = scmp.ne.s32.totalorder %s142, %s158
      %p160 = scmp.eq.s32.totalorder %s20, 0
      %p161 = por %p159, %p160
      %s162 = ssub.s32 %s21, %s33
      %s163 = ssub.s32 %s22, %s29
      %s164 = sor.u32 %s162, %s163
      %p165 = scmp.eq.s32.totalorder %s164, 0
      %s167 = sadd.s32 %s166, 1
      %s168 = scalar_select %p165, %s166, %s167
      %p171 = pneg %p165
      %p172 = scmp.eq.s32.totalorder %s14, 7
      %p173 = por %p171, %p172
      %p174 = scmp.ne.s32.totalorder %s166, %s169
      %p175 = scmp.eq.s32.totalorder %s14, 0
      %p176 = por %p174, %p175
      %p177 = scmp.ne.s32.totalorder %s166, %s169
      %p178 = scmp.eq.s32.totalorder %s19, 7
      %p179 = por %p177, %p178
      %p180 = scmp.ne.s32.totalorder %s169, %s170
      %p181 = scmp.eq.s32.totalorder %s19, 0
      %p182 = por %p180, %p181
      %p183 = scmp.ne.s32.totalorder %s169, %s170
      %p184 = scmp.eq.s32.totalorder %s20, 7
      %p185 = por %p183, %p184
      %p187 = scmp.ne.s32.totalorder %s170, %s186
      %p188 = scmp.eq.s32.totalorder %s20, 0
      %p189 = por %p187, %p188
      %p190 = scmp.le.s32.totalorder 1, %s14
      %p191 = scmp.lt.s32.totalorder %s14, 9
      %p192 = pnand %p190, %p191
      %p193 = pneg %p192
      // Predicated region
      $region9: #{nafblock_forward.4} parent=5 // pred_check
        _
      $region10: #{nafblock_forward.4} parent=5 // pred_check_branch
        %195 = sbr.rel (%p192) target = $region12
      $region11: #{nafblock_forward.4} parent=5 // pred_region
        %s196 = ssub.s32 %s14, 1
        // Predicated region
        $region13: #{nafblock_forward.4} parent=11 // pred_check
          %p197 = pneg %p105
        $region14: #{nafblock_forward.4} parent=11 // pred_check_branch
          %199 = sbr.rel (%p197) target = $region16
        $region15: #{nafblock_forward.4} parent=11 // pred_region
          %s201 = ssub.s32 16, 16
          %202 = vsyncadd [#allocation3], %s201
          %s204 = sshll.u32 %s2, 4
          %s205 = int_to_ptr.vmem [resolvable:$true] %s204
          %207 = dma.vmem_to_smem %s205, 16, [#allocation2], [#allocation3]
        $region16: #{nafblock_forward.4} parent=11 // pred_fallthru
          _
        // Predicated region
        $region17: #{nafblock_forward.4} parent=11 // pred_check
          %p208 = pneg %p126
        $region18: #{nafblock_forward.4} parent=11 // pred_check_branch
          %210 = sbr.rel (%p208) target = $region20
        $region19: #{nafblock_forward.4} parent=11 // pred_region
          %s212 = ssub.s32 16, 16
          %213 = vsyncadd [#allocation5], %s212
          %s215 = sshll.u32 %s3, 4
          %s216 = int_to_ptr.vmem [resolvable:$true] %s215
          %218 = dma.vmem_to_smem %s216, 16, [#allocation4], [#allocation5]
        $region20: #{nafblock_forward.4} parent=11 // pred_fallthru
          _
      $region12: #{nafblock_forward.4} parent=5 // pred_fallthru
        _
      %p219 = scmp.lt.s32.totalorder %s14, 8
      // Predicated region
      $region21: #{nafblock_forward.4} parent=5 // pred_check
        %p220 = pneg %p219
      $region22: #{nafblock_forward.4} parent=5 // pred_check_branch
        %222 = sbr.rel (%p220) target = $region24
      $region23: #{nafblock_forward.4} parent=5 // pred_region
        // Predicated region
        $region25: #{nafblock_forward.4} parent=23 // pred_check
          %p223 = pneg %p48
        $region26: #{nafblock_forward.4} parent=23 // pred_check_branch
          %225 = sbr.rel (%p223) target = $region28
        $region27: #{nafblock_forward.4} parent=23 // pred_region
          %p226 = scmp.lt.s32.totalorder %s21, 1
          %s227 = scalar_select %p226, %s21, 1
          %p228 = scmp.lt.s32.totalorder %s22, 7
          %s229 = scalar_select %p228, %s22, 7
          %s230 = smul.addr %s229, 2
          %s231 = smul.addr %s227, 16
          %s232 = sadd.s32 %s230, %s231
          %s233 = smul.addr %s232, 8
          %s234 = scalar_lea.vmem %s0, %s233
        $region28: #{nafblock_forward.4} parent=23 // pred_fallthru
          _
        // Predicated region
        $region29: #{nafblock_forward.4} parent=23 // pred_check
          %p235 = pneg %p78
        $region30: #{nafblock_forward.4} parent=23 // pred_check_branch
          %237 = sbr.rel (%p235) target = $region32
        $region31: #{nafblock_forward.4} parent=23 // pred_region
          %s238 = sadd.s32 %s22, 4
          %p239 = scmp.lt.s32.totalorder %s21, 1
          %s240 = scalar_select %p239, %s21, 1
          %p241 = scmp.lt.s32.totalorder %s238, 7
          %s242 = scalar_select %p241, %s238, 7
          %s243 = smul.addr %s242, 2
          %s244 = smul.addr %s240, 16
          %s245 = sadd.s32 %s243, %s244
          %s246 = smul.addr %s245, 8
          %s247 = scalar_lea.vmem %s1, %s246
          %s248 = sadd.s32 %s22, 4
        $region32: #{nafblock_forward.4} parent=23 // pred_fallthru
          _
      $region24: #{nafblock_forward.4} parent=5 // pred_fallthru
        _
      %p249 = scmp.le.s32.totalorder 1, %s14
      %p250 = scmp.lt.s32.totalorder %s14, 9
      %p251 = pnand %p249, %p250
      %p252 = pneg %p251
      // Predicated region
      $region33: #{nafblock_forward.4} parent=5 // pred_check
        _
      $region34: #{nafblock_forward.4} parent=5 // pred_check_branch
        %254 = sbr.rel (%p251) target = $region36
      $region35: #{nafblock_forward.4} parent=5 // pred_region
        %s255 = ssub.s32 %s14, 1
        // Predicated region
        $region37: #{nafblock_forward.4} parent=35 // pred_check
          %p256 = pneg %p105
        $region38: #{nafblock_forward.4} parent=35 // pred_check_branch
          %258 = sbr.rel (%p256) target = $region40
        $region39: #{nafblock_forward.4} parent=35 // pred_region
          %259 = dma.done [#allocation3], 16
        $region40: #{nafblock_forward.4} parent=35 // pred_fallthru
          _
        // Predicated region
        $region41: #{nafblock_forward.4} parent=35 // pred_check
          %p260 = pneg %p126
        $region42: #{nafblock_forward.4} parent=35 // pred_check_branch
          %262 = sbr.rel (%p260) target = $region44
        $region43: #{nafblock_forward.4} parent=35 // pred_region
          %263 = dma.done [#allocation5], 16
        $region44: #{nafblock_forward.4} parent=35 // pred_fallthru
          _
        %264 = sfence
        %p265 = scmp.lt.s32.totalorder %s23, 1
        %s266 = scalar_select %p265, %s23, 1
        %p267 = scmp.lt.s32.totalorder %s24, 7
        %s268 = scalar_select %p267, %s24, 7
        %s269 = smul.addr %s268, 2
        %s270 = smul.addr %s266, 16
        %s271 = sadd.s32 %s269, %s270
        %s272 = smul.addr %s271, 8
        %s273 = scalar_lea.vmem %s0, %s272
        %p274 = pneg %p54
        %p275 = pneg %p51
        %s276 = sadd.s32 %s24, 4
        %p277 = scmp.lt.s32.totalorder %s23, 1
        %s278 = scalar_select %p277, %s23, 1
        %p279 = scmp.lt.s32.totalorder %s276, 7
        %s280 = scalar_select %p279, %s276, 7
        %s281 = smul.addr %s280, 2
        %s282 = smul.addr %s278, 16
        %s283 = sadd.s32 %s281, %s282
        %s284 = smul.addr %s283, 8
        %s285 = scalar_lea.vmem %s1, %s284
        %p286 = pneg %p84
        %p287 = pneg %p81
        %p288 = pneg %p105
        %p289 = pneg %p102
        %p290 = pneg %p126
        %p291 = pneg %p123
        %p292 = pneg %p154
        %p293 = pneg %p151
        %p294 = scmp.lt.s32.totalorder %s23, 1
        %s295 = scalar_select %p294, %s23, 1
        %p296 = scmp.lt.s32.totalorder %s24, 3
        %s297 = scalar_select %p296, %s24, 3
        %s298 = smul.addr %s297, 2
        %s299 = smul.addr %s295, 8
        %s300 = sadd.s32 %s298, %s299
        %s301 = smul.addr %s300, 8
        %s302 = scalar_lea.vmem %s4, %s301
        %p303 = pneg %p182
        %p304 = pneg %p179
        %p305 = scmp.lt.s32.totalorder %s23, 1
        %s306 = scalar_select %p305, %s23, 1
        %p307 = scmp.lt.s32.totalorder %s24, 3
        %s308 = scalar_select %p307, %s24, 3
        %s309 = smul.addr %s306, 4
        %s310 = sadd.s32 %s308, %s309
        %s311 = scalar_lea.vmem %s5, %s310
        %p312 = scmp.lt.s32.totalorder %s23, 1
        %s313 = scalar_select %p312, %s23, 1
        %p314 = scmp.lt.s32.totalorder %s24, 7
        %s315 = scalar_select %p314, %s24, 7
        %s316 = smul.addr %s315, 2
        %s317 = smul.addr %s313, 16
        %s318 = sadd.s32 %s316, %s317
        %s319 = smul.addr %s318, 8
        %s320 = scalar_lea.vmem %s0, %s319
        %s321 = sadd.s32 %s24, 4
        %p322 = scmp.lt.s32.totalorder %s23, 1
        %s323 = scalar_select %p322, %s23, 1
        %p324 = scmp.lt.s32.totalorder %s321, 7
        %s325 = scalar_select %p324, %s321, 7
        %s326 = smul.addr %s325, 2
        %s327 = smul.addr %s323, 16
        %s328 = sadd.s32 %s326, %s327
        %s329 = smul.addr %s328, 8
        %s330 = scalar_lea.vmem %s1, %s329
        %s331 = sadd.s32 %s24, 4
        %p332 = scmp.lt.s32.totalorder %s23, 1
        %s333 = scalar_select %p332, %s23, 1
        %p334 = scmp.lt.s32.totalorder %s24, 3
        %s335 = scalar_select %p334, %s24, 3
        %s336 = smul.addr %s335, 2
        %s337 = smul.addr %s333, 8
        %s338 = sadd.s32 %s336, %s337
        %s339 = smul.addr %s338, 8
        %s340 = scalar_lea.vmem %s4, %s339
        %p341 = scmp.lt.s32.totalorder %s23, 1
        %s342 = scalar_select %p341, %s23, 1
        %p343 = scmp.lt.s32.totalorder %s24, 3
        %s344 = scalar_select %p343, %s24, 3
        %s345 = smul.addr %s342, 4
        %s346 = sadd.s32 %s344, %s345
        %s347 = scalar_lea.vmem %s5, %s346
        %v348 = vlaneseq
        %v349 = vshrl.u32 %v348, 7
        %v350 = vadd.s32 %v349, 8
        %v351 = vlaneseq
        %v352 = vand.u32 %v351, 127
        %v353 = vadd.s32 %v352, 4294967295
        %vm354 = vcmp.eq.s32.totalorder %v349, %v353
        %vm355 = vcmp.eq.s32.totalorder %v350, %v353
        %v356 = vsel %vm354, 1, 0
        %v357 = vsel %vm355, 1, 0
        %v358 = vcvt.s32.f32 %v356
        %v359 = vcvt.s32.f32 %v357
        %vm360 = vcmp.eq.s32.totalorder %v349, %v352
        %vm361 = vcmp.eq.s32.totalorder %v350, %v352
        %v362 = vsel %vm360, 1, 0
        %v363 = vsel %vm361, 1, 0
        %v364 = vcvt.s32.f32 %v362
        %v365 = vcvt.s32.f32 %v363
        %v366 = vadd.s32 %v352, 1
        %vm367 = vcmp.eq.s32.totalorder %v349, %v366
        %vm368 = vcmp.eq.s32.totalorder %v350, %v366
        %v369 = vsel %vm367, 1, 0
        %v370 = vsel %vm368, 1, 0
        %v371 = vcvt.s32.f32 %v369
        %v372 = vcvt.s32.f32 %v370
        %v373 = vadd.s32 %v349, 4294967295
        %v374 = vadd.s32 %v350, 4294967295
        %vm375 = vcmp.eq.s32.totalorder %v352, %v373
        %vm376 = vcmp.eq.s32.totalorder %v352, %v374
        %v377 = vsel %vm375, 1, 0
        %v378 = vsel %vm376, 1, 0
        %v379 = vcvt.s32.f32 %v377
        %v380 = vcvt.s32.f32 %v378
        %v381 = vadd.s32 %v349, 1
        %v382 = vadd.s32 %v350, 1
        %vm383 = vcmp.eq.s32.totalorder %v352, %v381
        %vm384 = vcmp.eq.s32.totalorder %v352, %v382
        %v385 = vsel %vm383, 1, 0
        %v386 = vsel %vm384, 1, 0
        %v387 = vcvt.s32.f32 %v385
        %v388 = vcvt.s32.f32 %v386
        %v389 = vld [vmem:[%s320] sm:$0xff]
        %v390 = vld [vmem:[%s320 + $0x8] sm:$0xff]
        %s391 = sld [smem:[#allocation4 + %s24]]
        %v392 = vstv %s391
        %v393 = vadd.f32 %v392, 0.0
        %s394 = smul.u32 %s24, 9
        %s395 = sld [smem:[#allocation2 + %s394]]
        %v396 = vstv %s395
        %v397 = vmul.f32 %v396, %v358
        %v398 = vmul.f32 %v396, %v359
        %s399 = sadd.s32 %s394, 1
        %s400 = sld [smem:[#allocation2 + %s399]]
        %v401 = vstv %s400
        %v402 = vmul.f32 %v401, %v364
        %v403 = vmul.f32 %v401, %v365
        %v404 = vadd.f32 %v397, %v402
        %v405 = vadd.f32 %v398, %v403
        %s406 = sadd.s32 %s394, 2
        %s407 = sld [smem:[#allocation2 + %s406]]
        %v408 = vstv %s407
        %v409 = vmul.f32 %v408, %v371
        %v410 = vmul.f32 %v408, %v372
        %v411 = vadd.f32 %v404, %v409
        %v412 = vadd.f32 %v405, %v410
        %vm413 = vcmask 130048
        %v415 = vsel %vm413, %v389, 0
        %v418 = vsel %vm413, %v390, 0
        %420 = vmatprep.subr.mxu0 0.0
        %421 = vmatpush1.msra.mxu0 %v411
        %422 = vmatprep.subr.mxu0 0.0
        %423 = vmatpush1.msra.mxu0 %v412
        %424 = vmatprep.subr.mxu0 0.0
        %425 = vmatpush1.msra.mxu0 0.0
        %426 = vmatprep.subr.mxu0 0.0
        %427 = vmatpush1.msra.mxu0 0.0
        %428 = vmatprep.subr.mxu0 0.0
        %429 = vmatpush1.msra.mxu0 0.0
        %430 = vmatprep.subr.mxu0 0.0
        %431 = vmatpush1.msra.mxu0 0.0
        %432 = vmatprep.subr.mxu0 0.0
        %433 = vmatpush1.msra.mxu0 0.0
        %434 = vmatprep.subr.mxu0 0.0
        %435 = vmatpush1.msra.mxu0 0.0
        %436 = vmatprep.subr.mxu0 0.0
        %437 = vmatpush1.msra.mxu0 0.0
        %438 = vmatprep.subr.mxu0 0.0
        %439 = vmatpush1.msra.mxu0 0.0
        %440 = vmatprep.subr.mxu0 0.0
        %441 = vmatpush1.msra.mxu0 0.0
        %442 = vmatprep.subr.mxu0 0.0
        %443 = vmatpush1.msra.mxu0 0.0
        %444 = vmatprep.subr.mxu0 0.0
        %445 = vmatpush1.msra.mxu0 0.0
        %446 = vmatprep.subr.mxu0 0.0
        %447 = vmatpush1.msra.mxu0 0.0
        %448 = vmatprep.subr.mxu0 0.0
        %449 = vmatpush1.msra.mxu0 0.0
        %450 = vmatprep.subr.mxu0 0.0
        %451 = vmatpush1.msra.mxu0 0.0
        %452 = vmatprep.subr.mxu0 0.0
        %453 = vmatpush1.msra.mxu0 0.0
        %454 = vmatprep.subr.mxu0 0.0
        %455 = vmatpush1.msra.mxu0 0.0
        %456 = vmatprep.subr.mxu0 0.0
        %457 = vmatpush1.msra.mxu0 0.0
        %458 = vmatprep.subr.mxu0 0.0
        %459 = vmatpush1.msra.mxu0 0.0
        %460 = vmatprep.subr.mxu0 0.0
        %461 = vmatpush1.msra.mxu0 0.0
        %462 = vmatprep.subr.mxu0 0.0
        %463 = vmatpush1.msra.mxu0 0.0
        %464 = vmatprep.subr.mxu0 0.0
        %465 = vmatpush1.msra.mxu0 0.0
        %466 = vmatprep.subr.mxu0 0.0
        %467 = vmatpush1.msra.mxu0 0.0
        %468 = vmatprep.subr.mxu0 0.0
        %469 = vmatpush1.msra.mxu0 0.0
        %470 = vmatprep.subr.mxu0 0.0
        %471 = vmatpush1.msra.mxu0 0.0
        %472 = vmatprep.subr.mxu0 0.0
        %473 = vmatpush1.msra.mxu0 0.0
        %474 = vmatprep.subr.mxu0 0.0
        %475 = vmatpush1.msra.mxu0 0.0
        %476 = vmatprep.subr.mxu0 0.0
        %477 = vmatpush1.msra.mxu0 0.0
        %478 = vmatprep.subr.mxu0 0.0
        %479 = vmatpush1.msra.mxu0 0.0
        %480 = vmatprep.subr.mxu0 0.0
        %481 = vmatpush1.msra.mxu0 0.0
        %482 = vmatprep.subr.mxu0 0.0
        %483 = vmatpush1.msra.mxu0 0.0
        %484 = vmatprep.mubr.f32.mxu0 0.0
        %485 = vmatmul.mubr.f32.gmra.mrb[0].mxu0 %v415
        %v486 = vpop.f32.mrb[0].mxu0
        %v487 = vadd.f32 0.0, %v486
        %v488 = vpop.f32.mrb[0].mxu0
        %489 = vmatprep.mubr.f32.mxu0 0.0
        %490 = vmatmul.mubr.f32.gmra.mrb[0].mxu0 %v418
        %v491 = vpop.f32.mrb[0].mxu0
        %v492 = vadd.f32 0.0, %v491
        %v493 = vpop.f32.mrb[0].mxu0
        %494 = vdwg.mxu0
        %v496 = vsel %vm413, %v379, 0
        %v499 = vsel %vm413, %v380, 0
        %501 = vmatprep.subr.mxu0 0.0
        %502 = vmatpush1.msra.mxu0 %v487
        %503 = vmatprep.subr.mxu0 0.0
        %504 = vmatpush1.msra.mxu0 %v492
        %505 = vmatprep.subr.mxu0 0.0
        %506 = vmatpush1.msra.mxu0 0.0
        %507 = vmatprep.subr.mxu0 0.0
        %508 = vmatpush1.msra.mxu0 0.0
        %509 = vmatprep.subr.mxu0 0.0
        %510 = vmatpush1.msra.mxu0 0.0
        %511 = vmatprep.subr.mxu0 0.0
        %512 = vmatpush1.msra.mxu0 0.0
        %513 = vmatprep.subr.mxu0 0.0
        %514 = vmatpush1.msra.mxu0 0.0
        %515 = vmatprep.subr.mxu0 0.0
        %516 = vmatpush1.msra.mxu0 0.0
        %517 = vmatprep.subr.mxu0 0.0
        %518 = vmatpush1.msra.mxu0 0.0
        %519 = vmatprep.subr.mxu0 0.0
        %520 = vmatpush1.msra.mxu0 0.0
        %521 = vmatprep.subr.mxu0 0.0
        %522 = vmatpush1.msra.mxu0 0.0
        %523 = vmatprep.subr.mxu0 0.0
        %524 = vmatpush1.msra.mxu0 0.0
        %525 = vmatprep.subr.mxu0 0.0
        %526 = vmatpush1.msra.mxu0 0.0
        %527 = vmatprep.subr.mxu0 0.0
        %528 = vmatpush1.msra.mxu0 0.0
        %529 = vmatprep.subr.mxu0 0.0
        %530 = vmatpush1.msra.mxu0 0.0
        %531 = vmatprep.subr.mxu0 0.0
        %532 = vmatpush1.msra.mxu0 0.0
        %533 = vmatprep.subr.mxu0 0.0
        %534 = vmatpush1.msra.mxu0 0.0
        %535 = vmatprep.subr.mxu0 0.0
        %536 = vmatpush1.msra.mxu0 0.0
        %537 = vmatprep.subr.mxu0 0.0
        %538 = vmatpush1.msra.mxu0 0.0
        %539 = vmatprep.subr.mxu0 0.0
        %540 = vmatpush1.msra.mxu0 0.0
        %541 = vmatprep.subr.mxu0 0.0
        %542 = vmatpush1.msra.mxu0 0.0
        %543 = vmatprep.subr.mxu0 0.0
        %544 = vmatpush1.msra.mxu0 0.0
        %545 = vmatprep.subr.mxu0 0.0
        %546 = vmatpush1.msra.mxu0 0.0
        %547 = vmatprep.subr.mxu0 0.0
        %548 = vmatpush1.msra.mxu0 0.0
        %549 = vmatprep.subr.mxu0 0.0
        %550 = vmatpush1.msra.mxu0 0.0
        %551 = vmatprep.subr.mxu0 0.0
        %552 = vmatpush1.msra.mxu0 0.0
        %553 = vmatprep.subr.mxu0 0.0
        %554 = vmatpush1.msra.mxu0 0.0
        %555 = vmatprep.subr.mxu0 0.0
        %556 = vmatpush1.msra.mxu0 0.0
        %557 = vmatprep.subr.mxu0 0.0
        %558 = vmatpush1.msra.mxu0 0.0
        %559 = vmatprep.subr.mxu0 0.0
        %560 = vmatpush1.msra.mxu0 0.0
        %561 = vmatprep.subr.mxu0 0.0
        %562 = vmatpush1.msra.mxu0 0.0
        %563 = vmatprep.subr.mxu0 0.0
        %564 = vmatpush1.msra.mxu0 0.0
        %565 = vmatprep.mubr.f32.mxu0 0.0
        %566 = vmatmul.mubr.f32.gmra.mrb[0].mxu0 %v496
        %v567 = vpop.f32.mrb[0].mxu0
        %v568 = vadd.f32 0.0, %v567
        %v569 = vpop.f32.mrb[0].mxu0
        %570 = vmatprep.mubr.f32.mxu0 0.0
        %571 = vmatmul.mubr.f32.gmra.mrb[0].mxu0 %v499
        %v572 = vpop.f32.mrb[0].mxu0
        %v573 = vadd.f32 0.0, %v572
        %v574 = vpop.f32.mrb[0].mxu0
        %575 = vdwg.mxu0
        %v576 = vadd.f32 %v393, %v568
        %v577 = vadd.f32 %v393, %v573
        %s578 = sadd.s32 %s394, 3
        %s579 = sld [smem:[#allocation2 + %s578]]
        %v580 = vstv %s579
        %v581 = vmul.f32 %v580, %v358
        %v582 = vmul.f32 %v580, %v359
        %s583 = sadd.s32 %s394, 4
        %s584 = sld [smem:[#allocation2 + %s583]]
        %v585 = vstv %s584
        %v586 = vmul.f32 %v585, %v364
        %v587 = vmul.f32 %v585, %v365
        %v588 = vadd.f32 %v581, %v586
        %v589 = vadd.f32 %v582, %v587
        %s590 = sadd.s32 %s394, 5
        %s591 = sld [smem:[#allocation2 + %s590]]
        %v592 = vstv %s591
        %v593 = vmul.f32 %v592, %v371
        %v594 = vmul.f32 %v592, %v372
        %v595 = vadd.f32 %v588, %v593
        %v596 = vadd.f32 %v589, %v594
        %597 = vmatprep.subr.mxu0 0.0
        %598 = vmatpush1.msra.mxu0 %v595
        %599 = vmatprep.subr.mxu0 0.0
        %600 = vmatpush1.msra.mxu0 %v596
        %601 = vmatprep.subr.mxu0 0.0
        %602 = vmatpush1.msra.mxu0 0.0
        %603 = vmatprep.subr.mxu0 0.0
        %604 = vmatpush1.msra.mxu0 0.0
        %605 = vmatprep.subr.mxu0 0.0
        %606 = vmatpush1.msra.mxu0 0.0
        %607 = vmatprep.subr.mxu0 0.0
        %608 = vmatpush1.msra.mxu0 0.0
        %609 = vmatprep.subr.mxu0 0.0
        %610 = vmatpush1.msra.mxu0 0.0
        %611 = vmatprep.subr.mxu0 0.0
        %612 = vmatpush1.msra.mxu0 0.0
        %613 = vmatprep.subr.mxu0 0.0
        %614 = vmatpush1.msra.mxu0 0.0
        %615 = vmatprep.subr.mxu0 0.0
        %616 = vmatpush1.msra.mxu0 0.0
        %617 = vmatprep.subr.mxu0 0.0
        %618 = vmatpush1.msra.mxu0 0.0
        %619 = vmatprep.subr.mxu0 0.0
        %620 = vmatpush1.msra.mxu0 0.0
        %621 = vmatprep.subr.mxu0 0.0
        %622 = vmatpush1.msra.mxu0 0.0
        %623 = vmatprep.subr.mxu0 0.0
        %624 = vmatpush1.msra.mxu0 0.0
        %625 = vmatprep.subr.mxu0 0.0
        %626 = vmatpush1.msra.mxu0 0.0
        %627 = vmatprep.subr.mxu0 0.0
        %628 = vmatpush1.msra.mxu0 0.0
        %629 = vmatprep.subr.mxu0 0.0
        %630 = vmatpush1.msra.mxu0 0.0
        %631 = vmatprep.subr.mxu0 0.0
        %632 = vmatpush1.msra.mxu0 0.0
        %633 = vmatprep.subr.mxu0 0.0
        %634 = vmatpush1.msra.mxu0 0.0
        %635 = vmatprep.subr.mxu0 0.0
        %636 = vmatpush1.msra.mxu0 0.0
        %637 = vmatprep.subr.mxu0 0.0
        %638 = vmatpush1.msra.mxu0 0.0
        %639 = vmatprep.subr.mxu0 0.0
        %640 = vmatpush1.msra.mxu0 0.0
        %641 = vmatprep.subr.mxu0 0.0
        %642 = vmatpush1.msra.mxu0 0.0
        %643 = vmatprep.subr.mxu0 0.0
        %644 = vmatpush1.msra.mxu0 0.0
        %645 = vmatprep.subr.mxu0 0.0
        %646 = vmatpush1.msra.mxu0 0.0
        %647 = vmatprep.subr.mxu0 0.0
        %648 = vmatpush1.msra.mxu0 0.0
        %649 = vmatprep.subr.mxu0 0.0
        %650 = vmatpush1.msra.mxu0 0.0
        %651 = vmatprep.subr.mxu0 0.0
        %652 = vmatpush1.msra.mxu0 0.0
        %653 = vmatprep.subr.mxu0 0.0
        %654 = vmatpush1.msra.mxu0 0.0
        %655 = vmatprep.subr.mxu0 0.0
        %656 = vmatpush1.msra.mxu0 0.0
        %657 = vmatprep.subr.mxu0 0.0
        %658 = vmatpush1.msra.mxu0 0.0
        %659 = vmatprep.subr.mxu0 0.0
        %660 = vmatpush1.msra.mxu0 0.0
        %661 = vmatprep.mubr.f32.mxu0 0.0
        %662 = vmatmul.mubr.f32.gmra.mrb[0].mxu0 %v415
        %v663 = vpop.f32.mrb[0].mxu0
        %v664 = vadd.f32 0.0, %v663
        %v665 = vpop.f32.mrb[0].mxu0
        %666 = vmatprep.mubr.f32.mxu0 0.0
        %667 = vmatmul.mubr.f32.gmra.mrb[0].mxu0 %v418
        %v668 = vpop.f32.mrb[0].mxu0
        %v669 = vadd.f32 0.0, %v668
        %v670 = vpop.f32.mrb[0].mxu0
        %671 = vdwg.mxu0
        %v672 = vadd.f32 %v576, %v664
        %v673 = vadd.f32 %v577, %v669
        %s674 = sadd.s32 %s394, 6
        %s675 = sld [smem:[#allocation2 + %s674]]
        %v676 = vstv %s675
        %v677 = vmul.f32 %v676, %v358
        %v678 = vmul.f32 %v676, %v359
        %s679 = sadd.s32 %s394, 7
        %s680 = sld [smem:[#allocation2 + %s679]]
        %v681 = vstv %s680
        %v682 = vmul.f32 %v681, %v364
        %v683 = vmul.f32 %v681, %v365
        %v684 = vadd.f32 %v677, %v682
        %v685 = vadd.f32 %v678, %v683
        %s686 = sadd.s32 %s394, 8
        %s687 = sld [smem:[#allocation2 + %s686]]
        %v688 = vstv %s687
        %v689 = vmul.f32 %v688, %v371
        %v690 = vmul.f32 %v688, %v372
        %v691 = vadd.f32 %v684, %v689
        %v692 = vadd.f32 %v685, %v690
        %693 = vmatprep.subr.mxu0 0.0
        %694 = vmatpush1.msra.mxu0 %v691
        %695 = vmatprep.subr.mxu0 0.0
        %696 = vmatpush1.msra.mxu0 %v692
        %697 = vmatprep.subr.mxu0 0.0
        %698 = vmatpush1.msra.mxu0 0.0
        %699 = vmatprep.subr.mxu0 0.0
        %700 = vmatpush1.msra.mxu0 0.0
        %701 = vmatprep.subr.mxu0 0.0
        %702 = vmatpush1.msra.mxu0 0.0
        %703 = vmatprep.subr.mxu0 0.0
        %704 = vmatpush1.msra.mxu0 0.0
        %705 = vmatprep.subr.mxu0 0.0
        %706 = vmatpush1.msra.mxu0 0.0
        %707 = vmatprep.subr.mxu0 0.0
        %708 = vmatpush1.msra.mxu0 0.0
        %709 = vmatprep.subr.mxu0 0.0
        %710 = vmatpush1.msra.mxu0 0.0
        %711 = vmatprep.subr.mxu0 0.0
        %712 = vmatpush1.msra.mxu0 0.0
        %713 = vmatprep.subr.mxu0 0.0
        %714 = vmatpush1.msra.mxu0 0.0
        %715 = vmatprep.subr.mxu0 0.0
        %716 = vmatpush1.msra.mxu0 0.0
        %717 = vmatprep.subr.mxu0 0.0
        %718 = vmatpush1.msra.mxu0 0.0
        %719 = vmatprep.subr.mxu0 0.0
        %720 = vmatpush1.msra.mxu0 0.0
        %721 = vmatprep.subr.mxu0 0.0
        %722 = vmatpush1.msra.mxu0 0.0
        %723 = vmatprep.subr.mxu0 0.0
        %724 = vmatpush1.msra.mxu0 0.0
        %725 = vmatprep.subr.mxu0 0.0
        %726 = vmatpush1.msra.mxu0 0.0
        %727 = vmatprep.subr.mxu0 0.0
        %728 = vmatpush1.msra.mxu0 0.0
        %729 = vmatprep.subr.mxu0 0.0
        %730 = vmatpush1.msra.mxu0 0.0
        %731 = vmatprep.subr.mxu0 0.0
        %732 = vmatpush1.msra.mxu0 0.0
        %733 = vmatprep.subr.mxu0 0.0
        %734 = vmatpush1.msra.mxu0 0.0
        %735 = vmatprep.subr.mxu0 0.0
        %736 = vmatpush1.msra.mxu0 0.0
        %737 = vmatprep.subr.mxu0 0.0
        %738 = vmatpush1.msra.mxu0 0.0
        %739 = vmatprep.subr.mxu0 0.0
        %740 = vmatpush1.msra.mxu0 0.0
        %741 = vmatprep.subr.mxu0 0.0
        %742 = vmatpush1.msra.mxu0 0.0
        %743 = vmatprep.subr.mxu0 0.0
        %744 = vmatpush1.msra.mxu0 0.0
        %745 = vmatprep.subr.mxu0 0.0
        %746 = vmatpush1.msra.mxu0 0.0
        %747 = vmatprep.subr.mxu0 0.0
        %748 = vmatpush1.msra.mxu0 0.0
        %749 = vmatprep.subr.mxu0 0.0
        %750 = vmatpush1.msra.mxu0 0.0
        %751 = vmatprep.subr.mxu0 0.0
        %752 = vmatpush1.msra.mxu0 0.0
        %753 = vmatprep.subr.mxu0 0.0
        %754 = vmatpush1.msra.mxu0 0.0
        %755 = vmatprep.subr.mxu0 0.0
        %756 = vmatpush1.msra.mxu0 0.0
        %757 = vmatprep.mubr.f32.mxu0 0.0
        %758 = vmatmul.mubr.f32.gmra.mrb[0].mxu0 %v415
        %v759 = vpop.f32.mrb[0].mxu0
        %v760 = vadd.f32 0.0, %v759
        %v761 = vpop.f32.mrb[0].mxu0
        %762 = vmatprep.mubr.f32.mxu0 0.0
        %763 = vmatmul.mubr.f32.gmra.mrb[0].mxu0 %v418
        %v764 = vpop.f32.mrb[0].mxu0
        %v765 = vadd.f32 0.0, %v764
        %v766 = vpop.f32.mrb[0].mxu0
        %767 = vdwg.mxu0
        %v769 = vsel %vm413, %v387, 0
        %v772 = vsel %vm413, %v388, 0
        %774 = vmatprep.subr.mxu0 0.0
        %775 = vmatpush1.msra.mxu0 %v760
        %776 = vmatprep.subr.mxu0 0.0
        %777 = vmatpush1.msra.mxu0 %v765
        %778 = vmatprep.subr.mxu0 0.0
        %779 = vmatpush1.msra.mxu0 0.0
        %780 = vmatprep.subr.mxu0 0.0
        %781 = vmatpush1.msra.mxu0 0.0
        %782 = vmatprep.subr.mxu0 0.0
        %783 = vmatpush1.msra.mxu0 0.0
        %784 = vmatprep.subr.mxu0 0.0
        %785 = vmatpush1.msra.mxu0 0.0
        %786 = vmatprep.subr.mxu0 0.0
        %787 = vmatpush1.msra.mxu0 0.0
        %788 = vmatprep.subr.mxu0 0.0
        %789 = vmatpush1.msra.mxu0 0.0
        %790 = vmatprep.subr.mxu0 0.0
        %791 = vmatpush1.msra.mxu0 0.0
        %792 = vmatprep.subr.mxu0 0.0
        %793 = vmatpush1.msra.mxu0 0.0
        %794 = vmatprep.subr.mxu0 0.0
        %795 = vmatpush1.msra.mxu0 0.0
        %796 = vmatprep.subr.mxu0 0.0
        %797 = vmatpush1.msra.mxu0 0.0
        %798 = vmatprep.subr.mxu0 0.0
        %799 = vmatpush1.msra.mxu0 0.0
        %800 = vmatprep.subr.mxu0 0.0
        %801 = vmatpush1.msra.mxu0 0.0
        %802 = vmatprep.subr.mxu0 0.0
        %803 = vmatpush1.msra.mxu0 0.0
        %804 = vmatprep.subr.mxu0 0.0
        %805 = vmatpush1.msra.mxu0 0.0
        %806 = vmatprep.subr.mxu0 0.0
        %807 = vmatpush1.msra.mxu0 0.0
        %808 = vmatprep.subr.mxu0 0.0
        %809 = vmatpush1.msra.mxu0 0.0
        %810 = vmatprep.subr.mxu0 0.0
        %811 = vmatpush1.msra.mxu0 0.0
        %812 = vmatprep.subr.mxu0 0.0
        %813 = vmatpush1.msra.mxu0 0.0
        %814 = vmatprep.subr.mxu0 0.0
        %815 = vmatpush1.msra.mxu0 0.0
        %816 = vmatprep.subr.mxu0 0.0
        %817 = vmatpush1.msra.mxu0 0.0
        %818 = vmatprep.subr.mxu0 0.0
        %819 = vmatpush1.msra.mxu0 0.0
        %820 = vmatprep.subr.mxu0 0.0
        %821 = vmatpush1.msra.mxu0 0.0
        %822 = vmatprep.subr.mxu0 0.0
        %823 = vmatpush1.msra.mxu0 0.0
        %824 = vmatprep.subr.mxu0 0.0
        %825 = vmatpush1.msra.mxu0 0.0
        %826 = vmatprep.subr.mxu0 0.0
        %827 = vmatpush1.msra.mxu0 0.0
        %828 = vmatprep.subr.mxu0 0.0
        %829 = vmatpush1.msra.mxu0 0.0
        %830 = vmatprep.subr.mxu0 0.0
        %831 = vmatpush1.msra.mxu0 0.0
        %832 = vmatprep.subr.mxu0 0.0
        %833 = vmatpush1.msra.mxu0 0.0
        %834 = vmatprep.subr.mxu0 0.0
        %835 = vmatpush1.msra.mxu0 0.0
        %836 = vmatprep.subr.mxu0 0.0
        %837 = vmatpush1.msra.mxu0 0.0
        %838 = vmatprep.mubr.f32.mxu0 0.0
        %839 = vmatmul.mubr.f32.gmra.mrb[0].mxu0 %v769
        %v840 = vpop.f32.mrb[0].mxu0
        %v841 = vadd.f32 0.0, %v840
        %v842 = vpop.f32.mrb[0].mxu0
        %843 = vmatprep.mubr.f32.mxu0 0.0
        %844 = vmatmul.mubr.f32.gmra.mrb[0].mxu0 %v772
        %v845 = vpop.f32.mrb[0].mxu0
        %v846 = vadd.f32 0.0, %v845
        %v847 = vpop.f32.mrb[0].mxu0
        %848 = vdwg.mxu0
        %v849 = vadd.f32 %v672, %v841
        %v850 = vadd.f32 %v673, %v846
        %s851 = sadd.s32 %s24, 4
        %v852 = vld [vmem:[%s330] sm:$0xff]
        %v853 = vld [vmem:[%s330 + $0x8] sm:$0xff]
        %s854 = sld [smem:[#allocation4 + %s851]]
        %v855 = vstv %s854
        %v856 = vadd.f32 %v855, 0.0
        %s857 = smul.u32 %s851, 9
        %s858 = sld [smem:[#allocation2 + %s857]]
        %v859 = vstv %s858
        %v860 = vmul.f32 %v859, %v358
        %v861 = vmul.f32 %v859, %v359
        %s862 = sadd.s32 %s857, 1
        %s863 = sld [smem:[#allocation2 + %s862]]
        %v864 = vstv %s863
        %v865 = vmul.f32 %v864, %v364
        %v866 = vmul.f32 %v864, %v365
        %v867 = vadd.f32 %v860, %v865
        %v868 = vadd.f32 %v861, %v866
        %s869 = sadd.s32 %s857, 2
        %s870 = sld [smem:[#allocation2 + %s869]]
        %v871 = vstv %s870
        %v872 = vmul.f32 %v871, %v371
        %v873 = vmul.f32 %v871, %v372
        %v874 = vadd.f32 %v867, %v872
        %v875 = vadd.f32 %v868, %v873
        %v877 = vsel %vm413, %v852, 0
        %v880 = vsel %vm413, %v853, 0
        %882 = vmatprep.subr.mxu0 0.0
        %883 = vmatpush1.msra.mxu0 %v874
        %884 = vmatprep.subr.mxu0 0.0
        %885 = vmatpush1.msra.mxu0 %v875
        %886 = vmatprep.subr.mxu0 0.0
        %887 = vmatpush1.msra.mxu0 0.0
        %888 = vmatprep.subr.mxu0 0.0
        %889 = vmatpush1.msra.mxu0 0.0
        %890 = vmatprep.subr.mxu0 0.0
        %891 = vmatpush1.msra.mxu0 0.0
        %892 = vmatprep.subr.mxu0 0.0
        %893 = vmatpush1.msra.mxu0 0.0
        %894 = vmatprep.subr.mxu0 0.0
        %895 = vmatpush1.msra.mxu0 0.0
        %896 = vmatprep.subr.mxu0 0.0
        %897 = vmatpush1.msra.mxu0 0.0
        %898 = vmatprep.subr.mxu0 0.0
        %899 = vmatpush1.msra.mxu0 0.0
        %900 = vmatprep.subr.mxu0 0.0
        %901 = vmatpush1.msra.mxu0 0.0
        %902 = vmatprep.subr.mxu0 0.0
        %903 = vmatpush1.msra.mxu0 0.0
        %904 = vmatprep.subr.mxu0 0.0
        %905 = vmatpush1.msra.mxu0 0.0
        %906 = vmatprep.subr.mxu0 0.0
        %907 = vmatpush1.msra.mxu0 0.0
        %908 = vmatprep.subr.mxu0 0.0
        %909 = vmatpush1.msra.mxu0 0.0
        %910 = vmatprep.subr.mxu0 0.0
        %911 = vmatpush1.msra.mxu0 0.0
        %912 = vmatprep.subr.mxu0 0.0
        %913 = vmatpush1.msra.mxu0 0.0
        %914 = vmatprep.subr.mxu0 0.0
        %915 = vmatpush1.msra.mxu0 0.0
        %916 = vmatprep.subr.mxu0 0.0
        %917 = vmatpush1.msra.mxu0 0.0
        %918 = vmatprep.subr.mxu0 0.0
        %919 = vmatpush1.msra.mxu0 0.0
        %920 = vmatprep.subr.mxu0 0.0
        %921 = vmatpush1.msra.mxu0 0.0
        %922 = vmatprep.subr.mxu0 0.0
        %923 = vmatpush1.msra.mxu0 0.0
        %924 = vmatprep.subr.mxu0 0.0
        %925 = vmatpush1.msra.mxu0 0.0
        %926 = vmatprep.subr.mxu0 0.0
        %927 = vmatpush1.msra.mxu0 0.0
        %928 = vmatprep.subr.mxu0 0.0
        %929 = vmatpush1.msra.mxu0 0.0
        %930 = vmatprep.subr.mxu0 0.0
        %931 = vmatpush1.msra.mxu0 0.0
        %932 = vmatprep.subr.mxu0 0.0
        %933 = vmatpush1.msra.mxu0 0.0
        %934 = vmatprep.subr.mxu0 0.0
        %935 = vmatpush1.msra.mxu0 0.0
        %936 = vmatprep.subr.mxu0 0.0
        %937 = vmatpush1.msra.mxu0 0.0
        %938 = vmatprep.subr.mxu0 0.0
        %939 = vmatpush1.msra.mxu0 0.0
        %940 = vmatprep.subr.mxu0 0.0
        %941 = vmatpush1.msra.mxu0 0.0
        %942 = vmatprep.subr.mxu0 0.0
        %943 = vmatpush1.msra.mxu0 0.0
        %944 = vmatprep.subr.mxu0 0.0
        %945 = vmatpush1.msra.mxu0 0.0
        %946 = vmatprep.mubr.f32.mxu0 0.0
        %947 = vmatmul.mubr.f32.gmra.mrb[0].mxu0 %v877
        %v948 = vpop.f32.mrb[0].mxu0
        %v949 = vadd.f32 0.0, %v948
        %v950 = vpop.f32.mrb[0].mxu0
        %951 = vmatprep.mubr.f32.mxu0 0.0
        %952 = vmatmul.mubr.f32.gmra.mrb[0].mxu0 %v880
        %v953 = vpop.f32.mrb[0].mxu0
        %v954 = vadd.f32 0.0, %v953
        %v955 = vpop.f32.mrb[0].mxu0
        %956 = vdwg.mxu0
        %957 = vmatprep.subr.mxu0 0.0
        %958 = vmatpush1.msra.mxu0 %v949
        %959 = vmatprep.subr.mxu0 0.0
        %960 = vmatpush1.msra.mxu0 %v954
        %961 = vmatprep.subr.mxu0 0.0
        %962 = vmatpush1.msra.mxu0 0.0
        %963 = vmatprep.subr.mxu0 0.0
        %964 = vmatpush1.msra.mxu0 0.0
        %965 = vmatprep.subr.mxu0 0.0
        %966 = vmatpush1.msra.mxu0 0.0
        %967 = vmatprep.subr.mxu0 0.0
        %968 = vmatpush1.msra.mxu0 0.0
        %969 = vmatprep.subr.mxu0 0.0
        %970 = vmatpush1.msra.mxu0 0.0
        %971 = vmatprep.subr.mxu0 0.0
        %972 = vmatpush1.msra.mxu0 0.0
        %973 = vmatprep.subr.mxu0 0.0
        %974 = vmatpush1.msra.mxu0 0.0
        %975 = vmatprep.subr.mxu0 0.0
        %976 = vmatpush1.msra.mxu0 0.0
        %977 = vmatprep.subr.mxu0 0.0
        %978 = vmatpush1.msra.mxu0 0.0
        %979 = vmatprep.subr.mxu0 0.0
        %980 = vmatpush1.msra.mxu0 0.0
        %981 = vmatprep.subr.mxu0 0.0
        %982 = vmatpush1.msra.mxu0 0.0
        %983 = vmatprep.subr.mxu0 0.0
        %984 = vmatpush1.msra.mxu0 0.0
        %985 = vmatprep.subr.mxu0 0.0
        %986 = vmatpush1.msra.mxu0 0.0
        %987 = vmatprep.subr.mxu0 0.0
        %988 = vmatpush1.msra.mxu0 0.0
        %989 = vmatprep.subr.mxu0 0.0
        %990 = vmatpush1.msra.mxu0 0.0
        %991 = vmatprep.subr.mxu0 0.0
        %992 = vmatpush1.msra.mxu0 0.0
        %993 = vmatprep.subr.mxu0 0.0
        %994 = vmatpush1.msra.mxu0 0.0
        %995 = vmatprep.subr.mxu0 0.0
        %996 = vmatpush1.msra.mxu0 0.0
        %997 = vmatprep.subr.mxu0 0.0
        %998 = vmatpush1.msra.mxu0 0.0
        %999 = vmatprep.subr.mxu0 0.0
        %1000 = vmatpush1.msra.mxu0 0.0
        %1001 = vmatprep.subr.mxu0 0.0
        %1002 = vmatpush1.msra.mxu0 0.0
        %1003 = vmatprep.subr.mxu0 0.0
        %1004 = vmatpush1.msra.mxu0 0.0
        %1005 = vmatprep.subr.mxu0 0.0
        %1006 = vmatpush1.msra.mxu0 0.0
        %1007 = vmatprep.subr.mxu0 0.0
        %1008 = vmatpush1.msra.mxu0 0.0
        %1009 = vmatprep.subr.mxu0 0.0
        %1010 = vmatpush1.msra.mxu0 0.0
        %1011 = vmatprep.subr.mxu0 0.0
        %1012 = vmatpush1.msra.mxu0 0.0
        %1013 = vmatprep.subr.mxu0 0.0
        %1014 = vmatpush1.msra.mxu0 0.0
        %1015 = vmatprep.subr.mxu0 0.0
        %1016 = vmatpush1.msra.mxu0 0.0
        %1017 = vmatprep.subr.mxu0 0.0
        %1018 = vmatpush1.msra.mxu0 0.0
        %1019 = vmatprep.subr.mxu0 0.0
        %1020 = vmatpush1.msra.mxu0 0.0
        %1021 = vmatprep.mubr.f32.mxu0 0.0
        %1022 = vmatmul.mubr.f32.gmra.mrb[0].mxu0 %v496
        %v1023 = vpop.f32.mrb[0].mxu0
        %v1024 = vadd.f32 0.0, %v1023
        %v1025 = vpop.f32.mrb[0].mxu0
        %1026 = vmatprep.mubr.f32.mxu0 0.0
        %1027 = vmatmul.mubr.f32.gmra.mrb[0].mxu0 %v499
        %v1028 = vpop.f32.mrb[0].mxu0
        %v1029 = vadd.f32 0.0, %v1028
        %v1030 = vpop.f32.mrb[0].mxu0
        %1031 = vdwg.mxu0
        %v1032 = vadd.f32 %v856, %v1024
        %v1033 = vadd.f32 %v856, %v1029
        %s1034 = sadd.s32 %s857, 3
        %s1035 = sld [smem:[#allocation2 + %s1034]]
        %v1036 = vstv %s1035
        %v1037 = vmul.f32 %v1036, %v358
        %v1038 = vmul.f32 %v1036, %v359
        %s1039 = sadd.s32 %s857, 4
        %s1040 = sld [smem:[#allocation2 + %s1039]]
        %v1041 = vstv %s1040
        %v1042 = vmul.f32 %v1041, %v364
        %v1043 = vmul.f32 %v1041, %v365
        %v1044 = vadd.f32 %v1037, %v1042
        %v1045 = vadd.f32 %v1038, %v1043
        %s1046 = sadd.s32 %s857, 5
        %s1047 = sld [smem:[#allocation2 + %s1046]]
        %v1048 = vstv %s1047
        %v1049 = vmul.f32 %v1048, %v371
        %v1050 = vmul.f32 %v1048, %v372
        %v1051 = vadd.f32 %v1044, %v1049
        %v1052 = vadd.f32 %v1045, %v1050
        %1053 = vmatprep.subr.mxu0 0.0
        %1054 = vmatpush1.msra.mxu0 %v1051
        %1055 = vmatprep.subr.mxu0 0.0
        %1056 = vmatpush1.msra.mxu0 %v1052
        %1057 = vmatprep.subr.mxu0 0.0
        %1058 = vmatpush1.msra.mxu0 0.0
        %1059 = vmatprep.subr.mxu0 0.0
        %1060 = vmatpush1.msra.mxu0 0.0
        %1061 = vmatprep.subr.mxu0 0.0
        %1062 = vmatpush1.msra.mxu0 0.0
        %1063 = vmatprep.subr.mxu0 0.0
        %1064 = vmatpush1.msra.mxu0 0.0
        %1065 = vmatprep.subr.mxu0 0.0
        %1066 = vmatpush1.msra.mxu0 0.0
        %1067 = vmatprep.subr.mxu0 0.0
        %1068 = vmatpush1.msra.mxu0 0.0
        %1069 = vmatprep.subr.mxu0 0.0
        %1070 = vmatpush1.msra.mxu0 0.0
        %1071 = vmatprep.subr.mxu0 0.0
        %1072 = vmatpush1.msra.mxu0 0.0
        %1073 = vmatprep.subr.mxu0 0.0
        %1074 = vmatpush1.msra.mxu0 0.0
        %1075 = vmatprep.subr.mxu0 0.0
        %1076 = vmatpush1.msra.mxu0 0.0
        %1077 = vmatprep.subr.mxu0 0.0
        %1078 = vmatpush1.msra.mxu0 0.0
        %1079 = vmatprep.subr.mxu0 0.0
        %1080 = vmatpush1.msra.mxu0 0.0
        %1081 = vmatprep.subr.mxu0 0.0
        %1082 = vmatpush1.msra.mxu0 0.0
        %1083 = vmatprep.subr.mxu0 0.0
        %1084 = vmatpush1.msra.mxu0 0.0
        %1085 = vmatprep.subr.mxu0 0.0
        %1086 = vmatpush1.msra.mxu0 0.0
        %1087 = vmatprep.subr.mxu0 0.0
        %1088 = vmatpush1.msra.mxu0 0.0
        %1089 = vmatprep.subr.mxu0 0.0
        %1090 = vmatpush1.msra.mxu0 0.0
        %1091 = vmatprep.subr.mxu0 0.0
        %1092 = vmatpush1.msra.mxu0 0.0
        %1093 = vmatprep.subr.mxu0 0.0
        %1094 = vmatpush1.msra.mxu0 0.0
        %1095 = vmatprep.subr.mxu0 0.0
        %1096 = vmatpush1.msra.mxu0 0.0
        %1097 = vmatprep.subr.mxu0 0.0
        %1098 = vmatpush1.msra.mxu0 0.0
        %1099 = vmatprep.subr.mxu0 0.0
        %1100 = vmatpush1.msra.mxu0 0.0
        %1101 = vmatprep.subr.mxu0 0.0
        %1102 = vmatpush1.msra.mxu0 0.0
        %1103 = vmatprep.subr.mxu0 0.0
        %1104 = vmatpush1.msra.mxu0 0.0
        %1105 = vmatprep.subr.mxu0 0.0
        %1106 = vmatpush1.msra.mxu0 0.0
        %1107 = vmatprep.subr.mxu0 0.0
        %1108 = vmatpush1.msra.mxu0 0.0
        %1109 = vmatprep.subr.mxu0 0.0
        %1110 = vmatpush1.msra.mxu0 0.0
        %1111 = vmatprep.subr.mxu0 0.0
        %1112 = vmatpush1.msra.mxu0 0.0
        %1113 = vmatprep.subr.mxu0 0.0
        %1114 = vmatpush1.msra.mxu0 0.0
        %1115 = vmatprep.subr.mxu0 0.0
        %1116 = vmatpush1.msra.mxu0 0.0
        %1117 = vmatprep.mubr.f32.mxu0 0.0
        %1118 = vmatmul.mubr.f32.gmra.mrb[0].mxu0 %v877
        %v1119 = vpop.f32.mrb[0].mxu0
        %v1120 = vadd.f32 0.0, %v1119
        %v1121 = vpop.f32.mrb[0].mxu0
        %1122 = vmatprep.mubr.f32.mxu0 0.0
        %1123 = vmatmul.mubr.f32.gmra.mrb[0].mxu0 %v880
        %v1124 = vpop.f32.mrb[0].mxu0
        %v1125 = vadd.f32 0.0, %v1124
        %v1126 = vpop.f32.mrb[0].mxu0
        %1127 = vdwg.mxu0
        %v1128 = vadd.f32 %v1032, %v1120
        %v1129 = vadd.f32 %v1033, %v1125
        %s1130 = sadd.s32 %s857, 6
        %s1131 = sld [smem:[#allocation2 + %s1130]]
        %v1132 = vstv %s1131
        %v1133 = vmul.f32 %v1132, %v358
        %v1134 = vmul.f32 %v1132, %v359
        %s1135 = sadd.s32 %s857, 7
        %s1136 = sld [smem:[#allocation2 + %s1135]]
        %v1137 = vstv %s1136
        %v1138 = vmul.f32 %v1137, %v364
        %v1139 = vmul.f32 %v1137, %v365
        %v1140 = vadd.f32 %v1133, %v1138
        %v1141 = vadd.f32 %v1134, %v1139
        %s1142 = sadd.s32 %s857, 8
        %s1143 = sld [smem:[#allocation2 + %s1142]]
        %v1144 = vstv %s1143
        %v1145 = vmul.f32 %v1144, %v371
        %v1146 = vmul.f32 %v1144, %v372
        %v1147 = vadd.f32 %v1140, %v1145
        %v1148 = vadd.f32 %v1141, %v1146
        %1149 = vmatprep.subr.mxu0 0.0
        %1150 = vmatpush1.msra.mxu0 %v1147
        %1151 = vmatprep.subr.mxu0 0.0
        %1152 = vmatpush1.msra.mxu0 %v1148
        %1153 = vmatprep.subr.mxu0 0.0
        %1154 = vmatpush1.msra.mxu0 0.0
        %1155 = vmatprep.subr.mxu0 0.0
        %1156 = vmatpush1.msra.mxu0 0.0
        %1157 = vmatprep.subr.mxu0 0.0
        %1158 = vmatpush1.msra.mxu0 0.0
        %1159 = vmatprep.subr.mxu0 0.0
        %1160 = vmatpush1.msra.mxu0 0.0
        %1161 = vmatprep.subr.mxu0 0.0
        %1162 = vmatpush1.msra.mxu0 0.0
        %1163 = vmatprep.subr.mxu0 0.0
        %1164 = vmatpush1.msra.mxu0 0.0
        %1165 = vmatprep.subr.mxu0 0.0
        %1166 = vmatpush1.msra.mxu0 0.0
        %1167 = vmatprep.subr.mxu0 0.0
        %1168 = vmatpush1.msra.mxu0 0.0
        %1169 = vmatprep.subr.mxu0 0.0
        %1170 = vmatpush1.msra.mxu0 0.0
        %1171 = vmatprep.subr.mxu0 0.0
        %1172 = vmatpush1.msra.mxu0 0.0
        %1173 = vmatprep.subr.mxu0 0.0
        %1174 = vmatpush1.msra.mxu0 0.0
        %1175 = vmatprep.subr.mxu0 0.0
        %1176 = vmatpush1.msra.mxu0 0.0
        %1177 = vmatprep.subr.mxu0 0.0
        %1178 = vmatpush1.msra.mxu0 0.0
        %1179 = vmatprep.subr.mxu0 0.0
        %1180 = vmatpush1.msra.mxu0 0.0
        %1181 = vmatprep.subr.mxu0 0.0
        %1182 = vmatpush1.msra.mxu0 0.0
        %1183 = vmatprep.subr.mxu0 0.0
        %1184 = vmatpush1.msra.mxu0 0.0
        %1185 = vmatprep.subr.mxu0 0.0
        %1186 = vmatpush1.msra.mxu0 0.0
        %1187 = vmatprep.subr.mxu0 0.0
        %1188 = vmatpush1.msra.mxu0 0.0
        %1189 = vmatprep.subr.mxu0 0.0
        %1190 = vmatpush1.msra.mxu0 0.0
        %1191 = vmatprep.subr.mxu0 0.0
        %1192 = vmatpush1.msra.mxu0 0.0
        %1193 = vmatprep.subr.mxu0 0.0
        %1194 = vmatpush1.msra.mxu0 0.0
        %1195 = vmatprep.subr.mxu0 0.0
        %1196 = vmatpush1.msra.mxu0 0.0
        %1197 = vmatprep.subr.mxu0 0.0
        %1198 = vmatpush1.msra.mxu0 0.0
        %1199 = vmatprep.subr.mxu0 0.0
        %1200 = vmatpush1.msra.mxu0 0.0
        %1201 = vmatprep.subr.mxu0 0.0
        %1202 = vmatpush1.msra.mxu0 0.0
        %1203 = vmatprep.subr.mxu0 0.0
        %1204 = vmatpush1.msra.mxu0 0.0
        %1205 = vmatprep.subr.mxu0 0.0
        %1206 = vmatpush1.msra.mxu0 0.0
        %1207 = vmatprep.subr.mxu0 0.0
        %1208 = vmatpush1.msra.mxu0 0.0
        %1209 = vmatprep.subr.mxu0 0.0
        %1210 = vmatpush1.msra.mxu0 0.0
        %1211 = vmatprep.subr.mxu0 0.0
        %1212 = vmatpush1.msra.mxu0 0.0
        %1213 = vmatprep.mubr.f32.mxu0 0.0
        %1214 = vmatmul.mubr.f32.gmra.mrb[0].mxu0 %v877
        %v1215 = vpop.f32.mrb[0].mxu0
        %v1216 = vadd.f32 0.0, %v1215
        %v1217 = vpop.f32.mrb[0].mxu0
        %1218 = vmatprep.mubr.f32.mxu0 0.0
        %1219 = vmatmul.mubr.f32.gmra.mrb[0].mxu0 %v880
        %v1220 = vpop.f32.mrb[0].mxu0
        %v1221 = vadd.f32 0.0, %v1220
        %v1222 = vpop.f32.mrb[0].mxu0
        %1223 = vdwg.mxu0
        %1224 = vmatprep.subr.mxu0 0.0
        %1225 = vmatpush1.msra.mxu0 %v1216
        %1226 = vmatprep.subr.mxu0 0.0
        %1227 = vmatpush1.msra.mxu0 %v1221
        %1228 = vmatprep.subr.mxu0 0.0
        %1229 = vmatpush1.msra.mxu0 0.0
        %1230 = vmatprep.subr.mxu0 0.0
        %1231 = vmatpush1.msra.mxu0 0.0
        %1232 = vmatprep.subr.mxu0 0.0
        %1233 = vmatpush1.msra.mxu0 0.0
        %1234 = vmatprep.subr.mxu0 0.0
        %1235 = vmatpush1.msra.mxu0 0.0
        %1236 = vmatprep.subr.mxu0 0.0
        %1237 = vmatpush1.msra.mxu0 0.0
        %1238 = vmatprep.subr.mxu0 0.0
        %1239 = vmatpush1.msra.mxu0 0.0
        %1240 = vmatprep.subr.mxu0 0.0
        %1241 = vmatpush1.msra.mxu0 0.0
        %1242 = vmatprep.subr.mxu0 0.0
        %1243 = vmatpush1.msra.mxu0 0.0
        %1244 = vmatprep.subr.mxu0 0.0
        %1245 = vmatpush1.msra.mxu0 0.0
        %1246 = vmatprep.subr.mxu0 0.0
        %1247 = vmatpush1.msra.mxu0 0.0
        %1248 = vmatprep.subr.mxu0 0.0
        %1249 = vmatpush1.msra.mxu0 0.0
        %1250 = vmatprep.subr.mxu0 0.0
        %1251 = vmatpush1.msra.mxu0 0.0
        %1252 = vmatprep.subr.mxu0 0.0
        %1253 = vmatpush1.msra.mxu0 0.0
        %1254 = vmatprep.subr.mxu0 0.0
        %1255 = vmatpush1.msra.mxu0 0.0
        %1256 = vmatprep.subr.mxu0 0.0
        %1257 = vmatpush1.msra.mxu0 0.0
        %1258 = vmatprep.subr.mxu0 0.0
        %1259 = vmatpush1.msra.mxu0 0.0
        %1260 = vmatprep.subr.mxu0 0.0
        %1261 = vmatpush1.msra.mxu0 0.0
        %1262 = vmatprep.subr.mxu0 0.0
        %1263 = vmatpush1.msra.mxu0 0.0
        %1264 = vmatprep.subr.mxu0 0.0
        %1265 = vmatpush1.msra.mxu0 0.0
        %1266 = vmatprep.subr.mxu0 0.0
        %1267 = vmatpush1.msra.mxu0 0.0
        %1268 = vmatprep.subr.mxu0 0.0
        %1269 = vmatpush1.msra.mxu0 0.0
        %1270 = vmatprep.subr.mxu0 0.0
        %1271 = vmatpush1.msra.mxu0 0.0
        %1272 = vmatprep.subr.mxu0 0.0
        %1273 = vmatpush1.msra.mxu0 0.0
        %1274 = vmatprep.subr.mxu0 0.0
        %1275 = vmatpush1.msra.mxu0 0.0
        %1276 = vmatprep.subr.mxu0 0.0
        %1277 = vmatpush1.msra.mxu0 0.0
        %1278 = vmatprep.subr.mxu0 0.0
        %1279 = vmatpush1.msra.mxu0 0.0
        %1280 = vmatprep.subr.mxu0 0.0
        %1281 = vmatpush1.msra.mxu0 0.0
        %1282 = vmatprep.subr.mxu0 0.0
        %1283 = vmatpush1.msra.mxu0 0.0
        %1284 = vmatprep.subr.mxu0 0.0
        %1285 = vmatpush1.msra.mxu0 0.0
        %1286 = vmatprep.subr.mxu0 0.0
        %1287 = vmatpush1.msra.mxu0 0.0
        %1288 = vmatprep.mubr.f32.mxu0 0.0
        %1289 = vmatmul.mubr.f32.gmra.mrb[0].mxu0 %v769
        %v1290 = vpop.f32.mrb[0].mxu0
        %v1291 = vadd.f32 0.0, %v1290
        %v1292 = vpop.f32.mrb[0].mxu0
        %1293 = vmatprep.mubr.f32.mxu0 0.0
        %1294 = vmatmul.mubr.f32.gmra.mrb[0].mxu0 %v772
        %v1295 = vpop.f32.mrb[0].mxu0
        %v1296 = vadd.f32 0.0, %v1295
        %v1297 = vpop.f32.mrb[0].mxu0
        %1298 = vdwg.mxu0
        %v1299 = vadd.f32 %v1128, %v1291
        %v1300 = vadd.f32 %v1129, %v1296
        %v1301 = vmul.f32 %v849, %v1299
        %v1302 = vmul.f32 %v850, %v1300
        %1303 = vst.msk [vmem:[%s340] sm:$0xff] %vm413, %v1301
        %1304 = vst.msk [vmem:[%s340 + $0x8] sm:$0xff] %vm413, %v1302
        %v1305 = vsel %vm413, %v1301, 0.0
        %1306 = vadd.xlane.f32.xlu0 %v1305
        %v1307 = vpop.xlane.xlu0 %1306
        %v1308 = vsel %vm413, %v1302, 0.0
        %1309 = vadd.xlane.f32.xlu0 %v1308
        %v1310 = vpop.xlane.xlu0 %1309
        %v1311 = vadd.f32 %v1307, %v1310
        %v1312 = vrot.slane %v1311, 4
        %v1313 = vadd.f32 %v1311, %v1312
        %v1314 = vrot.slane %v1313, 2
        %v1315 = vadd.f32 %v1313, %v1314
        %v1316 = vrot.slane %v1315, 1
        %v1317 = vadd.f32 %v1315, %v1316
        %v1318 = vmul.f32 %v1317, 0.00390625
        %vm1319 = vcmask 0
        %1320 = vst.msk [vmem:[%s347] sm:$0x1] %vm1319, %v1318
        %p1321 = scmp.lt.s32.totalorder %s23, 1
        %s1322 = scalar_select %p1321, %s23, 1
        %p1323 = scmp.lt.s32.totalorder %s24, 3
        %s1324 = scalar_select %p1323, %s24, 3
        %s1325 = smul.addr %s1324, 2
        %s1326 = smul.addr %s1322, 8
        %s1327 = sadd.s32 %s1325, %s1326
        %s1328 = smul.addr %s1327, 8
        %s1329 = scalar_lea.vmem %s4, %s1328
        %p1330 = scmp.lt.s32.totalorder %s23, 1
        %s1331 = scalar_select %p1330, %s23, 1
        %p1332 = scmp.lt.s32.totalorder %s24, 3
        %s1333 = scalar_select %p1332, %s24, 3
        %s1334 = smul.addr %s1331, 4
        %s1335 = sadd.s32 %s1333, %s1334
        %s1336 = scalar_lea.vmem %s5, %s1335
        // Predicated region
        $region45: #{nafblock_forward.4} parent=35 // pred_check
          %p1337 = pneg %p151
        $region46: #{nafblock_forward.4} parent=35 // pred_check_branch
          %1339 = sbr.rel (%p1337) target = $region48
        $region47: #{nafblock_forward.4} parent=35 // pred_region
          _
        $region48: #{nafblock_forward.4} parent=35 // pred_fallthru
          _
        // Predicated region
        $region49: #{nafblock_forward.4} parent=35 // pred_check
          %p1340 = pneg %p179
        $region50: #{nafblock_forward.4} parent=35 // pred_check_branch
          %1342 = sbr.rel (%p1340) target = $region52
        $region51: #{nafblock_forward.4} parent=35 // pred_region
          _
        $region52: #{nafblock_forward.4} parent=35 // pred_fallthru
          _
      $region36: #{nafblock_forward.4} parent=5 // pred_fallthru
        _
      %p1343 = scmp.le.s32.totalorder 2, %s14
      // Predicated region
      $region53: #{nafblock_forward.4} parent=5 // pred_check
        %p1344 = pneg %p1343
      $region54: #{nafblock_forward.4} parent=5 // pred_check_branch
        %1346 = sbr.rel (%p1344) target = $region56
      $region55: #{nafblock_forward.4} parent=5 // pred_region
        %s1347 = ssub.s32 %s14, 2
        // Predicated region
        $region57: #{nafblock_forward.4} parent=55 // pred_check
          %p1348 = pneg %p157
        $region58: #{nafblock_forward.4} parent=55 // pred_check_branch
          %1350 = sbr.rel (%p1348) target = $region60
        $region59: #{nafblock_forward.4} parent=55 // pred_region
          %p1351 = scmp.lt.s32.totalorder %s25, 1
          %s1352 = scalar_select %p1351, %s25, 1
          %p1353 = scmp.lt.s32.totalorder %s26, 3
          %s1354 = scalar_select %p1353, %s26, 3
          %s1355 = smul.addr %s1354, 2
          %s1356 = smul.addr %s1352, 8
          %s1357 = sadd.s32 %s1355, %s1356
          %s1358 = smul.addr %s1357, 8
          %s1359 = scalar_lea.vmem %s4, %s1358
        $region60: #{nafblock_forward.4} parent=55 // pred_fallthru
          _
        // Predicated region
        $region61: #{nafblock_forward.4} parent=55 // pred_check
          %p1360 = pneg %p185
        $region62: #{nafblock_forward.4} parent=55 // pred_check_branch
          %1362 = sbr.rel (%p1360) target = $region64
        $region63: #{nafblock_forward.4} parent=55 // pred_region
          %p1363 = scmp.lt.s32.totalorder %s25, 1
          %s1364 = scalar_select %p1363, %s25, 1
          %p1365 = scmp.lt.s32.totalorder %s26, 3
          %s1366 = scalar_select %p1365, %s26, 3
          %s1367 = smul.addr %s1364, 4
          %s1368 = sadd.s32 %s1366, %s1367
          %s1369 = scalar_lea.vmem %s5, %s1368
        $region64: #{nafblock_forward.4} parent=55 // pred_fallthru
          _
      $region56: #{nafblock_forward.4} parent=5 // pred_fallthru
        _
    $region6: #{nafblock_forward.4} parent=1 // loop_footer
      %s18 = sadd.s32 1, %s14
    $region7: #{nafblock_forward.4} parent=1 // loop_footer_branch
      %13 = sbr.rel target = $region3
    $region8: #{nafblock_forward.4} parent=1 // loop_exit
      _
    %1370 = vsyncpa [#allocation3], 1
    %s1371 = scalar_lea.sflag [#allocation3], 1
    %1372 = vsyncpa %s1371, 1
    %1373 = vsyncpa [#allocation5], 1

// kernel: nafblock_forward.5
$region0: #{nafblock_forward.5}
  #allocation0 [shape = 'u32[]', space=smem, size = 0x4, offset = 0x4, fixed_abs, tag = 'smem constant byte address 0x4 - core index']
  #allocation1 [shape = 'u32[144,128]{1,0:T(1,128)}', space=vmem, size = 0x12000, scoped, tag = 'internal scratch']
  %s0 = inlined_call_operand.vmem [shape: f32[2,4,256], index: 0, kind: input, shape index: {}]
  %s1 = inlined_call_operand.vmem [shape: f32[2,4,256], index: 1, kind: input, shape index: {}]
  %s2 = inlined_call_operand.vmem [shape: f32[2,1,4], index: 2, kind: input, shape index: {}]
  %s3 = inlined_call_operand.vmem [shape: f32[4,4], index: 3, kind: input, shape index: {}]
  %s4 = inlined_call_operand.vmem [shape: f32[4,1], index: 4, kind: input, shape index: {}]
  %s5 = inlined_call_operand.vmem [shape: f32[4,4], index: 5, kind: input, shape index: {}]
  %s6 = inlined_call_operand.vmem [shape: f32[4,1], index: 6, kind: input, shape index: {}]
  %s7 = inlined_call_operand.vmem [shape: f32[4,1], index: 7, kind: input, shape index: {}]
  %s8 = inlined_call_operand.vmem [shape: f32[4,1], index: 8, kind: input, shape index: {}]
  %s9 = inlined_call_operand.vmem [shape: f32[4,4], index: 9, kind: input, shape index: {}]
  %s10 = inlined_call_operand.vmem [shape: f32[4,1], index: 10, kind: input, shape index: {}]
  %s11 = inlined_call_operand.vmem [shape: f32[4,4], index: 11, kind: input, shape index: {}]
  %s12 = inlined_call_operand.vmem [shape: f32[4,1], index: 12, kind: input, shape index: {}]
  %s13 = inlined_call_operand.vmem [shape: f32[4,4], index: 13, kind: input, shape index: {}]
  %s14 = inlined_call_operand.vmem [shape: f32[4,1], index: 14, kind: input, shape index: {}]
  %s15 = inlined_call_operand.vmem [shape: f32[4,1], index: 15, kind: input, shape index: {}]
  %s16 = inlined_call_operand.vmem [shape: f32[2,4,256], index: 16, kind: output, shape index: {}]
  %s17 = sld [smem:[#allocation0]]
  $region97: #{nafblock_forward.5} parent=0
    _
  %s19 = ssub.s32 1, %s17
  %s20 = scalar_select 0, %s19, %s17
  loop: start=0, step=1, limit=4
  $region2: #{nafblock_forward.5} parent=0 // loop_pre_header
    _
  $region3: #{nafblock_forward.5} parent=0 // loop_header
    %s22 = sphi 0, %s26
    %p23 = scmp.ge.s32.totalorder %s22, 4
    %s29 = sphi 0, %s41
    %s30 = sphi 0, %s37
    %s31 = sphi 0, %s29
    %s32 = sphi 0, %s30
    %s33 = sphi 0, %s31
    %s34 = sphi 0, %s32
    %s46 = sphi 0, %s48
    %s49 = sphi 0, %s46
    %s50 = sphi 0, %s49
    %s66 = sphi 0, %s50
    %s74 = sphi 0, %s76
    %s77 = sphi 0, %s74
    %s78 = sphi 0, %s77
    %s94 = sphi 0, %s78
    %s100 = sphi 0, %s102
    %s103 = sphi 0, %s100
    %s104 = sphi 0, %s103
    %s120 = sphi 0, %s104
    %s124 = sphi 0, %s124
    %s126 = sphi 0, %s124
    %s127 = sphi 0, %s126
    %s141 = sphi 0, %s127
    %s145 = sphi 0, %s145
    %s147 = sphi 0, %s145
    %s148 = sphi 0, %s147
    %s162 = sphi 0, %s148
    %s166 = sphi 0, %s166
    %s168 = sphi 0, %s166
    %s169 = sphi 0, %s168
    %s183 = sphi 0, %s169
    %s187 = sphi 0, %s187
    %s189 = sphi 0, %s187
    %s190 = sphi 0, %s189
    %s204 = sphi 0, %s190
    %s208 = sphi 0, %s208
    %s210 = sphi 0, %s208
    %s211 = sphi 0, %s210
    %s225 = sphi 0, %s211
    %s229 = sphi 0, %s229
    %s231 = sphi 0, %s229
    %s232 = sphi 0, %s231
    %s246 = sphi 0, %s232
    %s250 = sphi 0, %s250
    %s252 = sphi 0, %s250
    %s253 = sphi 0, %s252
    %s267 = sphi 0, %s253
    %s271 = sphi 0, %s271
    %s273 = sphi 0, %s271
    %s274 = sphi 0, %s273
    %s288 = sphi 0, %s274
    %s292 = sphi 0, %s292
    %s294 = sphi 0, %s292
    %s295 = sphi 0, %s294
    %s309 = sphi 0, %s295
    %s313 = sphi 0, %s313
    %s315 = sphi 0, %s313
    %s316 = sphi 0, %s315
    %s330 = sphi 0, %s316
    %s334 = sphi 0, %s334
    %s336 = sphi 0, %s334
    %s337 = sphi 0, %s336
    %s351 = sphi 0, %s337
    %s355 = sphi 0, %s355
    %s357 = sphi 0, %s355
    %s358 = sphi 0, %s357
    %s372 = sphi 0, %s358
    %s376 = sphi 0, %s376
    %s378 = sphi 0, %s376
    %s379 = sphi 0, %s378
    %s393 = sphi 0, %s379
    %s401 = sphi 0, %s403
    %s404 = sphi 0, %s401
    %s405 = sphi 0, %s404
    %s421 = sphi 0, %s405
  $region4: #{nafblock_forward.5} parent=0 // loop_header_branch
    %25 = sbr.rel (%p23) target = $region8
  $region5: #{nafblock_forward.5} parent=0 // loop_body
    %s27 = ssub.s32 %s22, 1
    %s28 = ssub.s32 %s22, 2
    %s35 = sadd.s32 1, %s30
    %p36 = scmp.ge.s32.totalorder %s35, 1
    %s37 = scalar_select %p36, 0, %s35
    %s38 = sadd.s32 1, %s29
    %s39 = scalar_select %p36, %s38, %s29
    %p40 = scmp.ge.s32.totalorder %s39, 2
    %s41 = scalar_select %p40, 0, %s39
    %s42 = ssub.s32 %s29, %s41
    %s43 = ssub.s32 %s30, %s37
    %s44 = sor.u32 %s42, %s43
    %p45 = scmp.eq.s32.totalorder %s44, 0
    %s47 = sadd.s32 %s46, 1
    %s48 = scalar_select %p45, %s46, %s47
    %p51 = pneg %p45
    %p52 = scmp.eq.s32.totalorder %s22, 1
    %p53 = por %p51, %p52
    %p54 = scmp.ne.s32.totalorder %s46, %s49
    %p55 = scmp.eq.s32.totalorder %s22, 0
    %p56 = por %p54, %p55
    %p57 = scmp.ne.s32.totalorder %s46, %s49
    %p58 = scmp.eq.s32.totalorder %s27, 1
    %p59 = por %p57, %p58
    %p60 = scmp.ne.s32.totalorder %s49, %s50
    %p61 = scmp.eq.s32.totalorder %s27, 0
    %p62 = por %p60, %p61
    %p63 = scmp.ne.s32.totalorder %s49, %s50
    %p64 = scmp.eq.s32.totalorder %s28, 1
    %p65 = por %p63, %p64
    %p67 = scmp.ne.s32.totalorder %s50, %s66
    %p68 = scmp.eq.s32.totalorder %s28, 0
    %p69 = por %p67, %p68
    %s70 = ssub.s32 %s29, %s41
    %s71 = ssub.s32 %s30, %s37
    %s72 = sor.u32 %s70, %s71
    %p73 = scmp.eq.s32.totalorder %s72, 0
    %s75 = sadd.s32 %s74, 1
    %s76 = scalar_select %p73, %s74, %s75
    %p79 = pneg %p73
    %p80 = scmp.eq.s32.totalorder %s22, 1
    %p81 = por %p79, %p80
    %p82 = scmp.ne.s32.totalorder %s74, %s77
    %p83 = scmp.eq.s32.totalorder %s22, 0
    %p84 = por %p82, %p83
    %p85 = scmp.ne.s32.totalorder %s74, %s77
    %p86 = scmp.eq.s32.totalorder %s27, 1
    %p87 = por %p85, %p86
    %p88 = scmp.ne.s32.totalorder %s77, %s78
    %p89 = scmp.eq.s32.totalorder %s27, 0
    %p90 = por %p88, %p89
    %p91 = scmp.ne.s32.totalorder %s77, %s78
    %p92 = scmp.eq.s32.totalorder %s28, 1
    %p93 = por %p91, %p92
    %p95 = scmp.ne.s32.totalorder %s78, %s94
    %p96 = scmp.eq.s32.totalorder %s28, 0
    %p97 = por %p95, %p96
    %s98 = ssub.s32 %s29, %s41
    %p99 = scmp.eq.s32.totalorder %s98, 0
    %s101 = sadd.s32 %s100, 1
    %s102 = scalar_select %p99, %s100, %s101
    %p105 = pneg %p99
    %p106 = scmp.eq.s32.totalorder %s22, 1
    %p107 = por %p105, %p106
    %p108 = scmp.ne.s32.totalorder %s100, %s103
    %p109 = scmp.eq.s32.totalorder %s22, 0
    %p110 = por %p108, %p109
    %p111 = scmp.ne.s32.totalorder %s100, %s103
    %p112 = scmp.eq.s32.totalorder %s27, 1
    %p113 = por %p111, %p112
    %p114 = scmp.ne.s32.totalorder %s103, %s104
    %p115 = scmp.eq.s32.totalorder %s27, 0
    %p116 = por %p114, %p115
    %p117 = scmp.ne.s32.totalorder %s103, %s104
    %p118 = scmp.eq.s32.totalorder %s28, 1
    %p119 = por %p117, %p118
    %p121 = scmp.ne.s32.totalorder %s104, %s120
    %p122 = scmp.eq.s32.totalorder %s28, 0
    %p123 = por %p121, %p122
    %s125 = sadd.s32 %s124, 1
    %p128 = scmp.eq.s32.totalorder %s22, 1
    %p129 = scmp.ne.s32.totalorder %s124, %s126
    %p130 = scmp.eq.s32.totalorder %s22, 0
    %p131 = por %p129, %p130
    %p132 = scmp.ne.s32.totalorder %s124, %s126
    %p133 = scmp.eq.s32.totalorder %s27, 1
    %p134 = por %p132, %p133
    %p135 = scmp.ne.s32.totalorder %s126, %s127
    %p136 = scmp.eq.s32.totalorder %s27, 0
    %p137 = por %p135, %p136
    %p138 = scmp.ne.s32.totalorder %s126, %s127
    %p139 = scmp.eq.s32.totalorder %s28, 1
    %p140 = por %p138, %p139
    %p142 = scmp.ne.s32.totalorder %s127, %s141
    %p143 = scmp.eq.s32.totalorder %s28, 0
    %p144 = por %p142, %p143
    %s146 = sadd.s32 %s145, 1
    %p149 = scmp.eq.s32.totalorder %s22, 1
    %p150 = scmp.ne.s32.totalorder %s145, %s147
    %p151 = scmp.eq.s32.totalorder %s22, 0
    %p152 = por %p150, %p151
    %p153 = scmp.ne.s32.totalorder %s145, %s147
    %p154 = scmp.eq.s32.totalorder %s27, 1
    %p155 = por %p153, %p154
    %p156 = scmp.ne.s32.totalorder %s147, %s148
    %p157 = scmp.eq.s32.totalorder %s27, 0
    %p158 = por %p156, %p157
    %p159 = scmp.ne.s32.totalorder %s147, %s148
    %p160 = scmp.eq.s32.totalorder %s28, 1
    %p161 = por %p159, %p160
    %p163 = scmp.ne.s32.totalorder %s148, %s162
    %p164 = scmp.eq.s32.totalorder %s28, 0
    %p165 = por %p163, %p164
    %s167 = sadd.s32 %s166, 1
    %p170 = scmp.eq.s32.totalorder %s22, 1
    %p171 = scmp.ne.s32.totalorder %s166, %s168
    %p172 = scmp.eq.s32.totalorder %s22, 0
    %p173 = por %p171, %p172
    %p174 = scmp.ne.s32.totalorder %s166, %s168
    %p175 = scmp.eq.s32.totalorder %s27, 1
    %p176 = por %p174, %p175
    %p177 = scmp.ne.s32.totalorder %s168, %s169
    %p178 = scmp.eq.s32.totalorder %s27, 0
    %p179 = por %p177, %p178
    %p180 = scmp.ne.s32.totalorder %s168, %s169
    %p181 = scmp.eq.s32.totalorder %s28, 1
    %p182 = por %p180, %p181
    %p184 = scmp.ne.s32.totalorder %s169, %s183
    %p185 = scmp.eq.s32.totalorder %s28, 0
    %p186 = por %p184, %p185
    %s188 = sadd.s32 %s187, 1
    %p191 = scmp.eq.s32.totalorder %s22, 1
    %p192 = scmp.ne.s32.totalorder %s187, %s189
    %p193 = scmp.eq.s32.totalorder %s22, 0
    %p194 = por %p192, %p193
    %p195 = scmp.ne.s32.totalorder %s187, %s189
    %p196 = scmp.eq.s32.totalorder %s27, 1
    %p197 = por %p195, %p196
    %p198 = scmp.ne.s32.totalorder %s189, %s190
    %p199 = scmp.eq.s32.totalorder %s27, 0
    %p200 = por %p198, %p199
    %p201 = scmp.ne.s32.totalorder %s189, %s190
    %p202 = scmp.eq.s32.totalorder %s28, 1
    %p203 = por %p201, %p202
    %p205 = scmp.ne.s32.totalorder %s190, %s204
    %p206 = scmp.eq.s32.totalorder %s28, 0
    %p207 = por %p205, %p206
    %s209 = sadd.s32 %s208, 1
    %p212 = scmp.eq.s32.totalorder %s22, 1
    %p213 = scmp.ne.s32.totalorder %s208, %s210
    %p214 = scmp.eq.s32.totalorder %s22, 0
    %p215 = por %p213, %p214
    %p216 = scmp.ne.s32.totalorder %s208, %s210
    %p217 = scmp.eq.s32.totalorder %s27, 1
    %p218 = por %p216, %p217
    %p219 = scmp.ne.s32.totalorder %s210, %s211
    %p220 = scmp.eq.s32.totalorder %s27, 0
    %p221 = por %p219, %p220
    %p222 = scmp.ne.s32.totalorder %s210, %s211
    %p223 = scmp.eq.s32.totalorder %s28, 1
    %p224 = por %p222, %p223
    %p226 = scmp.ne.s32.totalorder %s211, %s225
    %p227 = scmp.eq.s32.totalorder %s28, 0
    %p228 = por %p226, %p227
    %s230 = sadd.s32 %s229, 1
    %p233 = scmp.eq.s32.totalorder %s22, 1
    %p234 = scmp.ne.s32.totalorder %s229, %s231
    %p235 = scmp.eq.s32.totalorder %s22, 0
    %p236 = por %p234, %p235
    %p237 = scmp.ne.s32.totalorder %s229, %s231
    %p238 = scmp.eq.s32.totalorder %s27, 1
    %p239 = por %p237, %p238
    %p240 = scmp.ne.s32.totalorder %s231, %s232
    %p241 = scmp.eq.s32.totalorder %s27, 0
    %p242 = por %p240, %p241
    %p243 = scmp.ne.s32.totalorder %s231, %s232
    %p244 = scmp.eq.s32.totalorder %s28, 1
    %p245 = por %p243, %p244
    %p247 = scmp.ne.s32.totalorder %s232, %s246
    %p248 = scmp.eq.s32.totalorder %s28, 0
    %p249 = por %p247, %p248
    %s251 = sadd.s32 %s250, 1
    %p254 = scmp.eq.s32.totalorder %s22, 1
    %p255 = scmp.ne.s32.totalorder %s250, %s252
    %p256 = scmp.eq.s32.totalorder %s22, 0
    %p257 = por %p255, %p256
    %p258 = scmp.ne.s32.totalorder %s250, %s252
    %p259 = scmp.eq.s32.totalorder %s27, 1
    %p260 = por %p258, %p259
    %p261 = scmp.ne.s32.totalorder %s252, %s253
    %p262 = scmp.eq.s32.totalorder %s27, 0
    %p263 = por %p261, %p262
    %p264 = scmp.ne.s32.totalorder %s252, %s253
    %p265 = scmp.eq.s32.totalorder %s28, 1
    %p266 = por %p264, %p265
    %p268 = scmp.ne.s32.totalorder %s253, %s267
    %p269 = scmp.eq.s32.totalorder %s28, 0
    %p270 = por %p268, %p269
    %s272 = sadd.s32 %s271, 1
    %p275 = scmp.eq.s32.totalorder %s22, 1
    %p276 = scmp.ne.s32.totalorder %s271, %s273
    %p277 = scmp.eq.s32.totalorder %s22, 0
    %p278 = por %p276, %p277
    %p279 = scmp.ne.s32.totalorder %s271, %s273
    %p280 = scmp.eq.s32.totalorder %s27, 1
    %p281 = por %p279, %p280
    %p282 = scmp.ne.s32.totalorder %s273, %s274
    %p283 = scmp.eq.s32.totalorder %s27, 0
    %p284 = por %p282, %p283
    %p285 = scmp.ne.s32.totalorder %s273, %s274
    %p286 = scmp.eq.s32.totalorder %s28, 1
    %p287 = por %p285, %p286
    %p289 = scmp.ne.s32.totalorder %s274, %s288
    %p290 = scmp.eq.s32.totalorder %s28, 0
    %p291 = por %p289, %p290
    %s293 = sadd.s32 %s292, 1
    %p296 = scmp.eq.s32.totalorder %s22, 1
    %p297 = scmp.ne.s32.totalorder %s292, %s294
    %p298 = scmp.eq.s32.totalorder %s22, 0
    %p299 = por %p297, %p298
    %p300 = scmp.ne.s32.totalorder %s292, %s294
    %p301 = scmp.eq.s32.totalorder %s27, 1
    %p302 = por %p300, %p301
    %p303 = scmp.ne.s32.totalorder %s294, %s295
    %p304 = scmp.eq.s32.totalorder %s27, 0
    %p305 = por %p303, %p304
    %p306 = scmp.ne.s32.totalorder %s294, %s295
    %p307 = scmp.eq.s32.totalorder %s28, 1
    %p308 = por %p306, %p307
    %p310 = scmp.ne.s32.totalorder %s295, %s309
    %p311 = scmp.eq.s32.totalorder %s28, 0
    %p312 = por %p310, %p311
    %s314 = sadd.s32 %s313, 1
    %p317 = scmp.eq.s32.totalorder %s22, 1
    %p318 = scmp.ne.s32.totalorder %s313, %s315
    %p319 = scmp.eq.s32.totalorder %s22, 0
    %p320 = por %p318, %p319
    %p321 = scmp.ne.s32.totalorder %s313, %s315
    %p322 = scmp.eq.s32.totalorder %s27, 1
    %p323 = por %p321, %p322
    %p324 = scmp.ne.s32.totalorder %s315, %s316
    %p325 = scmp.eq.s32.totalorder %s27, 0
    %p326 = por %p324, %p325
    %p327 = scmp.ne.s32.totalorder %s315, %s316
    %p328 = scmp.eq.s32.totalorder %s28, 1
    %p329 = por %p327, %p328
    %p331 = scmp.ne.s32.totalorder %s316, %s330
    %p332 = scmp.eq.s32.totalorder %s28, 0
    %p333 = por %p331, %p332
    %s335 = sadd.s32 %s334, 1
    %p338 = scmp.eq.s32.totalorder %s22, 1
    %p339 = scmp.ne.s32.totalorder %s334, %s336
    %p340 = scmp.eq.s32.totalorder %s22, 0
    %p341 = por %p339, %p340
    %p342 = scmp.ne.s32.totalorder %s334, %s336
    %p343 = scmp.eq.s32.totalorder %s27, 1
    %p344 = por %p342, %p343
    %p345 = scmp.ne.s32.totalorder %s336, %s337
    %p346 = scmp.eq.s32.totalorder %s27, 0
    %p347 = por %p345, %p346
    %p348 = scmp.ne.s32.totalorder %s336, %s337
    %p349 = scmp.eq.s32.totalorder %s28, 1
    %p350 = por %p348, %p349
    %p352 = scmp.ne.s32.totalorder %s337, %s351
    %p353 = scmp.eq.s32.totalorder %s28, 0
    %p354 = por %p352, %p353
    %s356 = sadd.s32 %s355, 1
    %p359 = scmp.eq.s32.totalorder %s22, 1
    %p360 = scmp.ne.s32.totalorder %s355, %s357
    %p361 = scmp.eq.s32.totalorder %s22, 0
    %p362 = por %p360, %p361
    %p363 = scmp.ne.s32.totalorder %s355, %s357
    %p364 = scmp.eq.s32.totalorder %s27, 1
    %p365 = por %p363, %p364
    %p366 = scmp.ne.s32.totalorder %s357, %s358
    %p367 = scmp.eq.s32.totalorder %s27, 0
    %p368 = por %p366, %p367
    %p369 = scmp.ne.s32.totalorder %s357, %s358
    %p370 = scmp.eq.s32.totalorder %s28, 1
    %p371 = por %p369, %p370
    %p373 = scmp.ne.s32.totalorder %s358, %s372
    %p374 = scmp.eq.s32.totalorder %s28, 0
    %p375 = por %p373, %p374
    %s377 = sadd.s32 %s376, 1
    %p380 = scmp.eq.s32.totalorder %s22, 1
    %p381 = scmp.ne.s32.totalorder %s376, %s378
    %p382 = scmp.eq.s32.totalorder %s22, 0
    %p383 = por %p381, %p382
    %p384 = scmp.ne.s32.totalorder %s376, %s378
    %p385 = scmp.eq.s32.totalorder %s27, 1
    %p386 = por %p384, %p385
    %p387 = scmp.ne.s32.totalorder %s378, %s379
    %p388 = scmp.eq.s32.totalorder %s27, 0
    %p389 = por %p387, %p388
    %p390 = scmp.ne.s32.totalorder %s378, %s379
    %p391 = scmp.eq.s32.totalorder %s28, 1
    %p392 = por %p390, %p391
    %p394 = scmp.ne.s32.totalorder %s379, %s393
    %p395 = scmp.eq.s32.totalorder %s28, 0
    %p396 = por %p394, %p395
    %s397 = ssub.s32 %s29, %s41
    %s398 = ssub.s32 %s30, %s37
    %s399 = sor.u32 %s397, %s398
    %p400 = scmp.eq.s32.totalorder %s399, 0
    %s402 = sadd.s32 %s401, 1
    %s403 = scalar_select %p400, %s401, %s402
    %p406 = pneg %p400
    %p407 = scmp.eq.s32.totalorder %s22, 1
    %p408 = por %p406, %p407
    %p409 = scmp.ne.s32.totalorder %s401, %s404
    %p410 = scmp.eq.s32.totalorder %s22, 0
    %p411 = por %p409, %p410
    %p412 = scmp.ne.s32.totalorder %s401, %s404
    %p413 = scmp.eq.s32.totalorder %s27, 1
    %p414 = por %p412, %p413
    %p415 = scmp.ne.s32.totalorder %s404, %s405
    %p416 = scmp.eq.s32.totalorder %s27, 0
    %p417 = por %p415, %p416
    %p418 = scmp.ne.s32.totalorder %s404, %s405
    %p419 = scmp.eq.s32.totalorder %s28, 1
    %p420 = por %p418, %p419
    %p422 = scmp.ne.s32.totalorder %s405, %s421
    %p423 = scmp.eq.s32.totalorder %s28, 0
    %p424 = por %p422, %p423
    %p425 = scmp.le.s32.totalorder 1, %s22
    %p426 = scmp.lt.s32.totalorder %s22, 3
    %p427 = pnand %p425, %p426
    %p428 = pneg %p427
    // Predicated region
    $region9: #{nafblock_forward.5} parent=5 // pred_check
      _
    $region10: #{nafblock_forward.5} parent=5 // pred_check_branch
      %430 = sbr.rel (%p427) target = $region12
    $region11: #{nafblock_forward.5} parent=5 // pred_region
      %s431 = ssub.s32 %s22, 1
      // Predicated region
      $region13: #{nafblock_forward.5} parent=11 // pred_check
        %p432 = pneg %p137
      $region14: #{nafblock_forward.5} parent=11 // pred_check_branch
        %434 = sbr.rel (%p432) target = $region16
      $region15: #{nafblock_forward.5} parent=11 // pred_region
        _
      $region16: #{nafblock_forward.5} parent=11 // pred_fallthru
        _
      // Predicated region
      $region17: #{nafblock_forward.5} parent=11 // pred_check
        %p435 = pneg %p158
      $region18: #{nafblock_forward.5} parent=11 // pred_check_branch
        %437 = sbr.rel (%p435) target = $region20
      $region19: #{nafblock_forward.5} parent=11 // pred_region
        _
      $region20: #{nafblock_forward.5} parent=11 // pred_fallthru
        _
      // Predicated region
      $region21: #{nafblock_forward.5} parent=11 // pred_check
        %p438 = pneg %p179
      $region22: #{nafblock_forward.5} parent=11 // pred_check_branch
        %440 = sbr.rel (%p438) target = $region24
      $region23: #{nafblock_forward.5} parent=11 // pred_region
        _
      $region24: #{nafblock_forward.5} parent=11 // pred_fallthru
        _
      // Predicated region
      $region25: #{nafblock_forward.5} parent=11 // pred_check
        %p441 = pneg %p200
      $region26: #{nafblock_forward.5} parent=11 // pred_check_branch
        %443 = sbr.rel (%p441) target = $region28
      $region27: #{nafblock_forward.5} parent=11 // pred_region
        _
      $region28: #{nafblock_forward.5} parent=11 // pred_fallthru
        _
      // Predicated region
      $region29: #{nafblock_forward.5} parent=11 // pred_check
        %p444 = pneg %p221
      $region30: #{nafblock_forward.5} parent=11 // pred_check_branch
        %446 = sbr.rel (%p444) target = $region32
      $region31: #{nafblock_forward.5} parent=11 // pred_region
        _
      $region32: #{nafblock_forward.5} parent=11 // pred_fallthru
        _
      // Predicated region
      $region33: #{nafblock_forward.5} parent=11 // pred_check
        %p447 = pneg %p242
      $region34: #{nafblock_forward.5} parent=11 // pred_check_branch
        %449 = sbr.rel (%p447) target = $region36
      $region35: #{nafblock_forward.5} parent=11 // pred_region
        _
      $region36: #{nafblock_forward.5} parent=11 // pred_fallthru
        _
      // Predicated region
      $region37: #{nafblock_forward.5} parent=11 // pred_check
        %p450 = pneg %p263
      $region38: #{nafblock_forward.5} parent=11 // pred_check_branch
        %452 = sbr.rel (%p450) target = $region40
      $region39: #{nafblock_forward.5} parent=11 // pred_region
        _
      $region40: #{nafblock_forward.5} parent=11 // pred_fallthru
        _
      // Predicated region
      $region41: #{nafblock_forward.5} parent=11 // pred_check
        %p453 = pneg %p284
      $region42: #{nafblock_forward.5} parent=11 // pred_check_branch
        %455 = sbr.rel (%p453) target = $region44
      $region43: #{nafblock_forward.5} parent=11 // pred_region
        _
      $region44: #{nafblock_forward.5} parent=11 // pred_fallthru
        _
      // Predicated region
      $region45: #{nafblock_forward.5} parent=11 // pred_check
        %p456 = pneg %p305
      $region46: #{nafblock_forward.5} parent=11 // pred_check_branch
        %458 = sbr.rel (%p456) target = $region48
      $region47: #{nafblock_forward.5} parent=11 // pred_region
        _
      $region48: #{nafblock_forward.5} parent=11 // pred_fallthru
        _
      // Predicated region
      $region49: #{nafblock_forward.5} parent=11 // pred_check
        %p459 = pneg %p326
      $region50: #{nafblock_forward.5} parent=11 // pred_check_branch
        %461 = sbr.rel (%p459) target = $region52
      $region51: #{nafblock_forward.5} parent=11 // pred_region
        _
      $region52: #{nafblock_forward.5} parent=11 // pred_fallthru
        _
      // Predicated region
      $region53: #{nafblock_forward.5} parent=11 // pred_check
        %p462 = pneg %p347
      $region54: #{nafblock_forward.5} parent=11 // pred_check_branch
        %464 = sbr.rel (%p462) target = $region56
      $region55: #{nafblock_forward.5} parent=11 // pred_region
        _
      $region56: #{nafblock_forward.5} parent=11 // pred_fallthru
        _
      // Predicated region
      $region57: #{nafblock_forward.5} parent=11 // pred_check
        %p465 = pneg %p368
      $region58: #{nafblock_forward.5} parent=11 // pred_check_branch
        %467 = sbr.rel (%p465) target = $region60
      $region59: #{nafblock_forward.5} parent=11 // pred_region
        _
      $region60: #{nafblock_forward.5} parent=11 // pred_fallthru
        _
      // Predicated region
      $region61: #{nafblock_forward.5} parent=11 // pred_check
        %p468 = pneg %p389
      $region62: #{nafblock_forward.5} parent=11 // pred_check_branch
        %470 = sbr.rel (%p468) target = $region64
      $region63: #{nafblock_forward.5} parent=11 // pred_region
        _
      $region64: #{nafblock_forward.5} parent=11 // pred_fallthru
        _
    $region12: #{nafblock_forward.5} parent=5 // pred_fallthru
      _
    %p471 = scmp.lt.s32.totalorder %s22, 2
    // Predicated region
    $region65: #{nafblock_forward.5} parent=5 // pred_check
      %p472 = pneg %p471
    $region66: #{nafblock_forward.5} parent=5 // pred_check_branch
      %474 = sbr.rel (%p472) target = $region68
    $region67: #{nafblock_forward.5} parent=5 // pred_region
      // Predicated region
      $region69: #{nafblock_forward.5} parent=67 // pred_check
        %p475 = pneg %p56
      $region70: #{nafblock_forward.5} parent=67 // pred_check_branch
        %477 = sbr.rel (%p475) target = $region72
      $region71: #{nafblock_forward.5} parent=67 // pred_region
        %s478 = smul.u32 2, %s30
        %p479 = scmp.lt.s32.totalorder %s29, 1
        %s480 = scalar_select %p479, %s29, 1
        %p481 = scmp.lt.s32.totalorder %s478, 1
        %s482 = scalar_select %p481, %s478, 1
        %s483 = smul.addr %s480, 2
        %s484 = sadd.s32 %s482, %s483
        %s485 = smul.addr %s484, 4
        %s486 = scalar_lea.vmem %s0, %s485
        %s487 = smul.u32 2, %s30
      $region72: #{nafblock_forward.5} parent=67 // pred_fallthru
        _
      // Predicated region
      $region73: #{nafblock_forward.5} parent=67 // pred_check
        %p488 = pneg %p84
      $region74: #{nafblock_forward.5} parent=67 // pred_check_branch
        %490 = sbr.rel (%p488) target = $region76
      $region75: #{nafblock_forward.5} parent=67 // pred_region
        %s491 = smul.u32 2, %s30
        %p492 = scmp.lt.s32.totalorder %s29, 1
        %s493 = scalar_select %p492, %s29, 1
        %p494 = scmp.lt.s32.totalorder %s491, 1
        %s495 = scalar_select %p494, %s491, 1
        %s496 = smul.addr %s493, 2
        %s497 = sadd.s32 %s495, %s496
        %s498 = smul.addr %s497, 4
        %s499 = scalar_lea.vmem %s1, %s498
        %s500 = smul.u32 2, %s30
      $region76: #{nafblock_forward.5} parent=67 // pred_fallthru
        _
      // Predicated region
      $region77: #{nafblock_forward.5} parent=67 // pred_check
        %p501 = pneg %p110
      $region78: #{nafblock_forward.5} parent=67 // pred_check_branch
        %503 = sbr.rel (%p501) target = $region80
      $region79: #{nafblock_forward.5} parent=67 // pred_region
        %p504 = scmp.lt.s32.totalorder %s29, 1
        %s505 = scalar_select %p504, %s29, 1
        %s506 = scalar_lea.vmem %s2, %s505
      $region80: #{nafblock_forward.5} parent=67 // pred_fallthru
        _
    $region68: #{nafblock_forward.5} parent=5 // pred_fallthru
      _
    %p507 = scmp.le.s32.totalorder 1, %s22
    %p508 = scmp.lt.s32.totalorder %s22, 3
    %p509 = pnand %p507, %p508
    %p510 = pneg %p509
    // Predicated region
    $region81: #{nafblock_forward.5} parent=5 // pred_check
      _
    $region82: #{nafblock_forward.5} parent=5 // pred_check_branch
      %512 = sbr.rel (%p509) target = $region84
    $region83: #{nafblock_forward.5} parent=5 // pred_region
      %s513 = ssub.s32 %s22, 1
      %s514 = smul.u32 2, %s32
      %p515 = scmp.lt.s32.totalorder %s31, 1
      %s516 = scalar_select %p515, %s31, 1
      %p517 = scmp.lt.s32.totalorder %s514, 1
      %s518 = scalar_select %p517, %s514, 1
      %s519 = smul.addr %s516, 2
      %s520 = sadd.s32 %s518, %s519
      %s521 = smul.addr %s520, 4
      %s522 = scalar_lea.vmem %s0, %s521
      %p523 = pneg %p62
      %p524 = pneg %p59
      %s525 = smul.u32 2, %s32
      %p526 = scmp.lt.s32.totalorder %s31, 1
      %s527 = scalar_select %p526, %s31, 1
      %p528 = scmp.lt.s32.totalorder %s525, 1
      %s529 = scalar_select %p528, %s525, 1
      %s530 = smul.addr %s527, 2
      %s531 = sadd.s32 %s529, %s530
      %s532 = smul.addr %s531, 4
      %s533 = scalar_lea.vmem %s1, %s532
      %p534 = pneg %p90
      %p535 = pneg %p87
      %p536 = scmp.lt.s32.totalorder %s31, 1
      %s537 = scalar_select %p536, %s31, 1
      %s538 = scalar_lea.vmem %s2, %s537
      %p539 = pneg %p116
      %p540 = pneg %p113
      %p541 = pneg %p137
      %p542 = pneg %p134
      %p543 = pneg %p158
      %p544 = pneg %p155
      %p545 = pneg %p179
      %p546 = pneg %p176
      %p547 = pneg %p200
      %p548 = pneg %p197
      %p549 = pneg %p221
      %p550 = pneg %p218
      %p551 = pneg %p242
      %p552 = pneg %p239
      %p553 = pneg %p263
      %p554 = pneg %p260
      %p555 = pneg %p284
      %p556 = pneg %p281
      %p557 = pneg %p305
      %p558 = pneg %p302
      %p559 = pneg %p326
      %p560 = pneg %p323
      %p561 = pneg %p347
      %p562 = pneg %p344
      %p563 = pneg %p368
      %p564 = pneg %p365
      %p565 = pneg %p389
      %p566 = pneg %p386
      %p567 = pneg %p417
      %p568 = pneg %p414
      %s569 = smul.u32 2, %s32
      %p570 = scmp.lt.s32.totalorder %s31, 1
      %s571 = scalar_select %p570, %s31, 1
      %p572 = scmp.lt.s32.totalorder %s569, 1
      %s573 = scalar_select %p572, %s569, 1
      %s574 = smul.addr %s571, 2
      %s575 = sadd.s32 %s573, %s574
      %s576 = smul.addr %s575, 4
      %s577 = scalar_lea.vmem %s16, %s576
      %s578 = smul.u32 2, %s32
      %p579 = scmp.lt.s32.totalorder %s31, 1
      %s580 = scalar_select %p579, %s31, 1
      %p581 = scmp.lt.s32.totalorder %s578, 1
      %s582 = scalar_select %p581, %s578, 1
      %s583 = smul.addr %s580, 2
      %s584 = sadd.s32 %s582, %s583
      %s585 = smul.addr %s584, 4
      %s586 = scalar_lea.vmem %s0, %s585
      %s587 = smul.u32 2, %s32
      %s588 = smul.u32 2, %s32
      %p589 = scmp.lt.s32.totalorder %s31, 1
      %s590 = scalar_select %p589, %s31, 1
      %p591 = scmp.lt.s32.totalorder %s588, 1
      %s592 = scalar_select %p591, %s588, 1
      %s593 = smul.addr %s590, 2
      %s594 = sadd.s32 %s592, %s593
      %s595 = smul.addr %s594, 4
      %s596 = scalar_lea.vmem %s1, %s595
      %s597 = smul.u32 2, %s32
      %p598 = scmp.lt.s32.totalorder %s31, 1
      %s599 = scalar_select %p598, %s31, 1
      %s600 = scalar_lea.vmem %s2, %s599
      %s601 = smul.u32 2, %s32
      %p602 = scmp.lt.s32.totalorder %s31, 1
      %s603 = scalar_select %p602, %s31, 1
      %p604 = scmp.lt.s32.totalorder %s601, 1
      %s605 = scalar_select %p604, %s601, 1
      %s606 = smul.addr %s603, 2
      %s607 = sadd.s32 %s605, %s606
      %s608 = smul.addr %s607, 4
      %s609 = scalar_lea.vmem %s16, %s608
      %s610 = smul.u32 2, %s32
      %v611 = vld [vmem:[%s596] sm:$0xff]
      %v612 = vld [vmem:[%s600] sm:$0x1]
      %v613 = vld [vmem:[%s3] sm:$0xf]
      %v615 = vlaneseq
      %v616 = vshrl.u32 %v615, 7
      %v617 = vsub.s32 0, %v616
      %v618 = vrot.slane %v612, %v617
      %v620 = vmul.f32 %v613, %v618
      %vm621 = vcmask 27648
      %v622 = vsel %vm621, %v620, 0.0
      %623 = vadd.xlane.f32.xlu0 %v622
      %v624 = vpop.xlane.xlu0 %623
      %v625 = vld [vmem:[%s4] sm:$0xf]
      %v626 = vadd.f32 %v624, %v625
      %628 = vset.pattern.permute.xlu0 0
      %629 = vperm.xlu0 %628, %v626
      %v630 = vpop.permute.xlu0 %629
      %v632 = vunpack.c.l.s4 839922192
      %v633 = vunpack.c.0.s8 %v632
      %v634 = vlaneseq
      %v635 = vshrl.u32 %v634, 7
      %v636 = vsub.s32 %v633, %v635
      %v637 = vrot.slane %v630, %v636
      %v639 = vmul.f32 %v611, %v637
      %v640 = vld [vmem:[%s5] sm:$0xf]
      %v641 = vld [vmem:[%s6] sm:$0xf]
      %643 = vset.pattern.permute.xlu0 0
      %644 = vperm.xlu0 %643, %v641
      %v645 = vpop.permute.xlu0 %644
      %v648 = vcombine.high %v639, %v639
      %vm649 = vcmask 31744
      %v651 = vsel %vm649, %v640, 0
      %vm653 = vcmask 1043456
      %v654 = vsel %vm653, %v639, 0
      %v656 = vsel %vm653, %v648, 0
      %658 = vmatprep.subr.mxu0 %v656
      %659 = vmatpush1.msra.mxu0 %v654
      %660 = vmatprep.subr.mxu0 0.0
      %661 = vmatpush1.msra.mxu0 0.0
      %662 = vmatprep.subr.mxu0 0.0
      %663 = vmatpush1.msra.mxu0 0.0
      %664 = vmatprep.subr.mxu0 0.0
      %665 = vmatpush1.msra.mxu0 0.0
      %666 = vmatprep.subr.mxu0 0.0
      %667 = vmatpush1.msra.mxu0 0.0
      %668 = vmatprep.subr.mxu0 0.0
      %669 = vmatpush1.msra.mxu0 0.0
      %670 = vmatprep.subr.mxu0 0.0
      %671 = vmatpush1.msra.mxu0 0.0
      %672 = vmatprep.subr.mxu0 0.0
      %673 = vmatpush1.msra.mxu0 0.0
      %674 = vmatprep.subr.mxu0 0.0
      %675 = vmatpush1.msra.mxu0 0.0
      %676 = vmatprep.subr.mxu0 0.0
      %677 = vmatpush1.msra.mxu0 0.0
      %678 = vmatprep.subr.mxu0 0.0
      %679 = vmatpush1.msra.mxu0 0.0
      %680 = vmatprep.subr.mxu0 0.0
      %681 = vmatpush1.msra.mxu0 0.0
      %682 = vmatprep.subr.mxu0 0.0
      %683 = vmatpush1.msra.mxu0 0.0
      %684 = vmatprep.subr.mxu0 0.0
      %685 = vmatpush1.msra.mxu0 0.0
      %686 = vmatprep.subr.mxu0 0.0
      %687 = vmatpush1.msra.mxu0 0.0
      %688 = vmatprep.subr.mxu0 0.0
      %689 = vmatpush1.msra.mxu0 0.0
      %690 = vmatprep.subr.mxu0 0.0
      %691 = vmatpush1.msra.mxu0 0.0
      %692 = vmatprep.subr.mxu0 0.0
      %693 = vmatpush1.msra.mxu0 0.0
      %694 = vmatprep.subr.mxu0 0.0
      %695 = vmatpush1.msra.mxu0 0.0
      %696 = vmatprep.subr.mxu0 0.0
      %697 = vmatpush1.msra.mxu0 0.0
      %698 = vmatprep.subr.mxu0 0.0
      %699 = vmatpush1.msra.mxu0 0.0
      %700 = vmatprep.subr.mxu0 0.0
      %701 = vmatpush1.msra.mxu0 0.0
      %702 = vmatprep.subr.mxu0 0.0
      %703 = vmatpush1.msra.mxu0 0.0
      %704 = vmatprep.subr.mxu0 0.0
      %705 = vmatpush1.msra.mxu0 0.0
      %706 = vmatprep.subr.mxu0 0.0
      %707 = vmatpush1.msra.mxu0 0.0
      %708 = vmatprep.subr.mxu0 0.0
      %709 = vmatpush1.msra.mxu0 0.0
      %710 = vmatprep.subr.mxu0 0.0
      %711 = vmatpush1.msra.mxu0 0.0
      %712 = vmatprep.subr.mxu0 0.0
      %713 = vmatpush1.msra.mxu0 0.0
      %714 = vmatprep.subr.mxu0 0.0
      %715 = vmatpush1.msra.mxu0 0.0
      %716 = vmatprep.subr.mxu0 0.0
      %717 = vmatpush1.msra.mxu0 0.0
      %718 = vmatprep.subr.mxu0 0.0
      %719 = vmatpush1.msra.mxu0 0.0
      %720 = vmatprep.subr.mxu0 0.0
      %721 = vmatpush1.msra.mxu0 0.0
      %722 = vmatprep.mubr.f32.mxu0 0.0
      %723 = vmatmul.mubr.f32.gmra.mrb[0].mxu0 %v651
      %v724 = vpop.f32.mrb[0].mxu0
      %v725 = vadd.f32 %v645, %v724
      %v726 = vpop.f32.mrb[0].mxu0
      %v727 = vadd.f32 %v645, %v726
      %728 = vdwg.mxu0
      %v729 = vld [vmem:[%s586] sm:$0xff]
      %v730 = vld [vmem:[%s7] sm:$0xf]
      %732 = vset.pattern.permute.xlu0 0
      %733 = vperm.xlu0 %732, %v730
      %v734 = vpop.permute.xlu0 %733
      %v736 = vmul.f32 %v725, %v734
      %v737 = vmul.f32 %v727, %v734
      %v740 = vcombine.low %v736, %v737
      %v742 = vadd.f32 %v729, %v740
      %v744 = vcombine.high %v742, %v742
      %v746 = vsel %vm653, %v742, 0.0
      %v747 = vrot.slane %v746, 4
      %v748 = vadd.f32 %v746, %v747
      %v749 = vrot.slane %v748, 2
      %v750 = vadd.f32 %v748, %v749
      %v751 = vrot.slane %v750, 1
      %v752 = vadd.f32 %v750, %v751
      %v753 = vsel %vm653, %v744, 0.0
      %v754 = vrot.slane %v753, 4
      %v755 = vadd.f32 %v753, %v754
      %v756 = vrot.slane %v755, 2
      %v757 = vadd.f32 %v755, %v756
      %v758 = vrot.slane %v757, 1
      %v759 = vadd.f32 %v757, %v758
      %v760 = vrcp.pop 4.0
      %v761 = vmul.f32 %v752, %v760
      %v762 = vmul.f32 %v759, %v760
      %v765 = vcombine.low %v761, %v762
      %v767 = vsub.f32 %v742, %v765
      %v768 = vmul.f32 %v767, %v767
      %v770 = vcombine.high %v768, %v768
      %v772 = vsel %vm653, %v768, 0.0
      %v773 = vrot.slane %v772, 4
      %v774 = vadd.f32 %v772, %v773
      %v775 = vrot.slane %v774, 2
      %v776 = vadd.f32 %v774, %v775
      %v777 = vrot.slane %v776, 1
      %v778 = vadd.f32 %v776, %v777
      %v779 = vsel %vm653, %v770, 0.0
      %v780 = vrot.slane %v779, 4
      %v781 = vadd.f32 %v779, %v780
      %v782 = vrot.slane %v781, 2
      %v783 = vadd.f32 %v781, %v782
      %v784 = vrot.slane %v783, 1
      %v785 = vadd.f32 %v783, %v784
      %v786 = vmul.f32 %v778, %v760
      %v787 = vmul.f32 %v785, %v760
      %v788 = vadd.f32 %v786, 1e-05
      %v789 = vadd.f32 %v787, 1e-05
      %v790 = vrsqrt.pop %v788
      %v791 = vrsqrt.pop %v789
      %v794 = vcombine.low %v790, %v791
      %v796 = vmul.f32 %v767, %v794
      %v797 = vld [vmem:[%s8] sm:$0xf]
      %799 = vset.pattern.permute.xlu0 0
      %800 = vperm.xlu0 %799, %v797
      %v801 = vpop.permute.xlu0 %800
      %v803 = vunpack.c.l.s4 839922192
      %v804 = vunpack.c.0.s8 %v803
      %v805 = vlaneseq
      %v806 = vshrl.u32 %v805, 7
      %v807 = vsub.s32 %v804, %v806
      %v808 = vrot.slane %v801, %v807
      %v810 = vmul.f32 %v796, %v808
      %v811 = vld [vmem:[%s9] sm:$0xf]
      %v812 = vld [vmem:[%s10] sm:$0xf]
      %814 = vset.pattern.permute.xlu0 0
      %815 = vperm.xlu0 %814, %v812
      %v816 = vpop.permute.xlu0 %815
      %v819 = vcombine.high %v810, %v810
      %v821 = vsel %vm649, %v811, 0
      %v823 = vsel %vm653, %v810, 0
      %v825 = vsel %vm653, %v819, 0
      %827 = vmatprep.subr.mxu0 %v825
      %828 = vmatpush1.msra.mxu0 %v823
      %829 = vmatprep.subr.mxu0 0.0
      %830 = vmatpush1.msra.mxu0 0.0
      %831 = vmatprep.subr.mxu0 0.0
      %832 = vmatpush1.msra.mxu0 0.0
      %833 = vmatprep.subr.mxu0 0.0
      %834 = vmatpush1.msra.mxu0 0.0
      %835 = vmatprep.subr.mxu0 0.0
      %836 = vmatpush1.msra.mxu0 0.0
      %837 = vmatprep.subr.mxu0 0.0
      %838 = vmatpush1.msra.mxu0 0.0
      %839 = vmatprep.subr.mxu0 0.0
      %840 = vmatpush1.msra.mxu0 0.0
      %841 = vmatprep.subr.mxu0 0.0
      %842 = vmatpush1.msra.mxu0 0.0
      %843 = vmatprep.subr.mxu0 0.0
      %844 = vmatpush1.msra.mxu0 0.0
      %845 = vmatprep.subr.mxu0 0.0
      %846 = vmatpush1.msra.mxu0 0.0
      %847 = vmatprep.subr.mxu0 0.0
      %848 = vmatpush1.msra.mxu0 0.0
      %849 = vmatprep.subr.mxu0 0.0
      %850 = vmatpush1.msra.mxu0 0.0
      %851 = vmatprep.subr.mxu0 0.0
      %852 = vmatpush1.msra.mxu0 0.0
      %853 = vmatprep.subr.mxu0 0.0
      %854 = vmatpush1.msra.mxu0 0.0
      %855 = vmatprep.subr.mxu0 0.0
      %856 = vmatpush1.msra.mxu0 0.0
      %857 = vmatprep.subr.mxu0 0.0
      %858 = vmatpush1.msra.mxu0 0.0
      %859 = vmatprep.subr.mxu0 0.0
      %860 = vmatpush1.msra.mxu0 0.0
      %861 = vmatprep.subr.mxu0 0.0
      %862 = vmatpush1.msra.mxu0 0.0
      %863 = vmatprep.subr.mxu0 0.0
      %864 = vmatpush1.msra.mxu0 0.0
      %865 = vmatprep.subr.mxu0 0.0
      %866 = vmatpush1.msra.mxu0 0.0
      %867 = vmatprep.subr.mxu0 0.0
      %868 = vmatpush1.msra.mxu0 0.0
      %869 = vmatprep.subr.mxu0 0.0
      %870 = vmatpush1.msra.mxu0 0.0
      %871 = vmatprep.subr.mxu0 0.0
      %872 = vmatpush1.msra.mxu0 0.0
      %873 = vmatprep.subr.mxu0 0.0
      %874 = vmatpush1.msra.mxu0 0.0
      %875 = vmatprep.subr.mxu0 0.0
      %876 = vmatpush1.msra.mxu0 0.0
      %877 = vmatprep.subr.mxu0 0.0
      %878 = vmatpush1.msra.mxu0 0.0
      %879 = vmatprep.subr.mxu0 0.0
      %880 = vmatpush1.msra.mxu0 0.0
      %881 = vmatprep.subr.mxu0 0.0
      %882 = vmatpush1.msra.mxu0 0.0
      %883 = vmatprep.subr.mxu0 0.0
      %884 = vmatpush1.msra.mxu0 0.0
      %885 = vmatprep.subr.mxu0 0.0
      %886 = vmatpush1.msra.mxu0 0.0
      %887 = vmatprep.subr.mxu0 0.0
      %888 = vmatpush1.msra.mxu0 0.0
      %889 = vmatprep.subr.mxu0 0.0
      %890 = vmatpush1.msra.mxu0 0.0
      %891 = vmatprep.mubr.f32.mxu0 0.0
      %892 = vmatmul.mubr.f32.gmra.mrb[0].mxu0 %v821
      %v893 = vpop.f32.mrb[0].mxu0
      %v894 = vadd.f32 %v816, %v893
      %v895 = vpop.f32.mrb[0].mxu0
      %v896 = vadd.f32 %v816, %v895
      %897 = vdwg.mxu0
      %v898 = vld [vmem:[%s11] sm:$0xf]
      %v899 = vld [vmem:[%s12] sm:$0xf]
      %901 = vset.pattern.permute.xlu0 0
      %902 = vperm.xlu0 %901, %v899
      %v903 = vpop.permute.xlu0 %902
      %v906 = vsel %vm649, %v898, 0
      %908 = vmatprep.subr.mxu0 %v825
      %909 = vmatpush1.msra.mxu0 %v823
      %910 = vmatprep.subr.mxu0 0.0
      %911 = vmatpush1.msra.mxu0 0.0
      %912 = vmatprep.subr.mxu0 0.0
      %913 = vmatpush1.msra.mxu0 0.0
      %914 = vmatprep.subr.mxu0 0.0
      %915 = vmatpush1.msra.mxu0 0.0
      %916 = vmatprep.subr.mxu0 0.0
      %917 = vmatpush1.msra.mxu0 0.0
      %918 = vmatprep.subr.mxu0 0.0
      %919 = vmatpush1.msra.mxu0 0.0
      %920 = vmatprep.subr.mxu0 0.0
      %921 = vmatpush1.msra.mxu0 0.0
      %922 = vmatprep.subr.mxu0 0.0
      %923 = vmatpush1.msra.mxu0 0.0
      %924 = vmatprep.subr.mxu0 0.0
      %925 = vmatpush1.msra.mxu0 0.0
      %926 = vmatprep.subr.mxu0 0.0
      %927 = vmatpush1.msra.mxu0 0.0
      %928 = vmatprep.subr.mxu0 0.0
      %929 = vmatpush1.msra.mxu0 0.0
      %930 = vmatprep.subr.mxu0 0.0
      %931 = vmatpush1.msra.mxu0 0.0
      %932 = vmatprep.subr.mxu0 0.0
      %933 = vmatpush1.msra.mxu0 0.0
      %934 = vmatprep.subr.mxu0 0.0
      %935 = vmatpush1.msra.mxu0 0.0
      %936 = vmatprep.subr.mxu0 0.0
      %937 = vmatpush1.msra.mxu0 0.0
      %938 = vmatprep.subr.mxu0 0.0
      %939 = vmatpush1.msra.mxu0 0.0
      %940 = vmatprep.subr.mxu0 0.0
      %941 = vmatpush1.msra.mxu0 0.0
      %942 = vmatprep.subr.mxu0 0.0
      %943 = vmatpush1.msra.mxu0 0.0
      %944 = vmatprep.subr.mxu0 0.0
      %945 = vmatpush1.msra.mxu0 0.0
      %946 = vmatprep.subr.mxu0 0.0
      %947 = vmatpush1.msra.mxu0 0.0
      %948 = vmatprep.subr.mxu0 0.0
      %949 = vmatpush1.msra.mxu0 0.0
      %950 = vmatprep.subr.mxu0 0.0
      %951 = vmatpush1.msra.mxu0 0.0
      %952 = vmatprep.subr.mxu0 0.0
      %953 = vmatpush1.msra.mxu0 0.0
      %954 = vmatprep.subr.mxu0 0.0
      %955 = vmatpush1.msra.mxu0 0.0
      %956 = vmatprep.subr.mxu0 0.0
      %957 = vmatpush1.msra.mxu0 0.0
      %958 = vmatprep.subr.mxu0 0.0
      %959 = vmatpush1.msra.mxu0 0.0
      %960 = vmatprep.subr.mxu0 0.0
      %961 = vmatpush1.msra.mxu0 0.0
      %962 = vmatprep.subr.mxu0 0.0
      %963 = vmatpush1.msra.mxu0 0.0
      %964 = vmatprep.subr.mxu0 0.0
      %965 = vmatpush1.msra.mxu0 0.0
      %966 = vmatprep.subr.mxu0 0.0
      %967 = vmatpush1.msra.mxu0 0.0
      %968 = vmatprep.subr.mxu0 0.0
      %969 = vmatpush1.msra.mxu0 0.0
      %970 = vmatprep.subr.mxu0 0.0
      %971 = vmatpush1.msra.mxu0 0.0
      %972 = vmatprep.mubr.f32.mxu0 0.0
      %973 = vmatmul.mubr.f32.gmra.mrb[0].mxu0 %v906
      %v974 = vpop.f32.mrb[0].mxu0
      %v975 = vadd.f32 %v903, %v974
      %v976 = vpop.f32.mrb[0].mxu0
      %v977 = vadd.f32 %v903, %v976
      %978 = vdwg.mxu0
      %v979 = vmul.f32 %v894, %v975
      %v980 = vmul.f32 %v896, %v977
      %v981 = vld [vmem:[%s13] sm:$0xf]
      %v982 = vld [vmem:[%s14] sm:$0xf]
      %984 = vset.pattern.permute.xlu0 0
      %985 = vperm.xlu0 %984, %v982
      %v986 = vpop.permute.xlu0 %985
      %v989 = vsel %vm649, %v981, 0
      %v992 = vsel %vm653, %v979, 0
      %v995 = vsel %vm653, %v980, 0
      %997 = vmatprep.subr.mxu0 %v995
      %998 = vmatpush1.msra.mxu0 %v992
      %999 = vmatprep.subr.mxu0 0.0
      %1000 = vmatpush1.msra.mxu0 0.0
      %1001 = vmatprep.subr.mxu0 0.0
      %1002 = vmatpush1.msra.mxu0 0.0
      %1003 = vmatprep.subr.mxu0 0.0
      %1004 = vmatpush1.msra.mxu0 0.0
      %1005 = vmatprep.subr.mxu0 0.0
      %1006 = vmatpush1.msra.mxu0 0.0
      %1007 = vmatprep.subr.mxu0 0.0
      %1008 = vmatpush1.msra.mxu0 0.0
      %1009 = vmatprep.subr.mxu0 0.0
      %1010 = vmatpush1.msra.mxu0 0.0
      %1011 = vmatprep.subr.mxu0 0.0
      %1012 = vmatpush1.msra.mxu0 0.0
      %1013 = vmatprep.subr.mxu0 0.0
      %1014 = vmatpush1.msra.mxu0 0.0
      %1015 = vmatprep.subr.mxu0 0.0
      %1016 = vmatpush1.msra.mxu0 0.0
      %1017 = vmatprep.subr.mxu0 0.0
      %1018 = vmatpush1.msra.mxu0 0.0
      %1019 = vmatprep.subr.mxu0 0.0
      %1020 = vmatpush1.msra.mxu0 0.0
      %1021 = vmatprep.subr.mxu0 0.0
      %1022 = vmatpush1.msra.mxu0 0.0
      %1023 = vmatprep.subr.mxu0 0.0
      %1024 = vmatpush1.msra.mxu0 0.0
      %1025 = vmatprep.subr.mxu0 0.0
      %1026 = vmatpush1.msra.mxu0 0.0
      %1027 = vmatprep.subr.mxu0 0.0
      %1028 = vmatpush1.msra.mxu0 0.0
      %1029 = vmatprep.subr.mxu0 0.0
      %1030 = vmatpush1.msra.mxu0 0.0
      %1031 = vmatprep.subr.mxu0 0.0
      %1032 = vmatpush1.msra.mxu0 0.0
      %1033 = vmatprep.subr.mxu0 0.0
      %1034 = vmatpush1.msra.mxu0 0.0
      %1035 = vmatprep.subr.mxu0 0.0
      %1036 = vmatpush1.msra.mxu0 0.0
      %1037 = vmatprep.subr.mxu0 0.0
      %1038 = vmatpush1.msra.mxu0 0.0
      %1039 = vmatprep.subr.mxu0 0.0
      %1040 = vmatpush1.msra.mxu0 0.0
      %1041 = vmatprep.subr.mxu0 0.0
      %1042 = vmatpush1.msra.mxu0 0.0
      %1043 = vmatprep.subr.mxu0 0.0
      %1044 = vmatpush1.msra.mxu0 0.0
      %1045 = vmatprep.subr.mxu0 0.0
      %1046 = vmatpush1.msra.mxu0 0.0
      %1047 = vmatprep.subr.mxu0 0.0
      %1048 = vmatpush1.msra.mxu0 0.0
      %1049 = vmatprep.subr.mxu0 0.0
      %1050 = vmatpush1.msra.mxu0 0.0
      %1051 = vmatprep.subr.mxu0 0.0
      %1052 = vmatpush1.msra.mxu0 0.0
      %1053 = vmatprep.subr.mxu0 0.0
      %1054 = vmatpush1.msra.mxu0 0.0
      %1055 = vmatprep.subr.mxu0 0.0
      %1056 = vmatpush1.msra.mxu0 0.0
      %1057 = vmatprep.subr.mxu0 0.0
      %1058 = vmatpush1.msra.mxu0 0.0
      %1059 = vmatprep.subr.mxu0 0.0
      %1060 = vmatpush1.msra.mxu0 0.0
      %1061 = vmatprep.mubr.f32.mxu0 0.0
      %1062 = vmatmul.mubr.f32.gmra.mrb[0].mxu0 %v989
      %v1063 = vpop.f32.mrb[0].mxu0
      %v1064 = vadd.f32 %v986, %v1063
      %v1065 = vpop.f32.mrb[0].mxu0
      %v1066 = vadd.f32 %v986, %v1065
      %1067 = vdwg.mxu0
      %v1068 = vld [vmem:[%s15] sm:$0xf]
      %1070 = vset.pattern.permute.xlu0 0
      %1071 = vperm.xlu0 %1070, %v1068
      %v1072 = vpop.permute.xlu0 %1071
      %v1074 = vmul.f32 %v1064, %v1072
      %v1075 = vmul.f32 %v1066, %v1072
      %v1078 = vcombine.low %v1074, %v1075
      %v1080 = vadd.f32 %v742, %v1078
      %1081 = vst [vmem:[%s609] sm:$0xff] %v1080
      %s1082 = smul.u32 2, %s32
      %p1083 = scmp.lt.s32.totalorder %s31, 1
      %s1084 = scalar_select %p1083, %s31, 1
      %p1085 = scmp.lt.s32.totalorder %s1082, 1
      %s1086 = scalar_select %p1085, %s1082, 1
      %s1087 = smul.addr %s1084, 2
      %s1088 = sadd.s32 %s1086, %s1087
      %s1089 = smul.addr %s1088, 4
      %s1090 = scalar_lea.vmem %s16, %s1089
      // Predicated region
      $region85: #{nafblock_forward.5} parent=83 // pred_check
        %p1091 = pneg %p414
      $region86: #{nafblock_forward.5} parent=83 // pred_check_branch
        %1093 = sbr.rel (%p1091) target = $region88
      $region87: #{nafblock_forward.5} parent=83 // pred_region
        %s1094 = smul.u32 2, %s32
      $region88: #{nafblock_forward.5} parent=83 // pred_fallthru
        _
    $region84: #{nafblock_forward.5} parent=5 // pred_fallthru
      _
    %p1095 = scmp.le.s32.totalorder 2, %s22
    // Predicated region
    $region89: #{nafblock_forward.5} parent=5 // pred_check
      %p1096 = pneg %p1095
    $region90: #{nafblock_forward.5} parent=5 // pred_check_branch
      %1098 = sbr.rel (%p1096) target = $region92
    $region91: #{nafblock_forward.5} parent=5 // pred_region
      %s1099 = ssub.s32 %s22, 2
      // Predicated region
      $region93: #{nafblock_forward.5} parent=91 // pred_check
        %p1100 = pneg %p420
      $region94: #{nafblock_forward.5} parent=91 // pred_check_branch
        %1102 = sbr.rel (%p1100) target = $region96
      $region95: #{nafblock_forward.5} parent=91 // pred_region
        %s1103 = smul.u32 2, %s34
        %p1104 = scmp.lt.s32.totalorder %s33, 1
        %s1105 = scalar_select %p1104, %s33, 1
        %p1106 = scmp.lt.s32.totalorder %s1103, 1
        %s1107 = scalar_select %p1106, %s1103, 1
        %s1108 = smul.addr %s1105, 2
        %s1109 = sadd.s32 %s1107, %s1108
        %s1110 = smul.addr %s1109, 4
        %s1111 = scalar_lea.vmem %s16, %s1110
      $region96: #{nafblock_forward.5} parent=91 // pred_fallthru
        _
    $region92: #{nafblock_forward.5} parent=5 // pred_fallthru
      _
  $region6: #{nafblock_forward.5} parent=0 // loop_footer
    %s26 = sadd.s32 1, %s22
  $region7: #{nafblock_forward.5} parent=0 // loop_footer_branch
    %21 = sbr.rel target = $region3
  $region8: #{nafblock_forward.5} parent=0 // loop_exit
    _

</llo_original>
